<compile_context>
chip_gen: v6e
topology: v6e:2x2x1
jax: 0.10.0
libtpu: 0.0.40
codegen_flags: <defaults>
</compile_context>

<pallas_src>
import numpy as np

import jax
import jax.numpy as jnp
from jax.experimental import pallas as pl
from jax.experimental.pallas import tpu as pltpu


def _tap_masks_and_shifts(f, pad, H, W, nb):
    """Trace-time constants for one conv layer.

    Returns:
      masks:  (f*f, nb*H*W) f32, 1.0 where tap (kh, kw) is in-bounds for that
              output position, 0.0 otherwise (per-image, tiled nb times).
      shifts: tuple of f*f static flat lane shifts s = (kh-pad)*W + (kw-pad).
    """
    N = H * W
    idx = np.arange(N)
    oh = idx // W
    ow = idx % W
    masks = np.zeros((f * f, N), np.float32)
    shifts = []
    for kh in range(f):
        dh = kh - pad
        for kw in range(f):
            dw = kw - pad
            ok = (oh + dh >= 0) & (oh + dh < H) & (ow + dw >= 0) & (ow + dw < W)
            masks[kh * f + kw] = ok.astype(np.float32)
            shifts.append(dh * W + dw)
    if nb > 1:
        masks = np.tile(masks, (1, nb))
    return jnp.asarray(masks), tuple(shifts)


def _pick_batch_fold(B, N, target_lanes=1024):
    """How many images to fold into the lane axis per grid step.

    Widen the lane axis toward ~target_lanes (amortizes per-step overhead on
    v5e/v6e) while keeping >= 2 grid steps whenever B >= 2 (v7x megacore).
    """
    budget = max(1, target_lanes // N)
    cap = max(1, B // 2) if B >= 2 else 1
    nb = max(1, min(budget, cap, B))
    while nb > 1 and B % nb:
        nb -= 1
    return nb


def _conv_layer(a, m_ref, shifts, p_ref, w_ref, b_ref, *, cin, relu):
    """One size-preserving conv layer as roll-based im2col + a single MXU matmul.

    a:      (cin, L) f32 value, flattened spatial (x folded batch) on lanes.
    m_ref:  (f*f, L) per-tap boundary masks (f32 constants).
    shifts: static flat lane shift per tap.
    p_ref:  (>= f*f*cin, L) VMEM scratch used as the im2col matrix.
    w_ref:  (cout, f*f*cin) ref; row order is (kh*f + kw)*cin + ci.
    b_ref:  (cout, 1) ref.
    Returns (cout, L) f32 value (lane-dense).
    """
    L = a.shape[1]
    for t, s in enumerate(shifts):
        if s == 0:
            # Center tap: shift 0 and the mask is all-ones.
            val = a
        else:
            # XLU lane rotation + one full-width VPU multiply; wrapped lanes are
            # guaranteed out-of-bounds taps, so the mask zeros them.
            val = pltpu.roll(a, (-s) % L, axis=1) * m_ref[t:t + 1, :]
        p_ref[t * cin:(t + 1) * cin, :] = val            # one unmasked-lane store

    k = len(shifts) * cin
    acc = jnp.dot(w_ref[...], p_ref[0:k, :],
                  preferred_element_type=jnp.float32)    # (cout, L)
    acc = acc + b_ref[...]                               # (cout, 1) broadcast
    if relu:
        acc = jnp.maximum(acc, 0.0)
    return acc


def _make_srcnn_kernel(shifts1, shifts2, shifts3, c, n1, n2):
    def kernel(x_ref, m1_ref, m2_ref, m3_ref,
               w1_ref, b1_ref, w2_ref, b2_ref, w3_ref, b3_ref,
               out_ref, p_scr):
        a0 = x_ref[...]                                  # (c, L)
        h1 = _conv_layer(a0, m1_ref, shifts1, p_scr, w1_ref, b1_ref,
                         cin=c, relu=True)
        h2 = _conv_layer(h1, m2_ref, shifts2, p_scr, w2_ref, b2_ref,
                         cin=n1, relu=True)
        h3 = _conv_layer(h2, m3_ref, shifts3, p_scr, w3_ref, b3_ref,
                         cin=n2, relu=False)
        out_ref[...] = h3                                # lane-dense store
    return kernel


def srcnn_pallas(x_nchw, params, pads=(4, 1, 2)):
    """SRCNN forward. x_nchw: (B, c, H, W); params: ((w1,b1),(w2,b2),(w3,b3)) in OIHW."""
    (w1, b1), (w2, b2), (w3, b3) = params
    p1, p2, p3 = pads
    B, c, H, W = x_nchw.shape
    n1, _, f1, _ = w1.shape
    n2, _, f2, _ = w2.shape
    n3, _, f3, _ = w3.shape

    # Fused kernel assumes 'same' convolutions (spatial size preserved), which is
    # exactly what SRCNN's fixed paddings (4, 1, 2) give for f = (9, 3, 5).
    # TODO(synk): support non-size-preserving f/pad combos (needs per-layer Ho/Wo).
    for f, p in ((f1, p1), (f2, p2), (f3, p3)):
        assert 2 * p == f - 1, "kernel assumes size-preserving convolutions"
        # Conservative: guarantees every roll-wrapped lane is an out-of-bounds tap.
        assert p * (W + 1) < H * W, "image too small for this kernel size"

    N = H * W
    nb = _pick_batch_fold(B, N)                          # images per grid step
    G = B // nb
    L = nb * N
    K1, K2, K3 = f1 * f1 * c, f2 * f2 * n1, f3 * f3 * n2

    m1, s1 = _tap_masks_and_shifts(f1, p1, H, W, nb)
    m2, s2 = _tap_masks_and_shifts(f2, p2, H, W, nb)
    m3, s3 = _tap_masks_and_shifts(f3, p3, H, W, nb)

    def wmat(w, cout, cin, f):
        # OIHW -> (Cout, kh, kw, Cin) -> (Cout, f*f*Cin); matches im2col row order.
        return (jnp.transpose(w, (0, 2, 3, 1))
                .reshape(cout, f * f * cin).astype(jnp.float32))

    # Fold nb images into the lane axis: (G, c, nb*N), image-major within a slab.
    x_slab = (x_nchw.astype(jnp.float32)
              .reshape(G, nb, c, N)
              .transpose(0, 2, 1, 3)
              .reshape(G, c, L))

    # Actual VMEM footprint (+headroom); <1 MiB here, so a 4 MiB floor is plenty.
    est_bytes = 4 * (
        2 * c * L + 2 * n3 * L                                   # in/out blocks (x2 buf)
        + 2 * (n1 * K1 + n2 * K2 + n3 * K3 + n1 + n2 + n3)       # weights + biases
        + 2 * (f1 * f1 + f2 * f2 + f3 * f3) * L                  # tap masks
        + max(K1, K2, K3) * L                                    # im2col scratch
        + 2 * (n1 + n2 + n3) * L                                 # live activations
    )
    vmem_limit = int(min(48 * 1024 * 1024, max(4 * 1024 * 1024, 2 * est_bytes)))

    kernel = _make_srcnn_kernel(s1, s2, s3, c, n1, n2)

    out_flat = pl.pallas_call(
        kernel,
        out_shape=jax.ShapeDtypeStruct((G, n3, L), jnp.float32),
        grid=(G,),
        in_specs=[
            pl.BlockSpec((None, c, L), lambda g: (g, 0, 0)),     # nb images / program
            pl.BlockSpec((f1 * f1, L), lambda g: (0, 0)),        # grid-invariant masks
            pl.BlockSpec((f2 * f2, L), lambda g: (0, 0)),
            pl.BlockSpec((f3 * f3, L), lambda g: (0, 0)),
            pl.BlockSpec((n1, K1), lambda g: (0, 0)),
            pl.BlockSpec((n1, 1), lambda g: (0, 0)),
            pl.BlockSpec((n2, K2), lambda g: (0, 0)),
            pl.BlockSpec((n2, 1), lambda g: (0, 0)),
            pl.BlockSpec((n3, K3), lambda g: (0, 0)),
            pl.BlockSpec((n3, 1), lambda g: (0, 0)),
        ],
        out_specs=pl.BlockSpec((None, n3, L), lambda g: (g, 0, 0)),
        scratch_shapes=[pltpu.VMEM((max(K1, K2, K3), L), jnp.float32)],
        compiler_params=pltpu.CompilerParams(
            dimension_semantics=("parallel",),                   # megacore on v7x
            vmem_limit_bytes=vmem_limit),
    )(x_slab,
      m1, m2, m3,
      wmat(w1, n1, c, f1), b1.reshape(n1, 1).astype(jnp.float32),
      wmat(w2, n2, n1, f2), b2.reshape(n2, 1).astype(jnp.float32),
      wmat(w3, n3, n2, f3), b3.reshape(n3, 1).astype(jnp.float32))

    # (G, n3, nb*N) -> (B, n3, H, W)
    return (out_flat.reshape(G, n3, nb, N)
            .transpose(0, 2, 1, 3)
            .reshape(B, n3, H, W))


def srcnn_reference(x, params, pads=(4, 1, 2)):
    """Pure-JAX reference matching the PyTorch forward exactly."""
    def conv(x, w, b, pad):
        y = jax.lax.conv_general_dilated(
            x, w, window_strides=(1, 1),
            padding=[(pad, pad), (pad, pad)],
            dimension_numbers=("NCHW", "OIHW", "NCHW"))
        return y + b[None, :, None, None]

    (w1, b1), (w2, b2), (w3, b3) = params
    h = jax.nn.relu(conv(x, w1, b1, pads[0]))
    h = jax.nn.relu(conv(h, w2, b2, pads[1]))
    return conv(h, w3, b3, pads[2])


if __name__ == "__main__":
    # SRCNN(c=4, n1=16, n2=8, n3=4, f1=9, f2=3, f3=5); paddings (4,1,2) keep spatial size.
    c, n1, n2, n3 = 4, 16, 8, 4
    f1, f2, f3 = 9, 3, 5
    B, H, W = 2, 16, 16

    key = jax.random.PRNGKey(0)
    ks = jax.random.split(key, 7)
    x = jax.random.normal(ks[0], (B, c, H, W), jnp.float32)

    def init_conv(k_w, k_b, cout, cin, f):
        # deterministic, PyTorch-like uniform(-1/sqrt(fan_in), 1/sqrt(fan_in))
        bound = 1.0 / (cin * f * f) ** 0.5
        w = jax.random.uniform(k_w, (cout, cin, f, f), jnp.float32, -bound, bound)
        b = jax.random.uniform(k_b, (cout,), jnp.float32, -bound, bound)
        return w, b

    params = (init_conv(ks[1], ks[2], n1, c, f1),
              init_conv(ks[3], ks[4], n2, n1, f2),
              init_conv(ks[5], ks[6], n3, n2, f3))

    out = jax.block_until_ready(srcnn_pallas(x, params))
    ref = jax.block_until_ready(srcnn_reference(x, params))

    assert out.shape == ref.shape == (B, n3, H, W), (out.shape, ref.shape)
    err = float(jnp.max(jnp.abs(out - ref)))
    assert jnp.allclose(out, ref, atol=1e-3, rtol=1e-3), err
    print("KERNEL_OK")
</pallas_src>

<mosaic_0001>
module attributes {stable_mosaic.version = 11 : i64} {
  func.func @kernel(%arg0: i32, %arg1: memref<1x4x256xf32, #tpu.memory_space<vmem>>, %arg2: memref<81x256xf32, #tpu.memory_space<vmem>>, %arg3: memref<9x256xf32, #tpu.memory_space<vmem>>, %arg4: memref<25x256xf32, #tpu.memory_space<vmem>>, %arg5: memref<16x324xf32, #tpu.memory_space<vmem>>, %arg6: memref<16x1xf32, #tpu.memory_space<vmem>>, %arg7: memref<8x144xf32, #tpu.memory_space<vmem>>, %arg8: memref<8x1xf32, #tpu.memory_space<vmem>>, %arg9: memref<4x200xf32, #tpu.memory_space<vmem>>, %arg10: memref<4x1xf32, #tpu.memory_space<vmem>>, %arg11: memref<1x4x256xf32, #tpu.memory_space<vmem>>, %arg12: memref<324x256xf32, #tpu.memory_space<vmem>>) attributes {dimension_semantics = [#tpu.dimension_semantics<parallel>], iteration_bounds = array<i64: 2>, scalar_prefetch = 0 : i64, scratch_operands = 1 : i64, tpu.core_type = #tpu.core_type<tc>, window_params = [{transform_indices = @transform_0, window_bounds = array<i64: 1, 4, 256>}, {pipeline_mode = #tpu.pipeline_mode<synchronous>, transform_indices = @transform_1, window_bounds = array<i64: 81, 256>}, {pipeline_mode = #tpu.pipeline_mode<synchronous>, transform_indices = @transform_2, window_bounds = array<i64: 9, 256>}, {pipeline_mode = #tpu.pipeline_mode<synchronous>, transform_indices = @transform_3, window_bounds = array<i64: 25, 256>}, {pipeline_mode = #tpu.pipeline_mode<synchronous>, transform_indices = @transform_4, window_bounds = array<i64: 16, 324>}, {pipeline_mode = #tpu.pipeline_mode<synchronous>, transform_indices = @transform_5, window_bounds = array<i64: 16, 1>}, {pipeline_mode = #tpu.pipeline_mode<synchronous>, transform_indices = @transform_6, window_bounds = array<i64: 8, 144>}, {pipeline_mode = #tpu.pipeline_mode<synchronous>, transform_indices = @transform_7, window_bounds = array<i64: 8, 1>}, {pipeline_mode = #tpu.pipeline_mode<synchronous>, transform_indices = @transform_8, window_bounds = array<i64: 4, 200>}, {pipeline_mode = #tpu.pipeline_mode<synchronous>, transform_indices = @transform_9, window_bounds = array<i64: 4, 1>}, {transform_indices = @transform_10, window_bounds = array<i64: 1, 4, 256>}]} {
    %c0 = arith.constant 0 : index
    %c0_0 = arith.constant 0 : index
    %c0_1 = arith.constant 0 : index
    %0 = vector.load %arg1[%c0, %c0_0, %c0_1] : memref<1x4x256xf32, #tpu.memory_space<vmem>>, vector<1x4x256xf32>
    %1 = vector.shape_cast %0 : vector<1x4x256xf32> to vector<4x256xf32>
    %c68_i32 = arith.constant 68 : i32
    %2 = tpu.dynamic_rotate %1 by %c68_i32 dim 1 : vector<4x256xf32>, i32 -> vector<4x256xf32>
    %c0_2 = arith.constant 0 : index
    %c0_3 = arith.constant 0 : index
    %3 = vector.load %arg2[%c0_2, %c0_3] : memref<81x256xf32, #tpu.memory_space<vmem>>, vector<1x256xf32>
    %4 = vector.broadcast %3 : vector<1x256xf32> to vector<4x256xf32>
    %5 = arith.mulf %2, %4 : vector<4x256xf32>
    %c0_4 = arith.constant 0 : index
    %c0_5 = arith.constant 0 : index
    %6 = vector.load %arg12[%c0_4, %c0_5] : memref<324x256xf32, #tpu.memory_space<vmem>>, vector<4x256xf32>
    tpu.vector_store %arg12[%c0_4, %c0_5], %5 {strides = array<i32>} : memref<324x256xf32, #tpu.memory_space<vmem>>, vector<4x256xf32>,
    %c67_i32 = arith.constant 67 : i32
    %7 = tpu.dynamic_rotate %1 by %c67_i32 dim 1 : vector<4x256xf32>, i32 -> vector<4x256xf32>
    %c1 = arith.constant 1 : index
    %c0_6 = arith.constant 0 : index
    %8 = vector.load %arg2[%c1, %c0_6] : memref<81x256xf32, #tpu.memory_space<vmem>>, vector<1x256xf32>
    %9 = vector.broadcast %8 : vector<1x256xf32> to vector<4x256xf32>
    %10 = arith.mulf %7, %9 : vector<4x256xf32>
    %c4 = arith.constant 4 : index
    %c0_7 = arith.constant 0 : index
    %11 = vector.load %arg12[%c4, %c0_7] : memref<324x256xf32, #tpu.memory_space<vmem>>, vector<4x256xf32>
    tpu.vector_store %arg12[%c4, %c0_7], %10 {strides = array<i32>} : memref<324x256xf32, #tpu.memory_space<vmem>>, vector<4x256xf32>,
    %c66_i32 = arith.constant 66 : i32
    %12 = tpu.dynamic_rotate %1 by %c66_i32 dim 1 : vector<4x256xf32>, i32 -> vector<4x256xf32>
    %c2 = arith.constant 2 : index
    %c0_8 = arith.constant 0 : index
    %13 = vector.load %arg2[%c2, %c0_8] : memref<81x256xf32, #tpu.memory_space<vmem>>, vector<1x256xf32>
    %14 = vector.broadcast %13 : vector<1x256xf32> to vector<4x256xf32>
    %15 = arith.mulf %12, %14 : vector<4x256xf32>
    %c8 = arith.constant 8 : index
    %c0_9 = arith.constant 0 : index
    %16 = vector.load %arg12[%c8, %c0_9] : memref<324x256xf32, #tpu.memory_space<vmem>>, vector<4x256xf32>
    tpu.vector_store %arg12[%c8, %c0_9], %15 {strides = array<i32>} : memref<324x256xf32, #tpu.memory_space<vmem>>, vector<4x256xf32>,
    %c65_i32 = arith.constant 65 : i32
    %17 = tpu.dynamic_rotate %1 by %c65_i32 dim 1 : vector<4x256xf32>, i32 -> vector<4x256xf32>
    %c3 = arith.constant 3 : index
    %c0_10 = arith.constant 0 : index
    %18 = vector.load %arg2[%c3, %c0_10] : memref<81x256xf32, #tpu.memory_space<vmem>>, vector<1x256xf32>
    %19 = vector.broadcast %18 : vector<1x256xf32> to vector<4x256xf32>
    %20 = arith.mulf %17, %19 : vector<4x256xf32>
    %c12 = arith.constant 12 : index
    %c0_11 = arith.constant 0 : index
    %21 = vector.load %arg12[%c12, %c0_11] : memref<324x256xf32, #tpu.memory_space<vmem>>, vector<4x256xf32>
    tpu.vector_store %arg12[%c12, %c0_11], %20 {strides = array<i32>} : memref<324x256xf32, #tpu.memory_space<vmem>>, vector<4x256xf32>,
    %c64_i32 = arith.constant 64 : i32
    %22 = tpu.dynamic_rotate %1 by %c64_i32 dim 1 : vector<4x256xf32>, i32 -> vector<4x256xf32>
    %c4_12 = arith.constant 4 : index
    %c0_13 = arith.constant 0 : index
    %23 = vector.load %arg2[%c4_12, %c0_13] : memref<81x256xf32, #tpu.memory_space<vmem>>, vector<1x256xf32>
    %24 = vector.broadcast %23 : vector<1x256xf32> to vector<4x256xf32>
    %25 = arith.mulf %22, %24 : vector<4x256xf32>
    %c16 = arith.constant 16 : index
    %c0_14 = arith.constant 0 : index
    %26 = vector.load %arg12[%c16, %c0_14] : memref<324x256xf32, #tpu.memory_space<vmem>>, vector<4x256xf32>
    tpu.vector_store %arg12[%c16, %c0_14], %25 {strides = array<i32>} : memref<324x256xf32, #tpu.memory_space<vmem>>, vector<4x256xf32>,
    %c63_i32 = arith.constant 63 : i32
    %27 = tpu.dynamic_rotate %1 by %c63_i32 dim 1 : vector<4x256xf32>, i32 -> vector<4x256xf32>
    %c5 = arith.constant 5 : index
    %c0_15 = arith.constant 0 : index
    %28 = vector.load %arg2[%c5, %c0_15] : memref<81x256xf32, #tpu.memory_space<vmem>>, vector<1x256xf32>
    %29 = vector.broadcast %28 : vector<1x256xf32> to vector<4x256xf32>
    %30 = arith.mulf %27, %29 : vector<4x256xf32>
    %c20 = arith.constant 20 : index
    %c0_16 = arith.constant 0 : index
    %31 = vector.load %arg12[%c20, %c0_16] : memref<324x256xf32, #tpu.memory_space<vmem>>, vector<4x256xf32>
    tpu.vector_store %arg12[%c20, %c0_16], %30 {strides = array<i32>} : memref<324x256xf32, #tpu.memory_space<vmem>>, vector<4x256xf32>,
    %c62_i32 = arith.constant 62 : i32
    %32 = tpu.dynamic_rotate %1 by %c62_i32 dim 1 : vector<4x256xf32>, i32 -> vector<4x256xf32>
    %c6 = arith.constant 6 : index
    %c0_17 = arith.constant 0 : index
    %33 = vector.load %arg2[%c6, %c0_17] : memref<81x256xf32, #tpu.memory_space<vmem>>, vector<1x256xf32>
    %34 = vector.broadcast %33 : vector<1x256xf32> to vector<4x256xf32>
    %35 = arith.mulf %32, %34 : vector<4x256xf32>
    %c24 = arith.constant 24 : index
    %c0_18 = arith.constant 0 : index
    %36 = vector.load %arg12[%c24, %c0_18] : memref<324x256xf32, #tpu.memory_space<vmem>>, vector<4x256xf32>
    tpu.vector_store %arg12[%c24, %c0_18], %35 {strides = array<i32>} : memref<324x256xf32, #tpu.memory_space<vmem>>, vector<4x256xf32>,
    %c61_i32 = arith.constant 61 : i32
    %37 = tpu.dynamic_rotate %1 by %c61_i32 dim 1 : vector<4x256xf32>, i32 -> vector<4x256xf32>
    %c7 = arith.constant 7 : index
    %c0_19 = arith.constant 0 : index
    %38 = vector.load %arg2[%c7, %c0_19] : memref<81x256xf32, #tpu.memory_space<vmem>>, vector<1x256xf32>
    %39 = vector.broadcast %38 : vector<1x256xf32> to vector<4x256xf32>
    %40 = arith.mulf %37, %39 : vector<4x256xf32>
    %c28 = arith.constant 28 : index
    %c0_20 = arith.constant 0 : index
    %41 = vector.load %arg12[%c28, %c0_20] : memref<324x256xf32, #tpu.memory_space<vmem>>, vector<4x256xf32>
    tpu.vector_store %arg12[%c28, %c0_20], %40 {strides = array<i32>} : memref<324x256xf32, #tpu.memory_space<vmem>>, vector<4x256xf32>,
    %c60_i32 = arith.constant 60 : i32
    %42 = tpu.dynamic_rotate %1 by %c60_i32 dim 1 : vector<4x256xf32>, i32 -> vector<4x256xf32>
    %c8_21 = arith.constant 8 : index
    %c0_22 = arith.constant 0 : index
    %43 = vector.load %arg2[%c8_21, %c0_22] : memref<81x256xf32, #tpu.memory_space<vmem>>, vector<1x256xf32>
    %44 = vector.broadcast %43 : vector<1x256xf32> to vector<4x256xf32>
    %45 = arith.mulf %42, %44 : vector<4x256xf32>
    %c32 = arith.constant 32 : index
    %c0_23 = arith.constant 0 : index
    %46 = vector.load %arg12[%c32, %c0_23] : memref<324x256xf32, #tpu.memory_space<vmem>>, vector<4x256xf32>
    tpu.vector_store %arg12[%c32, %c0_23], %45 {strides = array<i32>} : memref<324x256xf32, #tpu.memory_space<vmem>>, vector<4x256xf32>,
    %c52_i32 = arith.constant 52 : i32
    %47 = tpu.dynamic_rotate %1 by %c52_i32 dim 1 : vector<4x256xf32>, i32 -> vector<4x256xf32>
    %c9 = arith.constant 9 : index
    %c0_24 = arith.constant 0 : index
    %48 = vector.load %arg2[%c9, %c0_24] : memref<81x256xf32, #tpu.memory_space<vmem>>, vector<1x256xf32>
    %49 = vector.broadcast %48 : vector<1x256xf32> to vector<4x256xf32>
    %50 = arith.mulf %47, %49 : vector<4x256xf32>
    %c36 = arith.constant 36 : index
    %c0_25 = arith.constant 0 : index
    %51 = vector.load %arg12[%c36, %c0_25] : memref<324x256xf32, #tpu.memory_space<vmem>>, vector<4x256xf32>
    tpu.vector_store %arg12[%c36, %c0_25], %50 {strides = array<i32>} : memref<324x256xf32, #tpu.memory_space<vmem>>, vector<4x256xf32>,
    %c51_i32 = arith.constant 51 : i32
    %52 = tpu.dynamic_rotate %1 by %c51_i32 dim 1 : vector<4x256xf32>, i32 -> vector<4x256xf32>
    %c10 = arith.constant 10 : index
    %c0_26 = arith.constant 0 : index
    %53 = vector.load %arg2[%c10, %c0_26] : memref<81x256xf32, #tpu.memory_space<vmem>>, vector<1x256xf32>
    %54 = vector.broadcast %53 : vector<1x256xf32> to vector<4x256xf32>
    %55 = arith.mulf %52, %54 : vector<4x256xf32>
    %c40 = arith.constant 40 : index
    %c0_27 = arith.constant 0 : index
    %56 = vector.load %arg12[%c40, %c0_27] : memref<324x256xf32, #tpu.memory_space<vmem>>, vector<4x256xf32>
    tpu.vector_store %arg12[%c40, %c0_27], %55 {strides = array<i32>} : memref<324x256xf32, #tpu.memory_space<vmem>>, vector<4x256xf32>,
    %c50_i32 = arith.constant 50 : i32
    %57 = tpu.dynamic_rotate %1 by %c50_i32 dim 1 : vector<4x256xf32>, i32 -> vector<4x256xf32>
    %c11 = arith.constant 11 : index
    %c0_28 = arith.constant 0 : index
    %58 = vector.load %arg2[%c11, %c0_28] : memref<81x256xf32, #tpu.memory_space<vmem>>, vector<1x256xf32>
    %59 = vector.broadcast %58 : vector<1x256xf32> to vector<4x256xf32>
    %60 = arith.mulf %57, %59 : vector<4x256xf32>
    %c44 = arith.constant 44 : index
    %c0_29 = arith.constant 0 : index
    %61 = vector.load %arg12[%c44, %c0_29] : memref<324x256xf32, #tpu.memory_space<vmem>>, vector<4x256xf32>
    tpu.vector_store %arg12[%c44, %c0_29], %60 {strides = array<i32>} : memref<324x256xf32, #tpu.memory_space<vmem>>, vector<4x256xf32>,
    %c49_i32 = arith.constant 49 : i32
    %62 = tpu.dynamic_rotate %1 by %c49_i32 dim 1 : vector<4x256xf32>, i32 -> vector<4x256xf32>
    %c12_30 = arith.constant 12 : index
    %c0_31 = arith.constant 0 : index
    %63 = vector.load %arg2[%c12_30, %c0_31] : memref<81x256xf32, #tpu.memory_space<vmem>>, vector<1x256xf32>
    %64 = vector.broadcast %63 : vector<1x256xf32> to vector<4x256xf32>
    %65 = arith.mulf %62, %64 : vector<4x256xf32>
    %c48 = arith.constant 48 : index
    %c0_32 = arith.constant 0 : index
    %66 = vector.load %arg12[%c48, %c0_32] : memref<324x256xf32, #tpu.memory_space<vmem>>, vector<4x256xf32>
    tpu.vector_store %arg12[%c48, %c0_32], %65 {strides = array<i32>} : memref<324x256xf32, #tpu.memory_space<vmem>>, vector<4x256xf32>,
    %c48_i32 = arith.constant 48 : i32
    %67 = tpu.dynamic_rotate %1 by %c48_i32 dim 1 : vector<4x256xf32>, i32 -> vector<4x256xf32>
    %c13 = arith.constant 13 : index
    %c0_33 = arith.constant 0 : index
    %68 = vector.load %arg2[%c13, %c0_33] : memref<81x256xf32, #tpu.memory_space<vmem>>, vector<1x256xf32>
    %69 = vector.broadcast %68 : vector<1x256xf32> to vector<4x256xf32>
    %70 = arith.mulf %67, %69 : vector<4x256xf32>
    %c52 = arith.constant 52 : index
    %c0_34 = arith.constant 0 : index
    %71 = vector.load %arg12[%c52, %c0_34] : memref<324x256xf32, #tpu.memory_space<vmem>>, vector<4x256xf32>
    tpu.vector_store %arg12[%c52, %c0_34], %70 {strides = array<i32>} : memref<324x256xf32, #tpu.memory_space<vmem>>, vector<4x256xf32>,
    %c47_i32 = arith.constant 47 : i32
    %72 = tpu.dynamic_rotate %1 by %c47_i32 dim 1 : vector<4x256xf32>, i32 -> vector<4x256xf32>
    %c14 = arith.constant 14 : index
    %c0_35 = arith.constant 0 : index
    %73 = vector.load %arg2[%c14, %c0_35] : memref<81x256xf32, #tpu.memory_space<vmem>>, vector<1x256xf32>
    %74 = vector.broadcast %73 : vector<1x256xf32> to vector<4x256xf32>
    %75 = arith.mulf %72, %74 : vector<4x256xf32>
    %c56 = arith.constant 56 : index
    %c0_36 = arith.constant 0 : index
    %76 = vector.load %arg12[%c56, %c0_36] : memref<324x256xf32, #tpu.memory_space<vmem>>, vector<4x256xf32>
    tpu.vector_store %arg12[%c56, %c0_36], %75 {strides = array<i32>} : memref<324x256xf32, #tpu.memory_space<vmem>>, vector<4x256xf32>,
    %c46_i32 = arith.constant 46 : i32
    %77 = tpu.dynamic_rotate %1 by %c46_i32 dim 1 : vector<4x256xf32>, i32 -> vector<4x256xf32>
    %c15 = arith.constant 15 : index
    %c0_37 = arith.constant 0 : index
    %78 = vector.load %arg2[%c15, %c0_37] : memref<81x256xf32, #tpu.memory_space<vmem>>, vector<1x256xf32>
    %79 = vector.broadcast %78 : vector<1x256xf32> to vector<4x256xf32>
    %80 = arith.mulf %77, %79 : vector<4x256xf32>
    %c60 = arith.constant 60 : index
    %c0_38 = arith.constant 0 : index
    %81 = vector.load %arg12[%c60, %c0_38] : memref<324x256xf32, #tpu.memory_space<vmem>>, vector<4x256xf32>
    tpu.vector_store %arg12[%c60, %c0_38], %80 {strides = array<i32>} : memref<324x256xf32, #tpu.memory_space<vmem>>, vector<4x256xf32>,
    %c45_i32 = arith.constant 45 : i32
    %82 = tpu.dynamic_rotate %1 by %c45_i32 dim 1 : vector<4x256xf32>, i32 -> vector<4x256xf32>
    %c16_39 = arith.constant 16 : index
    %c0_40 = arith.constant 0 : index
    %83 = vector.load %arg2[%c16_39, %c0_40] : memref<81x256xf32, #tpu.memory_space<vmem>>, vector<1x256xf32>
    %84 = vector.broadcast %83 : vector<1x256xf32> to vector<4x256xf32>
    %85 = arith.mulf %82, %84 : vector<4x256xf32>
    %c64 = arith.constant 64 : index
    %c0_41 = arith.constant 0 : index
    %86 = vector.load %arg12[%c64, %c0_41] : memref<324x256xf32, #tpu.memory_space<vmem>>, vector<4x256xf32>
    tpu.vector_store %arg12[%c64, %c0_41], %85 {strides = array<i32>} : memref<324x256xf32, #tpu.memory_space<vmem>>, vector<4x256xf32>,
    %c44_i32 = arith.constant 44 : i32
    %87 = tpu.dynamic_rotate %1 by %c44_i32 dim 1 : vector<4x256xf32>, i32 -> vector<4x256xf32>
    %c17 = arith.constant 17 : index
    %c0_42 = arith.constant 0 : index
    %88 = vector.load %arg2[%c17, %c0_42] : memref<81x256xf32, #tpu.memory_space<vmem>>, vector<1x256xf32>
    %89 = vector.broadcast %88 : vector<1x256xf32> to vector<4x256xf32>
    %90 = arith.mulf %87, %89 : vector<4x256xf32>
    %c68 = arith.constant 68 : index
    %c0_43 = arith.constant 0 : index
    %91 = vector.load %arg12[%c68, %c0_43] : memref<324x256xf32, #tpu.memory_space<vmem>>, vector<4x256xf32>
    tpu.vector_store %arg12[%c68, %c0_43], %90 {strides = array<i32>} : memref<324x256xf32, #tpu.memory_space<vmem>>, vector<4x256xf32>,
    %c36_i32 = arith.constant 36 : i32
    %92 = tpu.dynamic_rotate %1 by %c36_i32 dim 1 : vector<4x256xf32>, i32 -> vector<4x256xf32>
    %c18 = arith.constant 18 : index
    %c0_44 = arith.constant 0 : index
    %93 = vector.load %arg2[%c18, %c0_44] : memref<81x256xf32, #tpu.memory_space<vmem>>, vector<1x256xf32>
    %94 = vector.broadcast %93 : vector<1x256xf32> to vector<4x256xf32>
    %95 = arith.mulf %92, %94 : vector<4x256xf32>
    %c72 = arith.constant 72 : index
    %c0_45 = arith.constant 0 : index
    %96 = vector.load %arg12[%c72, %c0_45] : memref<324x256xf32, #tpu.memory_space<vmem>>, vector<4x256xf32>
    tpu.vector_store %arg12[%c72, %c0_45], %95 {strides = array<i32>} : memref<324x256xf32, #tpu.memory_space<vmem>>, vector<4x256xf32>,
    %c35_i32 = arith.constant 35 : i32
    %97 = tpu.dynamic_rotate %1 by %c35_i32 dim 1 : vector<4x256xf32>, i32 -> vector<4x256xf32>
    %c19 = arith.constant 19 : index
    %c0_46 = arith.constant 0 : index
    %98 = vector.load %arg2[%c19, %c0_46] : memref<81x256xf32, #tpu.memory_space<vmem>>, vector<1x256xf32>
    %99 = vector.broadcast %98 : vector<1x256xf32> to vector<4x256xf32>
    %100 = arith.mulf %97, %99 : vector<4x256xf32>
    %c76 = arith.constant 76 : index
    %c0_47 = arith.constant 0 : index
    %101 = vector.load %arg12[%c76, %c0_47] : memref<324x256xf32, #tpu.memory_space<vmem>>, vector<4x256xf32>
    tpu.vector_store %arg12[%c76, %c0_47], %100 {strides = array<i32>} : memref<324x256xf32, #tpu.memory_space<vmem>>, vector<4x256xf32>,
    %c34_i32 = arith.constant 34 : i32
    %102 = tpu.dynamic_rotate %1 by %c34_i32 dim 1 : vector<4x256xf32>, i32 -> vector<4x256xf32>
    %c20_48 = arith.constant 20 : index
    %c0_49 = arith.constant 0 : index
    %103 = vector.load %arg2[%c20_48, %c0_49] : memref<81x256xf32, #tpu.memory_space<vmem>>, vector<1x256xf32>
    %104 = vector.broadcast %103 : vector<1x256xf32> to vector<4x256xf32>
    %105 = arith.mulf %102, %104 : vector<4x256xf32>
    %c80 = arith.constant 80 : index
    %c0_50 = arith.constant 0 : index
    %106 = vector.load %arg12[%c80, %c0_50] : memref<324x256xf32, #tpu.memory_space<vmem>>, vector<4x256xf32>
    tpu.vector_store %arg12[%c80, %c0_50], %105 {strides = array<i32>} : memref<324x256xf32, #tpu.memory_space<vmem>>, vector<4x256xf32>,
    %c33_i32 = arith.constant 33 : i32
    %107 = tpu.dynamic_rotate %1 by %c33_i32 dim 1 : vector<4x256xf32>, i32 -> vector<4x256xf32>
    %c21 = arith.constant 21 : index
    %c0_51 = arith.constant 0 : index
    %108 = vector.load %arg2[%c21, %c0_51] : memref<81x256xf32, #tpu.memory_space<vmem>>, vector<1x256xf32>
    %109 = vector.broadcast %108 : vector<1x256xf32> to vector<4x256xf32>
    %110 = arith.mulf %107, %109 : vector<4x256xf32>
    %c84 = arith.constant 84 : index
    %c0_52 = arith.constant 0 : index
    %111 = vector.load %arg12[%c84, %c0_52] : memref<324x256xf32, #tpu.memory_space<vmem>>, vector<4x256xf32>
    tpu.vector_store %arg12[%c84, %c0_52], %110 {strides = array<i32>} : memref<324x256xf32, #tpu.memory_space<vmem>>, vector<4x256xf32>,
    %c32_i32 = arith.constant 32 : i32
    %112 = tpu.dynamic_rotate %1 by %c32_i32 dim 1 : vector<4x256xf32>, i32 -> vector<4x256xf32>
    %c22 = arith.constant 22 : index
    %c0_53 = arith.constant 0 : index
    %113 = vector.load %arg2[%c22, %c0_53] : memref<81x256xf32, #tpu.memory_space<vmem>>, vector<1x256xf32>
    %114 = vector.broadcast %113 : vector<1x256xf32> to vector<4x256xf32>
    %115 = arith.mulf %112, %114 : vector<4x256xf32>
    %c88 = arith.constant 88 : index
    %c0_54 = arith.constant 0 : index
    %116 = vector.load %arg12[%c88, %c0_54] : memref<324x256xf32, #tpu.memory_space<vmem>>, vector<4x256xf32>
    tpu.vector_store %arg12[%c88, %c0_54], %115 {strides = array<i32>} : memref<324x256xf32, #tpu.memory_space<vmem>>, vector<4x256xf32>,
    %c31_i32 = arith.constant 31 : i32
    %117 = tpu.dynamic_rotate %1 by %c31_i32 dim 1 : vector<4x256xf32>, i32 -> vector<4x256xf32>
    %c23 = arith.constant 23 : index
    %c0_55 = arith.constant 0 : index
    %118 = vector.load %arg2[%c23, %c0_55] : memref<81x256xf32, #tpu.memory_space<vmem>>, vector<1x256xf32>
    %119 = vector.broadcast %118 : vector<1x256xf32> to vector<4x256xf32>
    %120 = arith.mulf %117, %119 : vector<4x256xf32>
    %c92 = arith.constant 92 : index
    %c0_56 = arith.constant 0 : index
    %121 = vector.load %arg12[%c92, %c0_56] : memref<324x256xf32, #tpu.memory_space<vmem>>, vector<4x256xf32>
    tpu.vector_store %arg12[%c92, %c0_56], %120 {strides = array<i32>} : memref<324x256xf32, #tpu.memory_space<vmem>>, vector<4x256xf32>,
    %c30_i32 = arith.constant 30 : i32
    %122 = tpu.dynamic_rotate %1 by %c30_i32 dim 1 : vector<4x256xf32>, i32 -> vector<4x256xf32>
    %c24_57 = arith.constant 24 : index
    %c0_58 = arith.constant 0 : index
    %123 = vector.load %arg2[%c24_57, %c0_58] : memref<81x256xf32, #tpu.memory_space<vmem>>, vector<1x256xf32>
    %124 = vector.broadcast %123 : vector<1x256xf32> to vector<4x256xf32>
    %125 = arith.mulf %122, %124 : vector<4x256xf32>
    %c96 = arith.constant 96 : index
    %c0_59 = arith.constant 0 : index
    %126 = vector.load %arg12[%c96, %c0_59] : memref<324x256xf32, #tpu.memory_space<vmem>>, vector<4x256xf32>
    tpu.vector_store %arg12[%c96, %c0_59], %125 {strides = array<i32>} : memref<324x256xf32, #tpu.memory_space<vmem>>, vector<4x256xf32>,
    %c29_i32 = arith.constant 29 : i32
    %127 = tpu.dynamic_rotate %1 by %c29_i32 dim 1 : vector<4x256xf32>, i32 -> vector<4x256xf32>
    %c25 = arith.constant 25 : index
    %c0_60 = arith.constant 0 : index
    %128 = vector.load %arg2[%c25, %c0_60] : memref<81x256xf32, #tpu.memory_space<vmem>>, vector<1x256xf32>
    %129 = vector.broadcast %128 : vector<1x256xf32> to vector<4x256xf32>
    %130 = arith.mulf %127, %129 : vector<4x256xf32>
    %c100 = arith.constant 100 : index
    %c0_61 = arith.constant 0 : index
    %131 = vector.load %arg12[%c100, %c0_61] : memref<324x256xf32, #tpu.memory_space<vmem>>, vector<4x256xf32>
    tpu.vector_store %arg12[%c100, %c0_61], %130 {strides = array<i32>} : memref<324x256xf32, #tpu.memory_space<vmem>>, vector<4x256xf32>,
    %c28_i32 = arith.constant 28 : i32
    %132 = tpu.dynamic_rotate %1 by %c28_i32 dim 1 : vector<4x256xf32>, i32 -> vector<4x256xf32>
    %c26 = arith.constant 26 : index
    %c0_62 = arith.constant 0 : index
    %133 = vector.load %arg2[%c26, %c0_62] : memref<81x256xf32, #tpu.memory_space<vmem>>, vector<1x256xf32>
    %134 = vector.broadcast %133 : vector<1x256xf32> to vector<4x256xf32>
    %135 = arith.mulf %132, %134 : vector<4x256xf32>
    %c104 = arith.constant 104 : index
    %c0_63 = arith.constant 0 : index
    %136 = vector.load %arg12[%c104, %c0_63] : memref<324x256xf32, #tpu.memory_space<vmem>>, vector<4x256xf32>
    tpu.vector_store %arg12[%c104, %c0_63], %135 {strides = array<i32>} : memref<324x256xf32, #tpu.memory_space<vmem>>, vector<4x256xf32>,
    %c20_i32 = arith.constant 20 : i32
    %137 = tpu.dynamic_rotate %1 by %c20_i32 dim 1 : vector<4x256xf32>, i32 -> vector<4x256xf32>
    %c27 = arith.constant 27 : index
    %c0_64 = arith.constant 0 : index
    %138 = vector.load %arg2[%c27, %c0_64] : memref<81x256xf32, #tpu.memory_space<vmem>>, vector<1x256xf32>
    %139 = vector.broadcast %138 : vector<1x256xf32> to vector<4x256xf32>
    %140 = arith.mulf %137, %139 : vector<4x256xf32>
    %c108 = arith.constant 108 : index
    %c0_65 = arith.constant 0 : index
    %141 = vector.load %arg12[%c108, %c0_65] : memref<324x256xf32, #tpu.memory_space<vmem>>, vector<4x256xf32>
    tpu.vector_store %arg12[%c108, %c0_65], %140 {strides = array<i32>} : memref<324x256xf32, #tpu.memory_space<vmem>>, vector<4x256xf32>,
    %c19_i32 = arith.constant 19 : i32
    %142 = tpu.dynamic_rotate %1 by %c19_i32 dim 1 : vector<4x256xf32>, i32 -> vector<4x256xf32>
    %c28_66 = arith.constant 28 : index
    %c0_67 = arith.constant 0 : index
    %143 = vector.load %arg2[%c28_66, %c0_67] : memref<81x256xf32, #tpu.memory_space<vmem>>, vector<1x256xf32>
    %144 = vector.broadcast %143 : vector<1x256xf32> to vector<4x256xf32>
    %145 = arith.mulf %142, %144 : vector<4x256xf32>
    %c112 = arith.constant 112 : index
    %c0_68 = arith.constant 0 : index
    %146 = vector.load %arg12[%c112, %c0_68] : memref<324x256xf32, #tpu.memory_space<vmem>>, vector<4x256xf32>
    tpu.vector_store %arg12[%c112, %c0_68], %145 {strides = array<i32>} : memref<324x256xf32, #tpu.memory_space<vmem>>, vector<4x256xf32>,
    %c18_i32 = arith.constant 18 : i32
    %147 = tpu.dynamic_rotate %1 by %c18_i32 dim 1 : vector<4x256xf32>, i32 -> vector<4x256xf32>
    %c29 = arith.constant 29 : index
    %c0_69 = arith.constant 0 : index
    %148 = vector.load %arg2[%c29, %c0_69] : memref<81x256xf32, #tpu.memory_space<vmem>>, vector<1x256xf32>
    %149 = vector.broadcast %148 : vector<1x256xf32> to vector<4x256xf32>
    %150 = arith.mulf %147, %149 : vector<4x256xf32>
    %c116 = arith.constant 116 : index
    %c0_70 = arith.constant 0 : index
    %151 = vector.load %arg12[%c116, %c0_70] : memref<324x256xf32, #tpu.memory_space<vmem>>, vector<4x256xf32>
    tpu.vector_store %arg12[%c116, %c0_70], %150 {strides = array<i32>} : memref<324x256xf32, #tpu.memory_space<vmem>>, vector<4x256xf32>,
    %c17_i32 = arith.constant 17 : i32
    %152 = tpu.dynamic_rotate %1 by %c17_i32 dim 1 : vector<4x256xf32>, i32 -> vector<4x256xf32>
    %c30 = arith.constant 30 : index
    %c0_71 = arith.constant 0 : index
    %153 = vector.load %arg2[%c30, %c0_71] : memref<81x256xf32, #tpu.memory_space<vmem>>, vector<1x256xf32>
    %154 = vector.broadcast %153 : vector<1x256xf32> to vector<4x256xf32>
    %155 = arith.mulf %152, %154 : vector<4x256xf32>
    %c120 = arith.constant 120 : index
    %c0_72 = arith.constant 0 : index
    %156 = vector.load %arg12[%c120, %c0_72] : memref<324x256xf32, #tpu.memory_space<vmem>>, vector<4x256xf32>
    tpu.vector_store %arg12[%c120, %c0_72], %155 {strides = array<i32>} : memref<324x256xf32, #tpu.memory_space<vmem>>, vector<4x256xf32>,
    %c16_i32 = arith.constant 16 : i32
    %157 = tpu.dynamic_rotate %1 by %c16_i32 dim 1 : vector<4x256xf32>, i32 -> vector<4x256xf32>
    %c31 = arith.constant 31 : index
    %c0_73 = arith.constant 0 : index
    %158 = vector.load %arg2[%c31, %c0_73] : memref<81x256xf32, #tpu.memory_space<vmem>>, vector<1x256xf32>
    %159 = vector.broadcast %158 : vector<1x256xf32> to vector<4x256xf32>
    %160 = arith.mulf %157, %159 : vector<4x256xf32>
    %c124 = arith.constant 124 : index
    %c0_74 = arith.constant 0 : index
    %161 = vector.load %arg12[%c124, %c0_74] : memref<324x256xf32, #tpu.memory_space<vmem>>, vector<4x256xf32>
    tpu.vector_store %arg12[%c124, %c0_74], %160 {strides = array<i32>} : memref<324x256xf32, #tpu.memory_space<vmem>>, vector<4x256xf32>,
    %c15_i32 = arith.constant 15 : i32
    %162 = tpu.dynamic_rotate %1 by %c15_i32 dim 1 : vector<4x256xf32>, i32 -> vector<4x256xf32>
    %c32_75 = arith.constant 32 : index
    %c0_76 = arith.constant 0 : index
    %163 = vector.load %arg2[%c32_75, %c0_76] : memref<81x256xf32, #tpu.memory_space<vmem>>, vector<1x256xf32>
    %164 = vector.broadcast %163 : vector<1x256xf32> to vector<4x256xf32>
    %165 = arith.mulf %162, %164 : vector<4x256xf32>
    %c128 = arith.constant 128 : index
    %c0_77 = arith.constant 0 : index
    %166 = vector.load %arg12[%c128, %c0_77] : memref<324x256xf32, #tpu.memory_space<vmem>>, vector<4x256xf32>
    tpu.vector_store %arg12[%c128, %c0_77], %165 {strides = array<i32>} : memref<324x256xf32, #tpu.memory_space<vmem>>, vector<4x256xf32>,
    %c14_i32 = arith.constant 14 : i32
    %167 = tpu.dynamic_rotate %1 by %c14_i32 dim 1 : vector<4x256xf32>, i32 -> vector<4x256xf32>
    %c33 = arith.constant 33 : index
    %c0_78 = arith.constant 0 : index
    %168 = vector.load %arg2[%c33, %c0_78] : memref<81x256xf32, #tpu.memory_space<vmem>>, vector<1x256xf32>
    %169 = vector.broadcast %168 : vector<1x256xf32> to vector<4x256xf32>
    %170 = arith.mulf %167, %169 : vector<4x256xf32>
    %c132 = arith.constant 132 : index
    %c0_79 = arith.constant 0 : index
    %171 = vector.load %arg12[%c132, %c0_79] : memref<324x256xf32, #tpu.memory_space<vmem>>, vector<4x256xf32>
    tpu.vector_store %arg12[%c132, %c0_79], %170 {strides = array<i32>} : memref<324x256xf32, #tpu.memory_space<vmem>>, vector<4x256xf32>,
    %c13_i32 = arith.constant 13 : i32
    %172 = tpu.dynamic_rotate %1 by %c13_i32 dim 1 : vector<4x256xf32>, i32 -> vector<4x256xf32>
    %c34 = arith.constant 34 : index
    %c0_80 = arith.constant 0 : index
    %173 = vector.load %arg2[%c34, %c0_80] : memref<81x256xf32, #tpu.memory_space<vmem>>, vector<1x256xf32>
    %174 = vector.broadcast %173 : vector<1x256xf32> to vector<4x256xf32>
    %175 = arith.mulf %172, %174 : vector<4x256xf32>
    %c136 = arith.constant 136 : index
    %c0_81 = arith.constant 0 : index
    %176 = vector.load %arg12[%c136, %c0_81] : memref<324x256xf32, #tpu.memory_space<vmem>>, vector<4x256xf32>
    tpu.vector_store %arg12[%c136, %c0_81], %175 {strides = array<i32>} : memref<324x256xf32, #tpu.memory_space<vmem>>, vector<4x256xf32>,
    %c12_i32 = arith.constant 12 : i32
    %177 = tpu.dynamic_rotate %1 by %c12_i32 dim 1 : vector<4x256xf32>, i32 -> vector<4x256xf32>
    %c35 = arith.constant 35 : index
    %c0_82 = arith.constant 0 : index
    %178 = vector.load %arg2[%c35, %c0_82] : memref<81x256xf32, #tpu.memory_space<vmem>>, vector<1x256xf32>
    %179 = vector.broadcast %178 : vector<1x256xf32> to vector<4x256xf32>
    %180 = arith.mulf %177, %179 : vector<4x256xf32>
    %c140 = arith.constant 140 : index
    %c0_83 = arith.constant 0 : index
    %181 = vector.load %arg12[%c140, %c0_83] : memref<324x256xf32, #tpu.memory_space<vmem>>, vector<4x256xf32>
    tpu.vector_store %arg12[%c140, %c0_83], %180 {strides = array<i32>} : memref<324x256xf32, #tpu.memory_space<vmem>>, vector<4x256xf32>,
    %c4_i32 = arith.constant 4 : i32
    %182 = tpu.dynamic_rotate %1 by %c4_i32 dim 1 : vector<4x256xf32>, i32 -> vector<4x256xf32>
    %c36_84 = arith.constant 36 : index
    %c0_85 = arith.constant 0 : index
    %183 = vector.load %arg2[%c36_84, %c0_85] : memref<81x256xf32, #tpu.memory_space<vmem>>, vector<1x256xf32>
    %184 = vector.broadcast %183 : vector<1x256xf32> to vector<4x256xf32>
    %185 = arith.mulf %182, %184 : vector<4x256xf32>
    %c144 = arith.constant 144 : index
    %c0_86 = arith.constant 0 : index
    %186 = vector.load %arg12[%c144, %c0_86] : memref<324x256xf32, #tpu.memory_space<vmem>>, vector<4x256xf32>
    tpu.vector_store %arg12[%c144, %c0_86], %185 {strides = array<i32>} : memref<324x256xf32, #tpu.memory_space<vmem>>, vector<4x256xf32>,
    %c3_i32 = arith.constant 3 : i32
    %187 = tpu.dynamic_rotate %1 by %c3_i32 dim 1 : vector<4x256xf32>, i32 -> vector<4x256xf32>
    %c37 = arith.constant 37 : index
    %c0_87 = arith.constant 0 : index
    %188 = vector.load %arg2[%c37, %c0_87] : memref<81x256xf32, #tpu.memory_space<vmem>>, vector<1x256xf32>
    %189 = vector.broadcast %188 : vector<1x256xf32> to vector<4x256xf32>
    %190 = arith.mulf %187, %189 : vector<4x256xf32>
    %c148 = arith.constant 148 : index
    %c0_88 = arith.constant 0 : index
    %191 = vector.load %arg12[%c148, %c0_88] : memref<324x256xf32, #tpu.memory_space<vmem>>, vector<4x256xf32>
    tpu.vector_store %arg12[%c148, %c0_88], %190 {strides = array<i32>} : memref<324x256xf32, #tpu.memory_space<vmem>>, vector<4x256xf32>,
    %c2_i32 = arith.constant 2 : i32
    %192 = tpu.dynamic_rotate %1 by %c2_i32 dim 1 : vector<4x256xf32>, i32 -> vector<4x256xf32>
    %c38 = arith.constant 38 : index
    %c0_89 = arith.constant 0 : index
    %193 = vector.load %arg2[%c38, %c0_89] : memref<81x256xf32, #tpu.memory_space<vmem>>, vector<1x256xf32>
    %194 = vector.broadcast %193 : vector<1x256xf32> to vector<4x256xf32>
    %195 = arith.mulf %192, %194 : vector<4x256xf32>
    %c152 = arith.constant 152 : index
    %c0_90 = arith.constant 0 : index
    %196 = vector.load %arg12[%c152, %c0_90] : memref<324x256xf32, #tpu.memory_space<vmem>>, vector<4x256xf32>
    tpu.vector_store %arg12[%c152, %c0_90], %195 {strides = array<i32>} : memref<324x256xf32, #tpu.memory_space<vmem>>, vector<4x256xf32>,
    %c1_i32 = arith.constant 1 : i32
    %197 = tpu.dynamic_rotate %1 by %c1_i32 dim 1 : vector<4x256xf32>, i32 -> vector<4x256xf32>
    %c39 = arith.constant 39 : index
    %c0_91 = arith.constant 0 : index
    %198 = vector.load %arg2[%c39, %c0_91] : memref<81x256xf32, #tpu.memory_space<vmem>>, vector<1x256xf32>
    %199 = vector.broadcast %198 : vector<1x256xf32> to vector<4x256xf32>
    %200 = arith.mulf %197, %199 : vector<4x256xf32>
    %c156 = arith.constant 156 : index
    %c0_92 = arith.constant 0 : index
    %201 = vector.load %arg12[%c156, %c0_92] : memref<324x256xf32, #tpu.memory_space<vmem>>, vector<4x256xf32>
    tpu.vector_store %arg12[%c156, %c0_92], %200 {strides = array<i32>} : memref<324x256xf32, #tpu.memory_space<vmem>>, vector<4x256xf32>,
    %c160 = arith.constant 160 : index
    %c0_93 = arith.constant 0 : index
    %202 = vector.load %arg12[%c160, %c0_93] : memref<324x256xf32, #tpu.memory_space<vmem>>, vector<4x256xf32>
    tpu.vector_store %arg12[%c160, %c0_93], %1 {strides = array<i32>} : memref<324x256xf32, #tpu.memory_space<vmem>>, vector<4x256xf32>,
    %c255_i32 = arith.constant 255 : i32
    %203 = tpu.dynamic_rotate %1 by %c255_i32 dim 1 : vector<4x256xf32>, i32 -> vector<4x256xf32>
    %c41 = arith.constant 41 : index
    %c0_94 = arith.constant 0 : index
    %204 = vector.load %arg2[%c41, %c0_94] : memref<81x256xf32, #tpu.memory_space<vmem>>, vector<1x256xf32>
    %205 = vector.broadcast %204 : vector<1x256xf32> to vector<4x256xf32>
    %206 = arith.mulf %203, %205 : vector<4x256xf32>
    %c164 = arith.constant 164 : index
    %c0_95 = arith.constant 0 : index
    %207 = vector.load %arg12[%c164, %c0_95] : memref<324x256xf32, #tpu.memory_space<vmem>>, vector<4x256xf32>
    tpu.vector_store %arg12[%c164, %c0_95], %206 {strides = array<i32>} : memref<324x256xf32, #tpu.memory_space<vmem>>, vector<4x256xf32>,
    %c254_i32 = arith.constant 254 : i32
    %208 = tpu.dynamic_rotate %1 by %c254_i32 dim 1 : vector<4x256xf32>, i32 -> vector<4x256xf32>
    %c42 = arith.constant 42 : index
    %c0_96 = arith.constant 0 : index
    %209 = vector.load %arg2[%c42, %c0_96] : memref<81x256xf32, #tpu.memory_space<vmem>>, vector<1x256xf32>
    %210 = vector.broadcast %209 : vector<1x256xf32> to vector<4x256xf32>
    %211 = arith.mulf %208, %210 : vector<4x256xf32>
    %c168 = arith.constant 168 : index
    %c0_97 = arith.constant 0 : index
    %212 = vector.load %arg12[%c168, %c0_97] : memref<324x256xf32, #tpu.memory_space<vmem>>, vector<4x256xf32>
    tpu.vector_store %arg12[%c168, %c0_97], %211 {strides = array<i32>} : memref<324x256xf32, #tpu.memory_space<vmem>>, vector<4x256xf32>,
    %c253_i32 = arith.constant 253 : i32
    %213 = tpu.dynamic_rotate %1 by %c253_i32 dim 1 : vector<4x256xf32>, i32 -> vector<4x256xf32>
    %c43 = arith.constant 43 : index
    %c0_98 = arith.constant 0 : index
    %214 = vector.load %arg2[%c43, %c0_98] : memref<81x256xf32, #tpu.memory_space<vmem>>, vector<1x256xf32>
    %215 = vector.broadcast %214 : vector<1x256xf32> to vector<4x256xf32>
    %216 = arith.mulf %213, %215 : vector<4x256xf32>
    %c172 = arith.constant 172 : index
    %c0_99 = arith.constant 0 : index
    %217 = vector.load %arg12[%c172, %c0_99] : memref<324x256xf32, #tpu.memory_space<vmem>>, vector<4x256xf32>
    tpu.vector_store %arg12[%c172, %c0_99], %216 {strides = array<i32>} : memref<324x256xf32, #tpu.memory_space<vmem>>, vector<4x256xf32>,
    %c252_i32 = arith.constant 252 : i32
    %218 = tpu.dynamic_rotate %1 by %c252_i32 dim 1 : vector<4x256xf32>, i32 -> vector<4x256xf32>
    %c44_100 = arith.constant 44 : index
    %c0_101 = arith.constant 0 : index
    %219 = vector.load %arg2[%c44_100, %c0_101] : memref<81x256xf32, #tpu.memory_space<vmem>>, vector<1x256xf32>
    %220 = vector.broadcast %219 : vector<1x256xf32> to vector<4x256xf32>
    %221 = arith.mulf %218, %220 : vector<4x256xf32>
    %c176 = arith.constant 176 : index
    %c0_102 = arith.constant 0 : index
    %222 = vector.load %arg12[%c176, %c0_102] : memref<324x256xf32, #tpu.memory_space<vmem>>, vector<4x256xf32>
    tpu.vector_store %arg12[%c176, %c0_102], %221 {strides = array<i32>} : memref<324x256xf32, #tpu.memory_space<vmem>>, vector<4x256xf32>,
    %c244_i32 = arith.constant 244 : i32
    %223 = tpu.dynamic_rotate %1 by %c244_i32 dim 1 : vector<4x256xf32>, i32 -> vector<4x256xf32>
    %c45 = arith.constant 45 : index
    %c0_103 = arith.constant 0 : index
    %224 = vector.load %arg2[%c45, %c0_103] : memref<81x256xf32, #tpu.memory_space<vmem>>, vector<1x256xf32>
    %225 = vector.broadcast %224 : vector<1x256xf32> to vector<4x256xf32>
    %226 = arith.mulf %223, %225 : vector<4x256xf32>
    %c180 = arith.constant 180 : index
    %c0_104 = arith.constant 0 : index
    %227 = vector.load %arg12[%c180, %c0_104] : memref<324x256xf32, #tpu.memory_space<vmem>>, vector<4x256xf32>
    tpu.vector_store %arg12[%c180, %c0_104], %226 {strides = array<i32>} : memref<324x256xf32, #tpu.memory_space<vmem>>, vector<4x256xf32>,
    %c243_i32 = arith.constant 243 : i32
    %228 = tpu.dynamic_rotate %1 by %c243_i32 dim 1 : vector<4x256xf32>, i32 -> vector<4x256xf32>
    %c46 = arith.constant 46 : index
    %c0_105 = arith.constant 0 : index
    %229 = vector.load %arg2[%c46, %c0_105] : memref<81x256xf32, #tpu.memory_space<vmem>>, vector<1x256xf32>
    %230 = vector.broadcast %229 : vector<1x256xf32> to vector<4x256xf32>
    %231 = arith.mulf %228, %230 : vector<4x256xf32>
    %c184 = arith.constant 184 : index
    %c0_106 = arith.constant 0 : index
    %232 = vector.load %arg12[%c184, %c0_106] : memref<324x256xf32, #tpu.memory_space<vmem>>, vector<4x256xf32>
    tpu.vector_store %arg12[%c184, %c0_106], %231 {strides = array<i32>} : memref<324x256xf32, #tpu.memory_space<vmem>>, vector<4x256xf32>,
    %c242_i32 = arith.constant 242 : i32
    %233 = tpu.dynamic_rotate %1 by %c242_i32 dim 1 : vector<4x256xf32>, i32 -> vector<4x256xf32>
    %c47 = arith.constant 47 : index
    %c0_107 = arith.constant 0 : index
    %234 = vector.load %arg2[%c47, %c0_107] : memref<81x256xf32, #tpu.memory_space<vmem>>, vector<1x256xf32>
    %235 = vector.broadcast %234 : vector<1x256xf32> to vector<4x256xf32>
    %236 = arith.mulf %233, %235 : vector<4x256xf32>
    %c188 = arith.constant 188 : index
    %c0_108 = arith.constant 0 : index
    %237 = vector.load %arg12[%c188, %c0_108] : memref<324x256xf32, #tpu.memory_space<vmem>>, vector<4x256xf32>
    tpu.vector_store %arg12[%c188, %c0_108], %236 {strides = array<i32>} : memref<324x256xf32, #tpu.memory_space<vmem>>, vector<4x256xf32>,
    %c241_i32 = arith.constant 241 : i32
    %238 = tpu.dynamic_rotate %1 by %c241_i32 dim 1 : vector<4x256xf32>, i32 -> vector<4x256xf32>
    %c48_109 = arith.constant 48 : index
    %c0_110 = arith.constant 0 : index
    %239 = vector.load %arg2[%c48_109, %c0_110] : memref<81x256xf32, #tpu.memory_space<vmem>>, vector<1x256xf32>
    %240 = vector.broadcast %239 : vector<1x256xf32> to vector<4x256xf32>
    %241 = arith.mulf %238, %240 : vector<4x256xf32>
    %c192 = arith.constant 192 : index
    %c0_111 = arith.constant 0 : index
    %242 = vector.load %arg12[%c192, %c0_111] : memref<324x256xf32, #tpu.memory_space<vmem>>, vector<4x256xf32>
    tpu.vector_store %arg12[%c192, %c0_111], %241 {strides = array<i32>} : memref<324x256xf32, #tpu.memory_space<vmem>>, vector<4x256xf32>,
    %c240_i32 = arith.constant 240 : i32
    %243 = tpu.dynamic_rotate %1 by %c240_i32 dim 1 : vector<4x256xf32>, i32 -> vector<4x256xf32>
    %c49 = arith.constant 49 : index
    %c0_112 = arith.constant 0 : index
    %244 = vector.load %arg2[%c49, %c0_112] : memref<81x256xf32, #tpu.memory_space<vmem>>, vector<1x256xf32>
    %245 = vector.broadcast %244 : vector<1x256xf32> to vector<4x256xf32>
    %246 = arith.mulf %243, %245 : vector<4x256xf32>
    %c196 = arith.constant 196 : index
    %c0_113 = arith.constant 0 : index
    %247 = vector.load %arg12[%c196, %c0_113] : memref<324x256xf32, #tpu.memory_space<vmem>>, vector<4x256xf32>
    tpu.vector_store %arg12[%c196, %c0_113], %246 {strides = array<i32>} : memref<324x256xf32, #tpu.memory_space<vmem>>, vector<4x256xf32>,
    %c239_i32 = arith.constant 239 : i32
    %248 = tpu.dynamic_rotate %1 by %c239_i32 dim 1 : vector<4x256xf32>, i32 -> vector<4x256xf32>
    %c50 = arith.constant 50 : index
    %c0_114 = arith.constant 0 : index
    %249 = vector.load %arg2[%c50, %c0_114] : memref<81x256xf32, #tpu.memory_space<vmem>>, vector<1x256xf32>
    %250 = vector.broadcast %249 : vector<1x256xf32> to vector<4x256xf32>
    %251 = arith.mulf %248, %250 : vector<4x256xf32>
    %c200 = arith.constant 200 : index
    %c0_115 = arith.constant 0 : index
    %252 = vector.load %arg12[%c200, %c0_115] : memref<324x256xf32, #tpu.memory_space<vmem>>, vector<4x256xf32>
    tpu.vector_store %arg12[%c200, %c0_115], %251 {strides = array<i32>} : memref<324x256xf32, #tpu.memory_space<vmem>>, vector<4x256xf32>,
    %c238_i32 = arith.constant 238 : i32
    %253 = tpu.dynamic_rotate %1 by %c238_i32 dim 1 : vector<4x256xf32>, i32 -> vector<4x256xf32>
    %c51 = arith.constant 51 : index
    %c0_116 = arith.constant 0 : index
    %254 = vector.load %arg2[%c51, %c0_116] : memref<81x256xf32, #tpu.memory_space<vmem>>, vector<1x256xf32>
    %255 = vector.broadcast %254 : vector<1x256xf32> to vector<4x256xf32>
    %256 = arith.mulf %253, %255 : vector<4x256xf32>
    %c204 = arith.constant 204 : index
    %c0_117 = arith.constant 0 : index
    %257 = vector.load %arg12[%c204, %c0_117] : memref<324x256xf32, #tpu.memory_space<vmem>>, vector<4x256xf32>
    tpu.vector_store %arg12[%c204, %c0_117], %256 {strides = array<i32>} : memref<324x256xf32, #tpu.memory_space<vmem>>, vector<4x256xf32>,
    %c237_i32 = arith.constant 237 : i32
    %258 = tpu.dynamic_rotate %1 by %c237_i32 dim 1 : vector<4x256xf32>, i32 -> vector<4x256xf32>
    %c52_118 = arith.constant 52 : index
    %c0_119 = arith.constant 0 : index
    %259 = vector.load %arg2[%c52_118, %c0_119] : memref<81x256xf32, #tpu.memory_space<vmem>>, vector<1x256xf32>
    %260 = vector.broadcast %259 : vector<1x256xf32> to vector<4x256xf32>
    %261 = arith.mulf %258, %260 : vector<4x256xf32>
    %c208 = arith.constant 208 : index
    %c0_120 = arith.constant 0 : index
    %262 = vector.load %arg12[%c208, %c0_120] : memref<324x256xf32, #tpu.memory_space<vmem>>, vector<4x256xf32>
    tpu.vector_store %arg12[%c208, %c0_120], %261 {strides = array<i32>} : memref<324x256xf32, #tpu.memory_space<vmem>>, vector<4x256xf32>,
    %c236_i32 = arith.constant 236 : i32
    %263 = tpu.dynamic_rotate %1 by %c236_i32 dim 1 : vector<4x256xf32>, i32 -> vector<4x256xf32>
    %c53 = arith.constant 53 : index
    %c0_121 = arith.constant 0 : index
    %264 = vector.load %arg2[%c53, %c0_121] : memref<81x256xf32, #tpu.memory_space<vmem>>, vector<1x256xf32>
    %265 = vector.broadcast %264 : vector<1x256xf32> to vector<4x256xf32>
    %266 = arith.mulf %263, %265 : vector<4x256xf32>
    %c212 = arith.constant 212 : index
    %c0_122 = arith.constant 0 : index
    %267 = vector.load %arg12[%c212, %c0_122] : memref<324x256xf32, #tpu.memory_space<vmem>>, vector<4x256xf32>
    tpu.vector_store %arg12[%c212, %c0_122], %266 {strides = array<i32>} : memref<324x256xf32, #tpu.memory_space<vmem>>, vector<4x256xf32>,
    %c228_i32 = arith.constant 228 : i32
    %268 = tpu.dynamic_rotate %1 by %c228_i32 dim 1 : vector<4x256xf32>, i32 -> vector<4x256xf32>
    %c54 = arith.constant 54 : index
    %c0_123 = arith.constant 0 : index
    %269 = vector.load %arg2[%c54, %c0_123] : memref<81x256xf32, #tpu.memory_space<vmem>>, vector<1x256xf32>
    %270 = vector.broadcast %269 : vector<1x256xf32> to vector<4x256xf32>
    %271 = arith.mulf %268, %270 : vector<4x256xf32>
    %c216 = arith.constant 216 : index
    %c0_124 = arith.constant 0 : index
    %272 = vector.load %arg12[%c216, %c0_124] : memref<324x256xf32, #tpu.memory_space<vmem>>, vector<4x256xf32>
    tpu.vector_store %arg12[%c216, %c0_124], %271 {strides = array<i32>} : memref<324x256xf32, #tpu.memory_space<vmem>>, vector<4x256xf32>,
    %c227_i32 = arith.constant 227 : i32
    %273 = tpu.dynamic_rotate %1 by %c227_i32 dim 1 : vector<4x256xf32>, i32 -> vector<4x256xf32>
    %c55 = arith.constant 55 : index
    %c0_125 = arith.constant 0 : index
    %274 = vector.load %arg2[%c55, %c0_125] : memref<81x256xf32, #tpu.memory_space<vmem>>, vector<1x256xf32>
    %275 = vector.broadcast %274 : vector<1x256xf32> to vector<4x256xf32>
    %276 = arith.mulf %273, %275 : vector<4x256xf32>
    %c220 = arith.constant 220 : index
    %c0_126 = arith.constant 0 : index
    %277 = vector.load %arg12[%c220, %c0_126] : memref<324x256xf32, #tpu.memory_space<vmem>>, vector<4x256xf32>
    tpu.vector_store %arg12[%c220, %c0_126], %276 {strides = array<i32>} : memref<324x256xf32, #tpu.memory_space<vmem>>, vector<4x256xf32>,
    %c226_i32 = arith.constant 226 : i32
    %278 = tpu.dynamic_rotate %1 by %c226_i32 dim 1 : vector<4x256xf32>, i32 -> vector<4x256xf32>
    %c56_127 = arith.constant 56 : index
    %c0_128 = arith.constant 0 : index
    %279 = vector.load %arg2[%c56_127, %c0_128] : memref<81x256xf32, #tpu.memory_space<vmem>>, vector<1x256xf32>
    %280 = vector.broadcast %279 : vector<1x256xf32> to vector<4x256xf32>
    %281 = arith.mulf %278, %280 : vector<4x256xf32>
    %c224 = arith.constant 224 : index
    %c0_129 = arith.constant 0 : index
    %282 = vector.load %arg12[%c224, %c0_129] : memref<324x256xf32, #tpu.memory_space<vmem>>, vector<4x256xf32>
    tpu.vector_store %arg12[%c224, %c0_129], %281 {strides = array<i32>} : memref<324x256xf32, #tpu.memory_space<vmem>>, vector<4x256xf32>,
    %c225_i32 = arith.constant 225 : i32
    %283 = tpu.dynamic_rotate %1 by %c225_i32 dim 1 : vector<4x256xf32>, i32 -> vector<4x256xf32>
    %c57 = arith.constant 57 : index
    %c0_130 = arith.constant 0 : index
    %284 = vector.load %arg2[%c57, %c0_130] : memref<81x256xf32, #tpu.memory_space<vmem>>, vector<1x256xf32>
    %285 = vector.broadcast %284 : vector<1x256xf32> to vector<4x256xf32>
    %286 = arith.mulf %283, %285 : vector<4x256xf32>
    %c228 = arith.constant 228 : index
    %c0_131 = arith.constant 0 : index
    %287 = vector.load %arg12[%c228, %c0_131] : memref<324x256xf32, #tpu.memory_space<vmem>>, vector<4x256xf32>
    tpu.vector_store %arg12[%c228, %c0_131], %286 {strides = array<i32>} : memref<324x256xf32, #tpu.memory_space<vmem>>, vector<4x256xf32>,
    %c224_i32 = arith.constant 224 : i32
    %288 = tpu.dynamic_rotate %1 by %c224_i32 dim 1 : vector<4x256xf32>, i32 -> vector<4x256xf32>
    %c58 = arith.constant 58 : index
    %c0_132 = arith.constant 0 : index
    %289 = vector.load %arg2[%c58, %c0_132] : memref<81x256xf32, #tpu.memory_space<vmem>>, vector<1x256xf32>
    %290 = vector.broadcast %289 : vector<1x256xf32> to vector<4x256xf32>
    %291 = arith.mulf %288, %290 : vector<4x256xf32>
    %c232 = arith.constant 232 : index
    %c0_133 = arith.constant 0 : index
    %292 = vector.load %arg12[%c232, %c0_133] : memref<324x256xf32, #tpu.memory_space<vmem>>, vector<4x256xf32>
    tpu.vector_store %arg12[%c232, %c0_133], %291 {strides = array<i32>} : memref<324x256xf32, #tpu.memory_space<vmem>>, vector<4x256xf32>,
    %c223_i32 = arith.constant 223 : i32
    %293 = tpu.dynamic_rotate %1 by %c223_i32 dim 1 : vector<4x256xf32>, i32 -> vector<4x256xf32>
    %c59 = arith.constant 59 : index
    %c0_134 = arith.constant 0 : index
    %294 = vector.load %arg2[%c59, %c0_134] : memref<81x256xf32, #tpu.memory_space<vmem>>, vector<1x256xf32>
    %295 = vector.broadcast %294 : vector<1x256xf32> to vector<4x256xf32>
    %296 = arith.mulf %293, %295 : vector<4x256xf32>
    %c236 = arith.constant 236 : index
    %c0_135 = arith.constant 0 : index
    %297 = vector.load %arg12[%c236, %c0_135] : memref<324x256xf32, #tpu.memory_space<vmem>>, vector<4x256xf32>
    tpu.vector_store %arg12[%c236, %c0_135], %296 {strides = array<i32>} : memref<324x256xf32, #tpu.memory_space<vmem>>, vector<4x256xf32>,
    %c222_i32 = arith.constant 222 : i32
    %298 = tpu.dynamic_rotate %1 by %c222_i32 dim 1 : vector<4x256xf32>, i32 -> vector<4x256xf32>
    %c60_136 = arith.constant 60 : index
    %c0_137 = arith.constant 0 : index
    %299 = vector.load %arg2[%c60_136, %c0_137] : memref<81x256xf32, #tpu.memory_space<vmem>>, vector<1x256xf32>
    %300 = vector.broadcast %299 : vector<1x256xf32> to vector<4x256xf32>
    %301 = arith.mulf %298, %300 : vector<4x256xf32>
    %c240 = arith.constant 240 : index
    %c0_138 = arith.constant 0 : index
    %302 = vector.load %arg12[%c240, %c0_138] : memref<324x256xf32, #tpu.memory_space<vmem>>, vector<4x256xf32>
    tpu.vector_store %arg12[%c240, %c0_138], %301 {strides = array<i32>} : memref<324x256xf32, #tpu.memory_space<vmem>>, vector<4x256xf32>,
    %c221_i32 = arith.constant 221 : i32
    %303 = tpu.dynamic_rotate %1 by %c221_i32 dim 1 : vector<4x256xf32>, i32 -> vector<4x256xf32>
    %c61 = arith.constant 61 : index
    %c0_139 = arith.constant 0 : index
    %304 = vector.load %arg2[%c61, %c0_139] : memref<81x256xf32, #tpu.memory_space<vmem>>, vector<1x256xf32>
    %305 = vector.broadcast %304 : vector<1x256xf32> to vector<4x256xf32>
    %306 = arith.mulf %303, %305 : vector<4x256xf32>
    %c244 = arith.constant 244 : index
    %c0_140 = arith.constant 0 : index
    %307 = vector.load %arg12[%c244, %c0_140] : memref<324x256xf32, #tpu.memory_space<vmem>>, vector<4x256xf32>
    tpu.vector_store %arg12[%c244, %c0_140], %306 {strides = array<i32>} : memref<324x256xf32, #tpu.memory_space<vmem>>, vector<4x256xf32>,
    %c220_i32 = arith.constant 220 : i32
    %308 = tpu.dynamic_rotate %1 by %c220_i32 dim 1 : vector<4x256xf32>, i32 -> vector<4x256xf32>
    %c62 = arith.constant 62 : index
    %c0_141 = arith.constant 0 : index
    %309 = vector.load %arg2[%c62, %c0_141] : memref<81x256xf32, #tpu.memory_space<vmem>>, vector<1x256xf32>
    %310 = vector.broadcast %309 : vector<1x256xf32> to vector<4x256xf32>
    %311 = arith.mulf %308, %310 : vector<4x256xf32>
    %c248 = arith.constant 248 : index
    %c0_142 = arith.constant 0 : index
    %312 = vector.load %arg12[%c248, %c0_142] : memref<324x256xf32, #tpu.memory_space<vmem>>, vector<4x256xf32>
    tpu.vector_store %arg12[%c248, %c0_142], %311 {strides = array<i32>} : memref<324x256xf32, #tpu.memory_space<vmem>>, vector<4x256xf32>,
    %c212_i32 = arith.constant 212 : i32
    %313 = tpu.dynamic_rotate %1 by %c212_i32 dim 1 : vector<4x256xf32>, i32 -> vector<4x256xf32>
    %c63 = arith.constant 63 : index
    %c0_143 = arith.constant 0 : index
    %314 = vector.load %arg2[%c63, %c0_143] : memref<81x256xf32, #tpu.memory_space<vmem>>, vector<1x256xf32>
    %315 = vector.broadcast %314 : vector<1x256xf32> to vector<4x256xf32>
    %316 = arith.mulf %313, %315 : vector<4x256xf32>
    %c252 = arith.constant 252 : index
    %c0_144 = arith.constant 0 : index
    %317 = vector.load %arg12[%c252, %c0_144] : memref<324x256xf32, #tpu.memory_space<vmem>>, vector<4x256xf32>
    tpu.vector_store %arg12[%c252, %c0_144], %316 {strides = array<i32>} : memref<324x256xf32, #tpu.memory_space<vmem>>, vector<4x256xf32>,
    %c211_i32 = arith.constant 211 : i32
    %318 = tpu.dynamic_rotate %1 by %c211_i32 dim 1 : vector<4x256xf32>, i32 -> vector<4x256xf32>
    %c64_145 = arith.constant 64 : index
    %c0_146 = arith.constant 0 : index
    %319 = vector.load %arg2[%c64_145, %c0_146] : memref<81x256xf32, #tpu.memory_space<vmem>>, vector<1x256xf32>
    %320 = vector.broadcast %319 : vector<1x256xf32> to vector<4x256xf32>
    %321 = arith.mulf %318, %320 : vector<4x256xf32>
    %c256 = arith.constant 256 : index
    %c0_147 = arith.constant 0 : index
    %322 = vector.load %arg12[%c256, %c0_147] : memref<324x256xf32, #tpu.memory_space<vmem>>, vector<4x256xf32>
    tpu.vector_store %arg12[%c256, %c0_147], %321 {strides = array<i32>} : memref<324x256xf32, #tpu.memory_space<vmem>>, vector<4x256xf32>,
    %c210_i32 = arith.constant 210 : i32
    %323 = tpu.dynamic_rotate %1 by %c210_i32 dim 1 : vector<4x256xf32>, i32 -> vector<4x256xf32>
    %c65 = arith.constant 65 : index
    %c0_148 = arith.constant 0 : index
    %324 = vector.load %arg2[%c65, %c0_148] : memref<81x256xf32, #tpu.memory_space<vmem>>, vector<1x256xf32>
    %325 = vector.broadcast %324 : vector<1x256xf32> to vector<4x256xf32>
    %326 = arith.mulf %323, %325 : vector<4x256xf32>
    %c260 = arith.constant 260 : index
    %c0_149 = arith.constant 0 : index
    %327 = vector.load %arg12[%c260, %c0_149] : memref<324x256xf32, #tpu.memory_space<vmem>>, vector<4x256xf32>
    tpu.vector_store %arg12[%c260, %c0_149], %326 {strides = array<i32>} : memref<324x256xf32, #tpu.memory_space<vmem>>, vector<4x256xf32>,
    %c209_i32 = arith.constant 209 : i32
    %328 = tpu.dynamic_rotate %1 by %c209_i32 dim 1 : vector<4x256xf32>, i32 -> vector<4x256xf32>
    %c66 = arith.constant 66 : index
    %c0_150 = arith.constant 0 : index
    %329 = vector.load %arg2[%c66, %c0_150] : memref<81x256xf32, #tpu.memory_space<vmem>>, vector<1x256xf32>
    %330 = vector.broadcast %329 : vector<1x256xf32> to vector<4x256xf32>
    %331 = arith.mulf %328, %330 : vector<4x256xf32>
    %c264 = arith.constant 264 : index
    %c0_151 = arith.constant 0 : index
    %332 = vector.load %arg12[%c264, %c0_151] : memref<324x256xf32, #tpu.memory_space<vmem>>, vector<4x256xf32>
    tpu.vector_store %arg12[%c264, %c0_151], %331 {strides = array<i32>} : memref<324x256xf32, #tpu.memory_space<vmem>>, vector<4x256xf32>,
    %c208_i32 = arith.constant 208 : i32
    %333 = tpu.dynamic_rotate %1 by %c208_i32 dim 1 : vector<4x256xf32>, i32 -> vector<4x256xf32>
    %c67 = arith.constant 67 : index
    %c0_152 = arith.constant 0 : index
    %334 = vector.load %arg2[%c67, %c0_152] : memref<81x256xf32, #tpu.memory_space<vmem>>, vector<1x256xf32>
    %335 = vector.broadcast %334 : vector<1x256xf32> to vector<4x256xf32>
    %336 = arith.mulf %333, %335 : vector<4x256xf32>
    %c268 = arith.constant 268 : index
    %c0_153 = arith.constant 0 : index
    %337 = vector.load %arg12[%c268, %c0_153] : memref<324x256xf32, #tpu.memory_space<vmem>>, vector<4x256xf32>
    tpu.vector_store %arg12[%c268, %c0_153], %336 {strides = array<i32>} : memref<324x256xf32, #tpu.memory_space<vmem>>, vector<4x256xf32>,
    %c207_i32 = arith.constant 207 : i32
    %338 = tpu.dynamic_rotate %1 by %c207_i32 dim 1 : vector<4x256xf32>, i32 -> vector<4x256xf32>
    %c68_154 = arith.constant 68 : index
    %c0_155 = arith.constant 0 : index
    %339 = vector.load %arg2[%c68_154, %c0_155] : memref<81x256xf32, #tpu.memory_space<vmem>>, vector<1x256xf32>
    %340 = vector.broadcast %339 : vector<1x256xf32> to vector<4x256xf32>
    %341 = arith.mulf %338, %340 : vector<4x256xf32>
    %c272 = arith.constant 272 : index
    %c0_156 = arith.constant 0 : index
    %342 = vector.load %arg12[%c272, %c0_156] : memref<324x256xf32, #tpu.memory_space<vmem>>, vector<4x256xf32>
    tpu.vector_store %arg12[%c272, %c0_156], %341 {strides = array<i32>} : memref<324x256xf32, #tpu.memory_space<vmem>>, vector<4x256xf32>,
    %c206_i32 = arith.constant 206 : i32
    %343 = tpu.dynamic_rotate %1 by %c206_i32 dim 1 : vector<4x256xf32>, i32 -> vector<4x256xf32>
    %c69 = arith.constant 69 : index
    %c0_157 = arith.constant 0 : index
    %344 = vector.load %arg2[%c69, %c0_157] : memref<81x256xf32, #tpu.memory_space<vmem>>, vector<1x256xf32>
    %345 = vector.broadcast %344 : vector<1x256xf32> to vector<4x256xf32>
    %346 = arith.mulf %343, %345 : vector<4x256xf32>
    %c276 = arith.constant 276 : index
    %c0_158 = arith.constant 0 : index
    %347 = vector.load %arg12[%c276, %c0_158] : memref<324x256xf32, #tpu.memory_space<vmem>>, vector<4x256xf32>
    tpu.vector_store %arg12[%c276, %c0_158], %346 {strides = array<i32>} : memref<324x256xf32, #tpu.memory_space<vmem>>, vector<4x256xf32>,
    %c205_i32 = arith.constant 205 : i32
    %348 = tpu.dynamic_rotate %1 by %c205_i32 dim 1 : vector<4x256xf32>, i32 -> vector<4x256xf32>
    %c70 = arith.constant 70 : index
    %c0_159 = arith.constant 0 : index
    %349 = vector.load %arg2[%c70, %c0_159] : memref<81x256xf32, #tpu.memory_space<vmem>>, vector<1x256xf32>
    %350 = vector.broadcast %349 : vector<1x256xf32> to vector<4x256xf32>
    %351 = arith.mulf %348, %350 : vector<4x256xf32>
    %c280 = arith.constant 280 : index
    %c0_160 = arith.constant 0 : index
    %352 = vector.load %arg12[%c280, %c0_160] : memref<324x256xf32, #tpu.memory_space<vmem>>, vector<4x256xf32>
    tpu.vector_store %arg12[%c280, %c0_160], %351 {strides = array<i32>} : memref<324x256xf32, #tpu.memory_space<vmem>>, vector<4x256xf32>,
    %c204_i32 = arith.constant 204 : i32
    %353 = tpu.dynamic_rotate %1 by %c204_i32 dim 1 : vector<4x256xf32>, i32 -> vector<4x256xf32>
    %c71 = arith.constant 71 : index
    %c0_161 = arith.constant 0 : index
    %354 = vector.load %arg2[%c71, %c0_161] : memref<81x256xf32, #tpu.memory_space<vmem>>, vector<1x256xf32>
    %355 = vector.broadcast %354 : vector<1x256xf32> to vector<4x256xf32>
    %356 = arith.mulf %353, %355 : vector<4x256xf32>
    %c284 = arith.constant 284 : index
    %c0_162 = arith.constant 0 : index
    %357 = vector.load %arg12[%c284, %c0_162] : memref<324x256xf32, #tpu.memory_space<vmem>>, vector<4x256xf32>
    tpu.vector_store %arg12[%c284, %c0_162], %356 {strides = array<i32>} : memref<324x256xf32, #tpu.memory_space<vmem>>, vector<4x256xf32>,
    %c196_i32 = arith.constant 196 : i32
    %358 = tpu.dynamic_rotate %1 by %c196_i32 dim 1 : vector<4x256xf32>, i32 -> vector<4x256xf32>
    %c72_163 = arith.constant 72 : index
    %c0_164 = arith.constant 0 : index
    %359 = vector.load %arg2[%c72_163, %c0_164] : memref<81x256xf32, #tpu.memory_space<vmem>>, vector<1x256xf32>
    %360 = vector.broadcast %359 : vector<1x256xf32> to vector<4x256xf32>
    %361 = arith.mulf %358, %360 : vector<4x256xf32>
    %c288 = arith.constant 288 : index
    %c0_165 = arith.constant 0 : index
    %362 = vector.load %arg12[%c288, %c0_165] : memref<324x256xf32, #tpu.memory_space<vmem>>, vector<4x256xf32>
    tpu.vector_store %arg12[%c288, %c0_165], %361 {strides = array<i32>} : memref<324x256xf32, #tpu.memory_space<vmem>>, vector<4x256xf32>,
    %c195_i32 = arith.constant 195 : i32
    %363 = tpu.dynamic_rotate %1 by %c195_i32 dim 1 : vector<4x256xf32>, i32 -> vector<4x256xf32>
    %c73 = arith.constant 73 : index
    %c0_166 = arith.constant 0 : index
    %364 = vector.load %arg2[%c73, %c0_166] : memref<81x256xf32, #tpu.memory_space<vmem>>, vector<1x256xf32>
    %365 = vector.broadcast %364 : vector<1x256xf32> to vector<4x256xf32>
    %366 = arith.mulf %363, %365 : vector<4x256xf32>
    %c292 = arith.constant 292 : index
    %c0_167 = arith.constant 0 : index
    %367 = vector.load %arg12[%c292, %c0_167] : memref<324x256xf32, #tpu.memory_space<vmem>>, vector<4x256xf32>
    tpu.vector_store %arg12[%c292, %c0_167], %366 {strides = array<i32>} : memref<324x256xf32, #tpu.memory_space<vmem>>, vector<4x256xf32>,
    %c194_i32 = arith.constant 194 : i32
    %368 = tpu.dynamic_rotate %1 by %c194_i32 dim 1 : vector<4x256xf32>, i32 -> vector<4x256xf32>
    %c74 = arith.constant 74 : index
    %c0_168 = arith.constant 0 : index
    %369 = vector.load %arg2[%c74, %c0_168] : memref<81x256xf32, #tpu.memory_space<vmem>>, vector<1x256xf32>
    %370 = vector.broadcast %369 : vector<1x256xf32> to vector<4x256xf32>
    %371 = arith.mulf %368, %370 : vector<4x256xf32>
    %c296 = arith.constant 296 : index
    %c0_169 = arith.constant 0 : index
    %372 = vector.load %arg12[%c296, %c0_169] : memref<324x256xf32, #tpu.memory_space<vmem>>, vector<4x256xf32>
    tpu.vector_store %arg12[%c296, %c0_169], %371 {strides = array<i32>} : memref<324x256xf32, #tpu.memory_space<vmem>>, vector<4x256xf32>,
    %c193_i32 = arith.constant 193 : i32
    %373 = tpu.dynamic_rotate %1 by %c193_i32 dim 1 : vector<4x256xf32>, i32 -> vector<4x256xf32>
    %c75 = arith.constant 75 : index
    %c0_170 = arith.constant 0 : index
    %374 = vector.load %arg2[%c75, %c0_170] : memref<81x256xf32, #tpu.memory_space<vmem>>, vector<1x256xf32>
    %375 = vector.broadcast %374 : vector<1x256xf32> to vector<4x256xf32>
    %376 = arith.mulf %373, %375 : vector<4x256xf32>
    %c300 = arith.constant 300 : index
    %c0_171 = arith.constant 0 : index
    %377 = vector.load %arg12[%c300, %c0_171] : memref<324x256xf32, #tpu.memory_space<vmem>>, vector<4x256xf32>
    tpu.vector_store %arg12[%c300, %c0_171], %376 {strides = array<i32>} : memref<324x256xf32, #tpu.memory_space<vmem>>, vector<4x256xf32>,
    %c192_i32 = arith.constant 192 : i32
    %378 = tpu.dynamic_rotate %1 by %c192_i32 dim 1 : vector<4x256xf32>, i32 -> vector<4x256xf32>
    %c76_172 = arith.constant 76 : index
    %c0_173 = arith.constant 0 : index
    %379 = vector.load %arg2[%c76_172, %c0_173] : memref<81x256xf32, #tpu.memory_space<vmem>>, vector<1x256xf32>
    %380 = vector.broadcast %379 : vector<1x256xf32> to vector<4x256xf32>
    %381 = arith.mulf %378, %380 : vector<4x256xf32>
    %c304 = arith.constant 304 : index
    %c0_174 = arith.constant 0 : index
    %382 = vector.load %arg12[%c304, %c0_174] : memref<324x256xf32, #tpu.memory_space<vmem>>, vector<4x256xf32>
    tpu.vector_store %arg12[%c304, %c0_174], %381 {strides = array<i32>} : memref<324x256xf32, #tpu.memory_space<vmem>>, vector<4x256xf32>,
    %c191_i32 = arith.constant 191 : i32
    %383 = tpu.dynamic_rotate %1 by %c191_i32 dim 1 : vector<4x256xf32>, i32 -> vector<4x256xf32>
    %c77 = arith.constant 77 : index
    %c0_175 = arith.constant 0 : index
    %384 = vector.load %arg2[%c77, %c0_175] : memref<81x256xf32, #tpu.memory_space<vmem>>, vector<1x256xf32>
    %385 = vector.broadcast %384 : vector<1x256xf32> to vector<4x256xf32>
    %386 = arith.mulf %383, %385 : vector<4x256xf32>
    %c308 = arith.constant 308 : index
    %c0_176 = arith.constant 0 : index
    %387 = vector.load %arg12[%c308, %c0_176] : memref<324x256xf32, #tpu.memory_space<vmem>>, vector<4x256xf32>
    tpu.vector_store %arg12[%c308, %c0_176], %386 {strides = array<i32>} : memref<324x256xf32, #tpu.memory_space<vmem>>, vector<4x256xf32>,
    %c190_i32 = arith.constant 190 : i32
    %388 = tpu.dynamic_rotate %1 by %c190_i32 dim 1 : vector<4x256xf32>, i32 -> vector<4x256xf32>
    %c78 = arith.constant 78 : index
    %c0_177 = arith.constant 0 : index
    %389 = vector.load %arg2[%c78, %c0_177] : memref<81x256xf32, #tpu.memory_space<vmem>>, vector<1x256xf32>
    %390 = vector.broadcast %389 : vector<1x256xf32> to vector<4x256xf32>
    %391 = arith.mulf %388, %390 : vector<4x256xf32>
    %c312 = arith.constant 312 : index
    %c0_178 = arith.constant 0 : index
    %392 = vector.load %arg12[%c312, %c0_178] : memref<324x256xf32, #tpu.memory_space<vmem>>, vector<4x256xf32>
    tpu.vector_store %arg12[%c312, %c0_178], %391 {strides = array<i32>} : memref<324x256xf32, #tpu.memory_space<vmem>>, vector<4x256xf32>,
    %c189_i32 = arith.constant 189 : i32
    %393 = tpu.dynamic_rotate %1 by %c189_i32 dim 1 : vector<4x256xf32>, i32 -> vector<4x256xf32>
    %c79 = arith.constant 79 : index
    %c0_179 = arith.constant 0 : index
    %394 = vector.load %arg2[%c79, %c0_179] : memref<81x256xf32, #tpu.memory_space<vmem>>, vector<1x256xf32>
    %395 = vector.broadcast %394 : vector<1x256xf32> to vector<4x256xf32>
    %396 = arith.mulf %393, %395 : vector<4x256xf32>
    %c316 = arith.constant 316 : index
    %c0_180 = arith.constant 0 : index
    %397 = vector.load %arg12[%c316, %c0_180] : memref<324x256xf32, #tpu.memory_space<vmem>>, vector<4x256xf32>
    tpu.vector_store %arg12[%c316, %c0_180], %396 {strides = array<i32>} : memref<324x256xf32, #tpu.memory_space<vmem>>, vector<4x256xf32>,
    %c188_i32 = arith.constant 188 : i32
    %398 = tpu.dynamic_rotate %1 by %c188_i32 dim 1 : vector<4x256xf32>, i32 -> vector<4x256xf32>
    %c80_181 = arith.constant 80 : index
    %c0_182 = arith.constant 0 : index
    %399 = vector.load %arg2[%c80_181, %c0_182] : memref<81x256xf32, #tpu.memory_space<vmem>>, vector<1x256xf32>
    %400 = vector.broadcast %399 : vector<1x256xf32> to vector<4x256xf32>
    %401 = arith.mulf %398, %400 : vector<4x256xf32>
    %c320 = arith.constant 320 : index
    %c0_183 = arith.constant 0 : index
    %402 = vector.load %arg12[%c320, %c0_183] : memref<324x256xf32, #tpu.memory_space<vmem>>, vector<4x256xf32>
    tpu.vector_store %arg12[%c320, %c0_183], %401 {strides = array<i32>} : memref<324x256xf32, #tpu.memory_space<vmem>>, vector<4x256xf32>,
    %c0_184 = arith.constant 0 : index
    %c0_185 = arith.constant 0 : index
    %403 = vector.load %arg5[%c0_184, %c0_185] : memref<16x324xf32, #tpu.memory_space<vmem>>, vector<16x324xf32>
    %c0_186 = arith.constant 0 : index
    %c0_187 = arith.constant 0 : index
    %404 = vector.load %arg12[%c0_186, %c0_187] : memref<324x256xf32, #tpu.memory_space<vmem>>, vector<324x256xf32>
    %cst = arith.constant dense<0.000000e+00> : vector<16x256xf32>
    %405 = tpu.matmul %403, %404, %cst {dimension_numbers = #tpu.dot_dimension_numbers<[1], [0], [0], [1], [0, 0, 1, 1], [], []>} : vector<16x324xf32>, vector<324x256xf32>, vector<16x256xf32> -> vector<16x256xf32>
    %c0_188 = arith.constant 0 : index
    %c0_189 = arith.constant 0 : index
    %406 = vector.load %arg6[%c0_188, %c0_189] : memref<16x1xf32, #tpu.memory_space<vmem>>, vector<16x1xf32>
    %407 = vector.broadcast %406 : vector<16x1xf32> to vector<16x256xf32>
    %408 = arith.addf %405, %407 : vector<16x256xf32>
    %cst_190 = arith.constant 0.000000e+00 : f32
    %409 = vector.broadcast %cst_190 : f32 to vector<16x256xf32>
    %410 = arith.maximumf %408, %409 : vector<16x256xf32>
    %c17_i32_191 = arith.constant 17 : i32
    %411 = tpu.dynamic_rotate %410 by %c17_i32_191 dim 1 : vector<16x256xf32>, i32 -> vector<16x256xf32>
    %c0_192 = arith.constant 0 : index
    %c0_193 = arith.constant 0 : index
    %412 = vector.load %arg3[%c0_192, %c0_193] : memref<9x256xf32, #tpu.memory_space<vmem>>, vector<1x256xf32>
    %413 = vector.broadcast %412 : vector<1x256xf32> to vector<16x256xf32>
    %414 = arith.mulf %411, %413 : vector<16x256xf32>
    %c0_194 = arith.constant 0 : index
    %c0_195 = arith.constant 0 : index
    %415 = vector.load %arg12[%c0_194, %c0_195] : memref<324x256xf32, #tpu.memory_space<vmem>>, vector<16x256xf32>
    tpu.vector_store %arg12[%c0_194, %c0_195], %414 {strides = array<i32>} : memref<324x256xf32, #tpu.memory_space<vmem>>, vector<16x256xf32>,
    %c16_i32_196 = arith.constant 16 : i32
    %416 = tpu.dynamic_rotate %410 by %c16_i32_196 dim 1 : vector<16x256xf32>, i32 -> vector<16x256xf32>
    %c1_197 = arith.constant 1 : index
    %c0_198 = arith.constant 0 : index
    %417 = vector.load %arg3[%c1_197, %c0_198] : memref<9x256xf32, #tpu.memory_space<vmem>>, vector<1x256xf32>
    %418 = vector.broadcast %417 : vector<1x256xf32> to vector<16x256xf32>
    %419 = arith.mulf %416, %418 : vector<16x256xf32>
    %c16_199 = arith.constant 16 : index
    %c0_200 = arith.constant 0 : index
    %420 = vector.load %arg12[%c16_199, %c0_200] : memref<324x256xf32, #tpu.memory_space<vmem>>, vector<16x256xf32>
    tpu.vector_store %arg12[%c16_199, %c0_200], %419 {strides = array<i32>} : memref<324x256xf32, #tpu.memory_space<vmem>>, vector<16x256xf32>,
    %c15_i32_201 = arith.constant 15 : i32
    %421 = tpu.dynamic_rotate %410 by %c15_i32_201 dim 1 : vector<16x256xf32>, i32 -> vector<16x256xf32>
    %c2_202 = arith.constant 2 : index
    %c0_203 = arith.constant 0 : index
    %422 = vector.load %arg3[%c2_202, %c0_203] : memref<9x256xf32, #tpu.memory_space<vmem>>, vector<1x256xf32>
    %423 = vector.broadcast %422 : vector<1x256xf32> to vector<16x256xf32>
    %424 = arith.mulf %421, %423 : vector<16x256xf32>
    %c32_204 = arith.constant 32 : index
    %c0_205 = arith.constant 0 : index
    %425 = vector.load %arg12[%c32_204, %c0_205] : memref<324x256xf32, #tpu.memory_space<vmem>>, vector<16x256xf32>
    tpu.vector_store %arg12[%c32_204, %c0_205], %424 {strides = array<i32>} : memref<324x256xf32, #tpu.memory_space<vmem>>, vector<16x256xf32>,
    %c1_i32_206 = arith.constant 1 : i32
    %426 = tpu.dynamic_rotate %410 by %c1_i32_206 dim 1 : vector<16x256xf32>, i32 -> vector<16x256xf32>
    %c3_207 = arith.constant 3 : index
    %c0_208 = arith.constant 0 : index
    %427 = vector.load %arg3[%c3_207, %c0_208] : memref<9x256xf32, #tpu.memory_space<vmem>>, vector<1x256xf32>
    %428 = vector.broadcast %427 : vector<1x256xf32> to vector<16x256xf32>
    %429 = arith.mulf %426, %428 : vector<16x256xf32>
    %c48_209 = arith.constant 48 : index
    %c0_210 = arith.constant 0 : index
    %430 = vector.load %arg12[%c48_209, %c0_210] : memref<324x256xf32, #tpu.memory_space<vmem>>, vector<16x256xf32>
    tpu.vector_store %arg12[%c48_209, %c0_210], %429 {strides = array<i32>} : memref<324x256xf32, #tpu.memory_space<vmem>>, vector<16x256xf32>,
    %c64_211 = arith.constant 64 : index
    %c0_212 = arith.constant 0 : index
    %431 = vector.load %arg12[%c64_211, %c0_212] : memref<324x256xf32, #tpu.memory_space<vmem>>, vector<16x256xf32>
    tpu.vector_store %arg12[%c64_211, %c0_212], %410 {strides = array<i32>} : memref<324x256xf32, #tpu.memory_space<vmem>>, vector<16x256xf32>,
    %c255_i32_213 = arith.constant 255 : i32
    %432 = tpu.dynamic_rotate %410 by %c255_i32_213 dim 1 : vector<16x256xf32>, i32 -> vector<16x256xf32>
    %c5_214 = arith.constant 5 : index
    %c0_215 = arith.constant 0 : index
    %433 = vector.load %arg3[%c5_214, %c0_215] : memref<9x256xf32, #tpu.memory_space<vmem>>, vector<1x256xf32>
    %434 = vector.broadcast %433 : vector<1x256xf32> to vector<16x256xf32>
    %435 = arith.mulf %432, %434 : vector<16x256xf32>
    %c80_216 = arith.constant 80 : index
    %c0_217 = arith.constant 0 : index
    %436 = vector.load %arg12[%c80_216, %c0_217] : memref<324x256xf32, #tpu.memory_space<vmem>>, vector<16x256xf32>
    tpu.vector_store %arg12[%c80_216, %c0_217], %435 {strides = array<i32>} : memref<324x256xf32, #tpu.memory_space<vmem>>, vector<16x256xf32>,
    %c241_i32_218 = arith.constant 241 : i32
    %437 = tpu.dynamic_rotate %410 by %c241_i32_218 dim 1 : vector<16x256xf32>, i32 -> vector<16x256xf32>
    %c6_219 = arith.constant 6 : index
    %c0_220 = arith.constant 0 : index
    %438 = vector.load %arg3[%c6_219, %c0_220] : memref<9x256xf32, #tpu.memory_space<vmem>>, vector<1x256xf32>
    %439 = vector.broadcast %438 : vector<1x256xf32> to vector<16x256xf32>
    %440 = arith.mulf %437, %439 : vector<16x256xf32>
    %c96_221 = arith.constant 96 : index
    %c0_222 = arith.constant 0 : index
    %441 = vector.load %arg12[%c96_221, %c0_222] : memref<324x256xf32, #tpu.memory_space<vmem>>, vector<16x256xf32>
    tpu.vector_store %arg12[%c96_221, %c0_222], %440 {strides = array<i32>} : memref<324x256xf32, #tpu.memory_space<vmem>>, vector<16x256xf32>,
    %c240_i32_223 = arith.constant 240 : i32
    %442 = tpu.dynamic_rotate %410 by %c240_i32_223 dim 1 : vector<16x256xf32>, i32 -> vector<16x256xf32>
    %c7_224 = arith.constant 7 : index
    %c0_225 = arith.constant 0 : index
    %443 = vector.load %arg3[%c7_224, %c0_225] : memref<9x256xf32, #tpu.memory_space<vmem>>, vector<1x256xf32>
    %444 = vector.broadcast %443 : vector<1x256xf32> to vector<16x256xf32>
    %445 = arith.mulf %442, %444 : vector<16x256xf32>
    %c112_226 = arith.constant 112 : index
    %c0_227 = arith.constant 0 : index
    %446 = vector.load %arg12[%c112_226, %c0_227] : memref<324x256xf32, #tpu.memory_space<vmem>>, vector<16x256xf32>
    tpu.vector_store %arg12[%c112_226, %c0_227], %445 {strides = array<i32>} : memref<324x256xf32, #tpu.memory_space<vmem>>, vector<16x256xf32>,
    %c239_i32_228 = arith.constant 239 : i32
    %447 = tpu.dynamic_rotate %410 by %c239_i32_228 dim 1 : vector<16x256xf32>, i32 -> vector<16x256xf32>
    %c8_229 = arith.constant 8 : index
    %c0_230 = arith.constant 0 : index
    %448 = vector.load %arg3[%c8_229, %c0_230] : memref<9x256xf32, #tpu.memory_space<vmem>>, vector<1x256xf32>
    %449 = vector.broadcast %448 : vector<1x256xf32> to vector<16x256xf32>
    %450 = arith.mulf %447, %449 : vector<16x256xf32>
    %c128_231 = arith.constant 128 : index
    %c0_232 = arith.constant 0 : index
    %451 = vector.load %arg12[%c128_231, %c0_232] : memref<324x256xf32, #tpu.memory_space<vmem>>, vector<16x256xf32>
    tpu.vector_store %arg12[%c128_231, %c0_232], %450 {strides = array<i32>} : memref<324x256xf32, #tpu.memory_space<vmem>>, vector<16x256xf32>,
    %c0_233 = arith.constant 0 : index
    %c0_234 = arith.constant 0 : index
    %452 = vector.load %arg7[%c0_233, %c0_234] : memref<8x144xf32, #tpu.memory_space<vmem>>, vector<8x144xf32>
    %c0_235 = arith.constant 0 : index
    %c0_236 = arith.constant 0 : index
    %453 = vector.load %arg12[%c0_235, %c0_236] : memref<324x256xf32, #tpu.memory_space<vmem>>, vector<144x256xf32>
    %cst_237 = arith.constant dense<0.000000e+00> : vector<8x256xf32>
    %454 = tpu.matmul %452, %453, %cst_237 {dimension_numbers = #tpu.dot_dimension_numbers<[1], [0], [0], [1], [0, 0, 1, 1], [], []>} : vector<8x144xf32>, vector<144x256xf32>, vector<8x256xf32> -> vector<8x256xf32>
    %c0_238 = arith.constant 0 : index
    %c0_239 = arith.constant 0 : index
    %455 = vector.load %arg8[%c0_238, %c0_239] : memref<8x1xf32, #tpu.memory_space<vmem>>, vector<8x1xf32>
    %456 = vector.broadcast %455 : vector<8x1xf32> to vector<8x256xf32>
    %457 = arith.addf %454, %456 : vector<8x256xf32>
    %cst_240 = arith.constant 0.000000e+00 : f32
    %458 = vector.broadcast %cst_240 : f32 to vector<8x256xf32>
    %459 = arith.maximumf %457, %458 : vector<8x256xf32>
    %c34_i32_241 = arith.constant 34 : i32
    %460 = tpu.dynamic_rotate %459 by %c34_i32_241 dim 1 : vector<8x256xf32>, i32 -> vector<8x256xf32>
    %c0_242 = arith.constant 0 : index
    %c0_243 = arith.constant 0 : index
    %461 = vector.load %arg4[%c0_242, %c0_243] : memref<25x256xf32, #tpu.memory_space<vmem>>, vector<1x256xf32>
    %462 = vector.broadcast %461 : vector<1x256xf32> to vector<8x256xf32>
    %463 = arith.mulf %460, %462 : vector<8x256xf32>
    %c0_244 = arith.constant 0 : index
    %c0_245 = arith.constant 0 : index
    %464 = vector.load %arg12[%c0_244, %c0_245] : memref<324x256xf32, #tpu.memory_space<vmem>>, vector<8x256xf32>
    tpu.vector_store %arg12[%c0_244, %c0_245], %463 {strides = array<i32>} : memref<324x256xf32, #tpu.memory_space<vmem>>, vector<8x256xf32>,
    %c33_i32_246 = arith.constant 33 : i32
    %465 = tpu.dynamic_rotate %459 by %c33_i32_246 dim 1 : vector<8x256xf32>, i32 -> vector<8x256xf32>
    %c1_247 = arith.constant 1 : index
    %c0_248 = arith.constant 0 : index
    %466 = vector.load %arg4[%c1_247, %c0_248] : memref<25x256xf32, #tpu.memory_space<vmem>>, vector<1x256xf32>
    %467 = vector.broadcast %466 : vector<1x256xf32> to vector<8x256xf32>
    %468 = arith.mulf %465, %467 : vector<8x256xf32>
    %c8_249 = arith.constant 8 : index
    %c0_250 = arith.constant 0 : index
    %469 = vector.load %arg12[%c8_249, %c0_250] : memref<324x256xf32, #tpu.memory_space<vmem>>, vector<8x256xf32>
    tpu.vector_store %arg12[%c8_249, %c0_250], %468 {strides = array<i32>} : memref<324x256xf32, #tpu.memory_space<vmem>>, vector<8x256xf32>,
    %c32_i32_251 = arith.constant 32 : i32
    %470 = tpu.dynamic_rotate %459 by %c32_i32_251 dim 1 : vector<8x256xf32>, i32 -> vector<8x256xf32>
    %c2_252 = arith.constant 2 : index
    %c0_253 = arith.constant 0 : index
    %471 = vector.load %arg4[%c2_252, %c0_253] : memref<25x256xf32, #tpu.memory_space<vmem>>, vector<1x256xf32>
    %472 = vector.broadcast %471 : vector<1x256xf32> to vector<8x256xf32>
    %473 = arith.mulf %470, %472 : vector<8x256xf32>
    %c16_254 = arith.constant 16 : index
    %c0_255 = arith.constant 0 : index
    %474 = vector.load %arg12[%c16_254, %c0_255] : memref<324x256xf32, #tpu.memory_space<vmem>>, vector<8x256xf32>
    tpu.vector_store %arg12[%c16_254, %c0_255], %473 {strides = array<i32>} : memref<324x256xf32, #tpu.memory_space<vmem>>, vector<8x256xf32>,
    %c31_i32_256 = arith.constant 31 : i32
    %475 = tpu.dynamic_rotate %459 by %c31_i32_256 dim 1 : vector<8x256xf32>, i32 -> vector<8x256xf32>
    %c3_257 = arith.constant 3 : index
    %c0_258 = arith.constant 0 : index
    %476 = vector.load %arg4[%c3_257, %c0_258] : memref<25x256xf32, #tpu.memory_space<vmem>>, vector<1x256xf32>
    %477 = vector.broadcast %476 : vector<1x256xf32> to vector<8x256xf32>
    %478 = arith.mulf %475, %477 : vector<8x256xf32>
    %c24_259 = arith.constant 24 : index
    %c0_260 = arith.constant 0 : index
    %479 = vector.load %arg12[%c24_259, %c0_260] : memref<324x256xf32, #tpu.memory_space<vmem>>, vector<8x256xf32>
    tpu.vector_store %arg12[%c24_259, %c0_260], %478 {strides = array<i32>} : memref<324x256xf32, #tpu.memory_space<vmem>>, vector<8x256xf32>,
    %c30_i32_261 = arith.constant 30 : i32
    %480 = tpu.dynamic_rotate %459 by %c30_i32_261 dim 1 : vector<8x256xf32>, i32 -> vector<8x256xf32>
    %c4_262 = arith.constant 4 : index
    %c0_263 = arith.constant 0 : index
    %481 = vector.load %arg4[%c4_262, %c0_263] : memref<25x256xf32, #tpu.memory_space<vmem>>, vector<1x256xf32>
    %482 = vector.broadcast %481 : vector<1x256xf32> to vector<8x256xf32>
    %483 = arith.mulf %480, %482 : vector<8x256xf32>
    %c32_264 = arith.constant 32 : index
    %c0_265 = arith.constant 0 : index
    %484 = vector.load %arg12[%c32_264, %c0_265] : memref<324x256xf32, #tpu.memory_space<vmem>>, vector<8x256xf32>
    tpu.vector_store %arg12[%c32_264, %c0_265], %483 {strides = array<i32>} : memref<324x256xf32, #tpu.memory_space<vmem>>, vector<8x256xf32>,
    %c18_i32_266 = arith.constant 18 : i32
    %485 = tpu.dynamic_rotate %459 by %c18_i32_266 dim 1 : vector<8x256xf32>, i32 -> vector<8x256xf32>
    %c5_267 = arith.constant 5 : index
    %c0_268 = arith.constant 0 : index
    %486 = vector.load %arg4[%c5_267, %c0_268] : memref<25x256xf32, #tpu.memory_space<vmem>>, vector<1x256xf32>
    %487 = vector.broadcast %486 : vector<1x256xf32> to vector<8x256xf32>
    %488 = arith.mulf %485, %487 : vector<8x256xf32>
    %c40_269 = arith.constant 40 : index
    %c0_270 = arith.constant 0 : index
    %489 = vector.load %arg12[%c40_269, %c0_270] : memref<324x256xf32, #tpu.memory_space<vmem>>, vector<8x256xf32>
    tpu.vector_store %arg12[%c40_269, %c0_270], %488 {strides = array<i32>} : memref<324x256xf32, #tpu.memory_space<vmem>>, vector<8x256xf32>,
    %c17_i32_271 = arith.constant 17 : i32
    %490 = tpu.dynamic_rotate %459 by %c17_i32_271 dim 1 : vector<8x256xf32>, i32 -> vector<8x256xf32>
    %c6_272 = arith.constant 6 : index
    %c0_273 = arith.constant 0 : index
    %491 = vector.load %arg4[%c6_272, %c0_273] : memref<25x256xf32, #tpu.memory_space<vmem>>, vector<1x256xf32>
    %492 = vector.broadcast %491 : vector<1x256xf32> to vector<8x256xf32>
    %493 = arith.mulf %490, %492 : vector<8x256xf32>
    %c48_274 = arith.constant 48 : index
    %c0_275 = arith.constant 0 : index
    %494 = vector.load %arg12[%c48_274, %c0_275] : memref<324x256xf32, #tpu.memory_space<vmem>>, vector<8x256xf32>
    tpu.vector_store %arg12[%c48_274, %c0_275], %493 {strides = array<i32>} : memref<324x256xf32, #tpu.memory_space<vmem>>, vector<8x256xf32>,
    %c16_i32_276 = arith.constant 16 : i32
    %495 = tpu.dynamic_rotate %459 by %c16_i32_276 dim 1 : vector<8x256xf32>, i32 -> vector<8x256xf32>
    %c7_277 = arith.constant 7 : index
    %c0_278 = arith.constant 0 : index
    %496 = vector.load %arg4[%c7_277, %c0_278] : memref<25x256xf32, #tpu.memory_space<vmem>>, vector<1x256xf32>
    %497 = vector.broadcast %496 : vector<1x256xf32> to vector<8x256xf32>
    %498 = arith.mulf %495, %497 : vector<8x256xf32>
    %c56_279 = arith.constant 56 : index
    %c0_280 = arith.constant 0 : index
    %499 = vector.load %arg12[%c56_279, %c0_280] : memref<324x256xf32, #tpu.memory_space<vmem>>, vector<8x256xf32>
    tpu.vector_store %arg12[%c56_279, %c0_280], %498 {strides = array<i32>} : memref<324x256xf32, #tpu.memory_space<vmem>>, vector<8x256xf32>,
    %c15_i32_281 = arith.constant 15 : i32
    %500 = tpu.dynamic_rotate %459 by %c15_i32_281 dim 1 : vector<8x256xf32>, i32 -> vector<8x256xf32>
    %c8_282 = arith.constant 8 : index
    %c0_283 = arith.constant 0 : index
    %501 = vector.load %arg4[%c8_282, %c0_283] : memref<25x256xf32, #tpu.memory_space<vmem>>, vector<1x256xf32>
    %502 = vector.broadcast %501 : vector<1x256xf32> to vector<8x256xf32>
    %503 = arith.mulf %500, %502 : vector<8x256xf32>
    %c64_284 = arith.constant 64 : index
    %c0_285 = arith.constant 0 : index
    %504 = vector.load %arg12[%c64_284, %c0_285] : memref<324x256xf32, #tpu.memory_space<vmem>>, vector<8x256xf32>
    tpu.vector_store %arg12[%c64_284, %c0_285], %503 {strides = array<i32>} : memref<324x256xf32, #tpu.memory_space<vmem>>, vector<8x256xf32>,
    %c14_i32_286 = arith.constant 14 : i32
    %505 = tpu.dynamic_rotate %459 by %c14_i32_286 dim 1 : vector<8x256xf32>, i32 -> vector<8x256xf32>
    %c9_287 = arith.constant 9 : index
    %c0_288 = arith.constant 0 : index
    %506 = vector.load %arg4[%c9_287, %c0_288] : memref<25x256xf32, #tpu.memory_space<vmem>>, vector<1x256xf32>
    %507 = vector.broadcast %506 : vector<1x256xf32> to vector<8x256xf32>
    %508 = arith.mulf %505, %507 : vector<8x256xf32>
    %c72_289 = arith.constant 72 : index
    %c0_290 = arith.constant 0 : index
    %509 = vector.load %arg12[%c72_289, %c0_290] : memref<324x256xf32, #tpu.memory_space<vmem>>, vector<8x256xf32>
    tpu.vector_store %arg12[%c72_289, %c0_290], %508 {strides = array<i32>} : memref<324x256xf32, #tpu.memory_space<vmem>>, vector<8x256xf32>,
    %c2_i32_291 = arith.constant 2 : i32
    %510 = tpu.dynamic_rotate %459 by %c2_i32_291 dim 1 : vector<8x256xf32>, i32 -> vector<8x256xf32>
    %c10_292 = arith.constant 10 : index
    %c0_293 = arith.constant 0 : index
    %511 = vector.load %arg4[%c10_292, %c0_293] : memref<25x256xf32, #tpu.memory_space<vmem>>, vector<1x256xf32>
    %512 = vector.broadcast %511 : vector<1x256xf32> to vector<8x256xf32>
    %513 = arith.mulf %510, %512 : vector<8x256xf32>
    %c80_294 = arith.constant 80 : index
    %c0_295 = arith.constant 0 : index
    %514 = vector.load %arg12[%c80_294, %c0_295] : memref<324x256xf32, #tpu.memory_space<vmem>>, vector<8x256xf32>
    tpu.vector_store %arg12[%c80_294, %c0_295], %513 {strides = array<i32>} : memref<324x256xf32, #tpu.memory_space<vmem>>, vector<8x256xf32>,
    %c1_i32_296 = arith.constant 1 : i32
    %515 = tpu.dynamic_rotate %459 by %c1_i32_296 dim 1 : vector<8x256xf32>, i32 -> vector<8x256xf32>
    %c11_297 = arith.constant 11 : index
    %c0_298 = arith.constant 0 : index
    %516 = vector.load %arg4[%c11_297, %c0_298] : memref<25x256xf32, #tpu.memory_space<vmem>>, vector<1x256xf32>
    %517 = vector.broadcast %516 : vector<1x256xf32> to vector<8x256xf32>
    %518 = arith.mulf %515, %517 : vector<8x256xf32>
    %c88_299 = arith.constant 88 : index
    %c0_300 = arith.constant 0 : index
    %519 = vector.load %arg12[%c88_299, %c0_300] : memref<324x256xf32, #tpu.memory_space<vmem>>, vector<8x256xf32>
    tpu.vector_store %arg12[%c88_299, %c0_300], %518 {strides = array<i32>} : memref<324x256xf32, #tpu.memory_space<vmem>>, vector<8x256xf32>,
    %c96_301 = arith.constant 96 : index
    %c0_302 = arith.constant 0 : index
    %520 = vector.load %arg12[%c96_301, %c0_302] : memref<324x256xf32, #tpu.memory_space<vmem>>, vector<8x256xf32>
    tpu.vector_store %arg12[%c96_301, %c0_302], %459 {strides = array<i32>} : memref<324x256xf32, #tpu.memory_space<vmem>>, vector<8x256xf32>,
    %c255_i32_303 = arith.constant 255 : i32
    %521 = tpu.dynamic_rotate %459 by %c255_i32_303 dim 1 : vector<8x256xf32>, i32 -> vector<8x256xf32>
    %c13_304 = arith.constant 13 : index
    %c0_305 = arith.constant 0 : index
    %522 = vector.load %arg4[%c13_304, %c0_305] : memref<25x256xf32, #tpu.memory_space<vmem>>, vector<1x256xf32>
    %523 = vector.broadcast %522 : vector<1x256xf32> to vector<8x256xf32>
    %524 = arith.mulf %521, %523 : vector<8x256xf32>
    %c104_306 = arith.constant 104 : index
    %c0_307 = arith.constant 0 : index
    %525 = vector.load %arg12[%c104_306, %c0_307] : memref<324x256xf32, #tpu.memory_space<vmem>>, vector<8x256xf32>
    tpu.vector_store %arg12[%c104_306, %c0_307], %524 {strides = array<i32>} : memref<324x256xf32, #tpu.memory_space<vmem>>, vector<8x256xf32>,
    %c254_i32_308 = arith.constant 254 : i32
    %526 = tpu.dynamic_rotate %459 by %c254_i32_308 dim 1 : vector<8x256xf32>, i32 -> vector<8x256xf32>
    %c14_309 = arith.constant 14 : index
    %c0_310 = arith.constant 0 : index
    %527 = vector.load %arg4[%c14_309, %c0_310] : memref<25x256xf32, #tpu.memory_space<vmem>>, vector<1x256xf32>
    %528 = vector.broadcast %527 : vector<1x256xf32> to vector<8x256xf32>
    %529 = arith.mulf %526, %528 : vector<8x256xf32>
    %c112_311 = arith.constant 112 : index
    %c0_312 = arith.constant 0 : index
    %530 = vector.load %arg12[%c112_311, %c0_312] : memref<324x256xf32, #tpu.memory_space<vmem>>, vector<8x256xf32>
    tpu.vector_store %arg12[%c112_311, %c0_312], %529 {strides = array<i32>} : memref<324x256xf32, #tpu.memory_space<vmem>>, vector<8x256xf32>,
    %c242_i32_313 = arith.constant 242 : i32
    %531 = tpu.dynamic_rotate %459 by %c242_i32_313 dim 1 : vector<8x256xf32>, i32 -> vector<8x256xf32>
    %c15_314 = arith.constant 15 : index
    %c0_315 = arith.constant 0 : index
    %532 = vector.load %arg4[%c15_314, %c0_315] : memref<25x256xf32, #tpu.memory_space<vmem>>, vector<1x256xf32>
    %533 = vector.broadcast %532 : vector<1x256xf32> to vector<8x256xf32>
    %534 = arith.mulf %531, %533 : vector<8x256xf32>
    %c120_316 = arith.constant 120 : index
    %c0_317 = arith.constant 0 : index
    %535 = vector.load %arg12[%c120_316, %c0_317] : memref<324x256xf32, #tpu.memory_space<vmem>>, vector<8x256xf32>
    tpu.vector_store %arg12[%c120_316, %c0_317], %534 {strides = array<i32>} : memref<324x256xf32, #tpu.memory_space<vmem>>, vector<8x256xf32>,
    %c241_i32_318 = arith.constant 241 : i32
    %536 = tpu.dynamic_rotate %459 by %c241_i32_318 dim 1 : vector<8x256xf32>, i32 -> vector<8x256xf32>
    %c16_319 = arith.constant 16 : index
    %c0_320 = arith.constant 0 : index
    %537 = vector.load %arg4[%c16_319, %c0_320] : memref<25x256xf32, #tpu.memory_space<vmem>>, vector<1x256xf32>
    %538 = vector.broadcast %537 : vector<1x256xf32> to vector<8x256xf32>
    %539 = arith.mulf %536, %538 : vector<8x256xf32>
    %c128_321 = arith.constant 128 : index
    %c0_322 = arith.constant 0 : index
    %540 = vector.load %arg12[%c128_321, %c0_322] : memref<324x256xf32, #tpu.memory_space<vmem>>, vector<8x256xf32>
    tpu.vector_store %arg12[%c128_321, %c0_322], %539 {strides = array<i32>} : memref<324x256xf32, #tpu.memory_space<vmem>>, vector<8x256xf32>,
    %c240_i32_323 = arith.constant 240 : i32
    %541 = tpu.dynamic_rotate %459 by %c240_i32_323 dim 1 : vector<8x256xf32>, i32 -> vector<8x256xf32>
    %c17_324 = arith.constant 17 : index
    %c0_325 = arith.constant 0 : index
    %542 = vector.load %arg4[%c17_324, %c0_325] : memref<25x256xf32, #tpu.memory_space<vmem>>, vector<1x256xf32>
    %543 = vector.broadcast %542 : vector<1x256xf32> to vector<8x256xf32>
    %544 = arith.mulf %541, %543 : vector<8x256xf32>
    %c136_326 = arith.constant 136 : index
    %c0_327 = arith.constant 0 : index
    %545 = vector.load %arg12[%c136_326, %c0_327] : memref<324x256xf32, #tpu.memory_space<vmem>>, vector<8x256xf32>
    tpu.vector_store %arg12[%c136_326, %c0_327], %544 {strides = array<i32>} : memref<324x256xf32, #tpu.memory_space<vmem>>, vector<8x256xf32>,
    %c239_i32_328 = arith.constant 239 : i32
    %546 = tpu.dynamic_rotate %459 by %c239_i32_328 dim 1 : vector<8x256xf32>, i32 -> vector<8x256xf32>
    %c18_329 = arith.constant 18 : index
    %c0_330 = arith.constant 0 : index
    %547 = vector.load %arg4[%c18_329, %c0_330] : memref<25x256xf32, #tpu.memory_space<vmem>>, vector<1x256xf32>
    %548 = vector.broadcast %547 : vector<1x256xf32> to vector<8x256xf32>
    %549 = arith.mulf %546, %548 : vector<8x256xf32>
    %c144_331 = arith.constant 144 : index
    %c0_332 = arith.constant 0 : index
    %550 = vector.load %arg12[%c144_331, %c0_332] : memref<324x256xf32, #tpu.memory_space<vmem>>, vector<8x256xf32>
    tpu.vector_store %arg12[%c144_331, %c0_332], %549 {strides = array<i32>} : memref<324x256xf32, #tpu.memory_space<vmem>>, vector<8x256xf32>,
    %c238_i32_333 = arith.constant 238 : i32
    %551 = tpu.dynamic_rotate %459 by %c238_i32_333 dim 1 : vector<8x256xf32>, i32 -> vector<8x256xf32>
    %c19_334 = arith.constant 19 : index
    %c0_335 = arith.constant 0 : index
    %552 = vector.load %arg4[%c19_334, %c0_335] : memref<25x256xf32, #tpu.memory_space<vmem>>, vector<1x256xf32>
    %553 = vector.broadcast %552 : vector<1x256xf32> to vector<8x256xf32>
    %554 = arith.mulf %551, %553 : vector<8x256xf32>
    %c152_336 = arith.constant 152 : index
    %c0_337 = arith.constant 0 : index
    %555 = vector.load %arg12[%c152_336, %c0_337] : memref<324x256xf32, #tpu.memory_space<vmem>>, vector<8x256xf32>
    tpu.vector_store %arg12[%c152_336, %c0_337], %554 {strides = array<i32>} : memref<324x256xf32, #tpu.memory_space<vmem>>, vector<8x256xf32>,
    %c226_i32_338 = arith.constant 226 : i32
    %556 = tpu.dynamic_rotate %459 by %c226_i32_338 dim 1 : vector<8x256xf32>, i32 -> vector<8x256xf32>
    %c20_339 = arith.constant 20 : index
    %c0_340 = arith.constant 0 : index
    %557 = vector.load %arg4[%c20_339, %c0_340] : memref<25x256xf32, #tpu.memory_space<vmem>>, vector<1x256xf32>
    %558 = vector.broadcast %557 : vector<1x256xf32> to vector<8x256xf32>
    %559 = arith.mulf %556, %558 : vector<8x256xf32>
    %c160_341 = arith.constant 160 : index
    %c0_342 = arith.constant 0 : index
    %560 = vector.load %arg12[%c160_341, %c0_342] : memref<324x256xf32, #tpu.memory_space<vmem>>, vector<8x256xf32>
    tpu.vector_store %arg12[%c160_341, %c0_342], %559 {strides = array<i32>} : memref<324x256xf32, #tpu.memory_space<vmem>>, vector<8x256xf32>,
    %c225_i32_343 = arith.constant 225 : i32
    %561 = tpu.dynamic_rotate %459 by %c225_i32_343 dim 1 : vector<8x256xf32>, i32 -> vector<8x256xf32>
    %c21_344 = arith.constant 21 : index
    %c0_345 = arith.constant 0 : index
    %562 = vector.load %arg4[%c21_344, %c0_345] : memref<25x256xf32, #tpu.memory_space<vmem>>, vector<1x256xf32>
    %563 = vector.broadcast %562 : vector<1x256xf32> to vector<8x256xf32>
    %564 = arith.mulf %561, %563 : vector<8x256xf32>
    %c168_346 = arith.constant 168 : index
    %c0_347 = arith.constant 0 : index
    %565 = vector.load %arg12[%c168_346, %c0_347] : memref<324x256xf32, #tpu.memory_space<vmem>>, vector<8x256xf32>
    tpu.vector_store %arg12[%c168_346, %c0_347], %564 {strides = array<i32>} : memref<324x256xf32, #tpu.memory_space<vmem>>, vector<8x256xf32>,
    %c224_i32_348 = arith.constant 224 : i32
    %566 = tpu.dynamic_rotate %459 by %c224_i32_348 dim 1 : vector<8x256xf32>, i32 -> vector<8x256xf32>
    %c22_349 = arith.constant 22 : index
    %c0_350 = arith.constant 0 : index
    %567 = vector.load %arg4[%c22_349, %c0_350] : memref<25x256xf32, #tpu.memory_space<vmem>>, vector<1x256xf32>
    %568 = vector.broadcast %567 : vector<1x256xf32> to vector<8x256xf32>
    %569 = arith.mulf %566, %568 : vector<8x256xf32>
    %c176_351 = arith.constant 176 : index
    %c0_352 = arith.constant 0 : index
    %570 = vector.load %arg12[%c176_351, %c0_352] : memref<324x256xf32, #tpu.memory_space<vmem>>, vector<8x256xf32>
    tpu.vector_store %arg12[%c176_351, %c0_352], %569 {strides = array<i32>} : memref<324x256xf32, #tpu.memory_space<vmem>>, vector<8x256xf32>,
    %c223_i32_353 = arith.constant 223 : i32
    %571 = tpu.dynamic_rotate %459 by %c223_i32_353 dim 1 : vector<8x256xf32>, i32 -> vector<8x256xf32>
    %c23_354 = arith.constant 23 : index
    %c0_355 = arith.constant 0 : index
    %572 = vector.load %arg4[%c23_354, %c0_355] : memref<25x256xf32, #tpu.memory_space<vmem>>, vector<1x256xf32>
    %573 = vector.broadcast %572 : vector<1x256xf32> to vector<8x256xf32>
    %574 = arith.mulf %571, %573 : vector<8x256xf32>
    %c184_356 = arith.constant 184 : index
    %c0_357 = arith.constant 0 : index
    %575 = vector.load %arg12[%c184_356, %c0_357] : memref<324x256xf32, #tpu.memory_space<vmem>>, vector<8x256xf32>
    tpu.vector_store %arg12[%c184_356, %c0_357], %574 {strides = array<i32>} : memref<324x256xf32, #tpu.memory_space<vmem>>, vector<8x256xf32>,
    %c222_i32_358 = arith.constant 222 : i32
    %576 = tpu.dynamic_rotate %459 by %c222_i32_358 dim 1 : vector<8x256xf32>, i32 -> vector<8x256xf32>
    %c24_359 = arith.constant 24 : index
    %c0_360 = arith.constant 0 : index
    %577 = vector.load %arg4[%c24_359, %c0_360] : memref<25x256xf32, #tpu.memory_space<vmem>>, vector<1x256xf32>
    %578 = vector.broadcast %577 : vector<1x256xf32> to vector<8x256xf32>
    %579 = arith.mulf %576, %578 : vector<8x256xf32>
    %c192_361 = arith.constant 192 : index
    %c0_362 = arith.constant 0 : index
    %580 = vector.load %arg12[%c192_361, %c0_362] : memref<324x256xf32, #tpu.memory_space<vmem>>, vector<8x256xf32>
    tpu.vector_store %arg12[%c192_361, %c0_362], %579 {strides = array<i32>} : memref<324x256xf32, #tpu.memory_space<vmem>>, vector<8x256xf32>,
    %c0_363 = arith.constant 0 : index
    %c0_364 = arith.constant 0 : index
    %581 = vector.load %arg9[%c0_363, %c0_364] : memref<4x200xf32, #tpu.memory_space<vmem>>, vector<4x200xf32>
    %c0_365 = arith.constant 0 : index
    %c0_366 = arith.constant 0 : index
    %582 = vector.load %arg12[%c0_365, %c0_366] : memref<324x256xf32, #tpu.memory_space<vmem>>, vector<200x256xf32>
    %cst_367 = arith.constant dense<0.000000e+00> : vector<4x256xf32>
    %583 = tpu.matmul %581, %582, %cst_367 {dimension_numbers = #tpu.dot_dimension_numbers<[1], [0], [0], [1], [0, 0, 1, 1], [], []>} : vector<4x200xf32>, vector<200x256xf32>, vector<4x256xf32> -> vector<4x256xf32>
    %c0_368 = arith.constant 0 : index
    %c0_369 = arith.constant 0 : index
    %584 = vector.load %arg10[%c0_368, %c0_369] : memref<4x1xf32, #tpu.memory_space<vmem>>, vector<4x1xf32>
    %585 = vector.broadcast %584 : vector<4x1xf32> to vector<4x256xf32>
    %586 = arith.addf %583, %585 : vector<4x256xf32>
    %c0_370 = arith.constant 0 : index
    %c0_371 = arith.constant 0 : index
    %c0_372 = arith.constant 0 : index
    %587 = vector.load %arg11[%c0_370, %c0_371, %c0_372] : memref<1x4x256xf32, #tpu.memory_space<vmem>>, vector<1x4x256xf32>
    %588 = vector.shape_cast %587 : vector<1x4x256xf32> to vector<4x256xf32>
    %589 = vector.shape_cast %586 : vector<4x256xf32> to vector<1x4x256xf32>
    tpu.vector_store %arg11[%c0_370, %c0_371, %c0_372], %589 {strides = array<i32>} : memref<1x4x256xf32, #tpu.memory_space<vmem>>, vector<1x4x256xf32>,
    return
  }
  func.func @transform_0(%arg0: i32) -> (i32, i32, i32) {
    %c0_i32 = arith.constant 0 : i32
    %c0_i32_0 = arith.constant 0 : i32
    %c0_i32_1 = arith.constant 0 : i32
    return %arg0, %c0_i32, %c0_i32_0 : i32, i32, i32
  }
  func.func @transform_1(%arg0: i32) -> (i32, i32) {
    %c0_i32 = arith.constant 0 : i32
    %c0_i32_0 = arith.constant 0 : i32
    %c0_i32_1 = arith.constant 0 : i32
    return %c0_i32, %c0_i32_0 : i32, i32
  }
  func.func @transform_2(%arg0: i32) -> (i32, i32) {
    %c0_i32 = arith.constant 0 : i32
    %c0_i32_0 = arith.constant 0 : i32
    %c0_i32_1 = arith.constant 0 : i32
    return %c0_i32, %c0_i32_0 : i32, i32
  }
  func.func @transform_3(%arg0: i32) -> (i32, i32) {
    %c0_i32 = arith.constant 0 : i32
    %c0_i32_0 = arith.constant 0 : i32
    %c0_i32_1 = arith.constant 0 : i32
    return %c0_i32, %c0_i32_0 : i32, i32
  }
  func.func @transform_4(%arg0: i32) -> (i32, i32) {
    %c0_i32 = arith.constant 0 : i32
    %c0_i32_0 = arith.constant 0 : i32
    %c0_i32_1 = arith.constant 0 : i32
    return %c0_i32, %c0_i32_0 : i32, i32
  }
  func.func @transform_5(%arg0: i32) -> (i32, i32) {
    %c0_i32 = arith.constant 0 : i32
    %c0_i32_0 = arith.constant 0 : i32
    %c0_i32_1 = arith.constant 0 : i32
    return %c0_i32, %c0_i32_0 : i32, i32
  }
  func.func @transform_6(%arg0: i32) -> (i32, i32) {
    %c0_i32 = arith.constant 0 : i32
    %c0_i32_0 = arith.constant 0 : i32
    %c0_i32_1 = arith.constant 0 : i32
    return %c0_i32, %c0_i32_0 : i32, i32
  }
  func.func @transform_7(%arg0: i32) -> (i32, i32) {
    %c0_i32 = arith.constant 0 : i32
    %c0_i32_0 = arith.constant 0 : i32
    %c0_i32_1 = arith.constant 0 : i32
    return %c0_i32, %c0_i32_0 : i32, i32
  }
  func.func @transform_8(%arg0: i32) -> (i32, i32) {
    %c0_i32 = arith.constant 0 : i32
    %c0_i32_0 = arith.constant 0 : i32
    %c0_i32_1 = arith.constant 0 : i32
    return %c0_i32, %c0_i32_0 : i32, i32
  }
  func.func @transform_9(%arg0: i32) -> (i32, i32) {
    %c0_i32 = arith.constant 0 : i32
    %c0_i32_0 = arith.constant 0 : i32
    %c0_i32_1 = arith.constant 0 : i32
    return %c0_i32, %c0_i32_0 : i32, i32
  }
  func.func @transform_10(%arg0: i32) -> (i32, i32, i32) {
    %c0_i32 = arith.constant 0 : i32
    %c0_i32_0 = arith.constant 0 : i32
    %c0_i32_1 = arith.constant 0 : i32
    return %arg0, %c0_i32, %c0_i32_0 : i32, i32, i32
  }
}

</mosaic_0001>

<llo_original>
// kernel: tpu_custom_call.1
$region0: #{tpu_custom_call.1}
  #allocation0 [shape = 'u32[]', space=smem, size = 0x4, offset = 0x4, fixed_abs, tag = 'smem constant byte address 0x4 - core index']
  #allocation1 [shape = 'u32[144,128]{1,0:T(1,128)}', space=vmem, size = 0x12000, scoped, tag = 'internal scratch']
  #allocation2 [shape = 'f32[324,256]{1,0:T(8,128)}', space=vmem, size = 0x52000, scoped, tag = 'scratch operand']
  %s0 = inlined_call_operand.hbm [shape: f32[2,4,256], index: 0, kind: input, shape index: {}]
  %s1 = inlined_call_operand.hbm [shape: f32[81,256], index: 1, kind: input, shape index: {}]
  %s2 = inlined_call_operand.vmem [shape: f32[9,256], index: 2, kind: input, shape index: {}]
  %s3 = inlined_call_operand.hbm [shape: f32[25,256], index: 3, kind: input, shape index: {}]
  %s4 = inlined_call_operand.hbm [shape: f32[16,324], index: 4, kind: input, shape index: {}]
  %s5 = inlined_call_operand.vmem [shape: f32[16,1], index: 5, kind: input, shape index: {}]
  %s6 = inlined_call_operand.hbm [shape: f32[8,144], index: 6, kind: input, shape index: {}]
  %s7 = inlined_call_operand.vmem [shape: f32[8,1], index: 7, kind: input, shape index: {}]
  %s8 = inlined_call_operand.vmem [shape: f32[4,200], index: 8, kind: input, shape index: {}]
  %s9 = inlined_call_operand.vmem [shape: f32[4,1], index: 9, kind: input, shape index: {}]
  %s10 = inlined_call_operand.hbm [shape: f32[2,4,256], index: 10, kind: output, shape index: {}]
  %s11 = sld [smem:[#allocation0]]
  $region93: #{tpu_custom_call.1} parent=0
    _
  %s13 = ssub.s32 1, %s11
  %s14 = scalar_select 0, %s13, %s11
  $region1: #{tpu_custom_call.1} parent=0
    #allocation3 [shape = 'u8[8192]{0}', space=vmem, size = 0x2000, scoped, tag = 'input window, operand 0']
    #allocation4 [shape = 's32[2]{0}', space=sflag, size = 0x8, scoped, tag = 'scoped memory for tpu_custom_call.1']
    #allocation5 [shape = 's32[2]{0}', space=sflag, size = 0x8, scoped, tag = 'scoped memory for tpu_custom_call.1']
    #allocation6 [shape = 'u8[90112]{0}', space=vmem, size = 0x16000, scoped, tag = 'input window, operand 1, single buffered']
    #allocation7 [shape = 's32[1]{0}', space=sflag, size = 0x4, scoped, tag = 'scoped memory for tpu_custom_call.1']
    #allocation8 [shape = 'u8[32768]{0}', space=vmem, size = 0x8000, scoped, tag = 'input window, operand 3, single buffered']
    #allocation9 [shape = 'u8[24576]{0}', space=vmem, size = 0x6000, scoped, tag = 'input window, operand 4, single buffered']
    #allocation10 [shape = 's32[1]{0}', space=sflag, size = 0x4, scoped, tag = 'scoped memory for tpu_custom_call.1']
    #allocation11 [shape = 'u8[8192]{0}', space=vmem, size = 0x2000, scoped, tag = 'input window, operand 6, single buffered']
    #allocation12 [shape = 'u8[8192]{0}', space=vmem, size = 0x2000, scoped, tag = 'output window, operand 0']
    %15 = vsyncpa [#allocation4], 0
    %s16 = scalar_lea.sflag [#allocation4], 1
    %17 = vsyncpa %s16, 0
    %18 = vsyncpa [#allocation7], 0
    %19 = vsyncpa [#allocation10], 0
    %20 = vsyncpa [#allocation5], 0
    %s21 = scalar_lea.sflag [#allocation5], 1
    %22 = vsyncpa %s21, 0
    loop: start=0, step=1, limit=4
    $region2: #{tpu_custom_call.1} parent=1 // loop_pre_header
      _
    $region3: #{tpu_custom_call.1} parent=1 // loop_header
      %s24 = sphi 0, %s28
      %p25 = scmp.ge.s32.totalorder %s24, 4
      %s34 = sphi 0, %s36
      %s37 = sphi 0, %s34
      %s38 = sphi 0, %s37
      %s54 = sphi 0, %s38
      %s58 = sphi 0, %s58
      %s60 = sphi 0, %s58
      %s61 = sphi 0, %s60
      %s75 = sphi 0, %s61
      %s79 = sphi 0, %s79
      %s81 = sphi 0, %s79
      %s82 = sphi 0, %s81
      %s96 = sphi 0, %s82
      %s100 = sphi 0, %s100
      %s102 = sphi 0, %s100
      %s103 = sphi 0, %s102
      %s117 = sphi 0, %s103
      %s121 = sphi 0, %s121
      %s123 = sphi 0, %s121
      %s124 = sphi 0, %s123
      %s138 = sphi 0, %s124
      %s142 = sphi 0, %s142
      %s144 = sphi 0, %s142
      %s145 = sphi 0, %s144
      %s159 = sphi 0, %s145
      %s163 = sphi 0, %s163
      %s165 = sphi 0, %s163
      %s166 = sphi 0, %s165
      %s180 = sphi 0, %s166
      %s184 = sphi 0, %s184
      %s186 = sphi 0, %s184
      %s187 = sphi 0, %s186
      %s201 = sphi 0, %s187
      %s205 = sphi 0, %s205
      %s207 = sphi 0, %s205
      %s208 = sphi 0, %s207
      %s222 = sphi 0, %s208
      %s226 = sphi 0, %s226
      %s228 = sphi 0, %s226
      %s229 = sphi 0, %s228
      %s243 = sphi 0, %s229
      %s249 = sphi 0, %s251
      %s252 = sphi 0, %s249
      %s253 = sphi 0, %s252
      %s269 = sphi 0, %s253
    $region4: #{tpu_custom_call.1} parent=1 // loop_header_branch
      %27 = sbr.rel (%p25) target = $region8
    $region5: #{tpu_custom_call.1} parent=1 // loop_body
      %s29 = ssub.s32 %s24, 1
      %s30 = ssub.s32 %s24, 2
      %s31 = sadd.s32 %s24, 1
      %s32 = ssub.s32 %s24, %s31
      %p33 = scmp.eq.s32.totalorder %s32, 0
      %s35 = sadd.s32 %s34, 1
      %s36 = scalar_select %p33, %s34, %s35
      %p39 = pneg %p33
      %p40 = scmp.eq.s32.totalorder %s24, 1
      %p41 = por %p39, %p40
      %p42 = scmp.ne.s32.totalorder %s34, %s37
      %p43 = scmp.eq.s32.totalorder %s24, 0
      %p44 = por %p42, %p43
      %p45 = scmp.ne.s32.totalorder %s34, %s37
      %p46 = scmp.eq.s32.totalorder %s29, 1
      %p47 = por %p45, %p46
      %p48 = scmp.ne.s32.totalorder %s37, %s38
      %p49 = scmp.eq.s32.totalorder %s29, 0
      %p50 = por %p48, %p49
      %p51 = scmp.ne.s32.totalorder %s37, %s38
      %p52 = scmp.eq.s32.totalorder %s30, 1
      %p53 = por %p51, %p52
      %p55 = scmp.ne.s32.totalorder %s38, %s54
      %p56 = scmp.eq.s32.totalorder %s30, 0
      %p57 = por %p55, %p56
      %s59 = sadd.s32 %s58, 1
      %p62 = scmp.eq.s32.totalorder %s24, 1
      %p63 = scmp.ne.s32.totalorder %s58, %s60
      %p64 = scmp.eq.s32.totalorder %s24, 0
      %p65 = por %p63, %p64
      %p66 = scmp.ne.s32.totalorder %s58, %s60
      %p67 = scmp.eq.s32.totalorder %s29, 1
      %p68 = por %p66, %p67
      %p69 = scmp.ne.s32.totalorder %s60, %s61
      %p70 = scmp.eq.s32.totalorder %s29, 0
      %p71 = por %p69, %p70
      %p72 = scmp.ne.s32.totalorder %s60, %s61
      %p73 = scmp.eq.s32.totalorder %s30, 1
      %p74 = por %p72, %p73
      %p76 = scmp.ne.s32.totalorder %s61, %s75
      %p77 = scmp.eq.s32.totalorder %s30, 0
      %p78 = por %p76, %p77
      %s80 = sadd.s32 %s79, 1
      %p83 = scmp.eq.s32.totalorder %s24, 1
      %p84 = scmp.ne.s32.totalorder %s79, %s81
      %p85 = scmp.eq.s32.totalorder %s24, 0
      %p86 = por %p84, %p85
      %p87 = scmp.ne.s32.totalorder %s79, %s81
      %p88 = scmp.eq.s32.totalorder %s29, 1
      %p89 = por %p87, %p88
      %p90 = scmp.ne.s32.totalorder %s81, %s82
      %p91 = scmp.eq.s32.totalorder %s29, 0
      %p92 = por %p90, %p91
      %p93 = scmp.ne.s32.totalorder %s81, %s82
      %p94 = scmp.eq.s32.totalorder %s30, 1
      %p95 = por %p93, %p94
      %p97 = scmp.ne.s32.totalorder %s82, %s96
      %p98 = scmp.eq.s32.totalorder %s30, 0
      %p99 = por %p97, %p98
      %s101 = sadd.s32 %s100, 1
      %p104 = scmp.eq.s32.totalorder %s24, 1
      %p105 = scmp.ne.s32.totalorder %s100, %s102
      %p106 = scmp.eq.s32.totalorder %s24, 0
      %p107 = por %p105, %p106
      %p108 = scmp.ne.s32.totalorder %s100, %s102
      %p109 = scmp.eq.s32.totalorder %s29, 1
      %p110 = por %p108, %p109
      %p111 = scmp.ne.s32.totalorder %s102, %s103
      %p112 = scmp.eq.s32.totalorder %s29, 0
      %p113 = por %p111, %p112
      %p114 = scmp.ne.s32.totalorder %s102, %s103
      %p115 = scmp.eq.s32.totalorder %s30, 1
      %p116 = por %p114, %p115
      %p118 = scmp.ne.s32.totalorder %s103, %s117
      %p119 = scmp.eq.s32.totalorder %s30, 0
      %p120 = por %p118, %p119
      %s122 = sadd.s32 %s121, 1
      %p125 = scmp.eq.s32.totalorder %s24, 1
      %p126 = scmp.ne.s32.totalorder %s121, %s123
      %p127 = scmp.eq.s32.totalorder %s24, 0
      %p128 = por %p126, %p127
      %p129 = scmp.ne.s32.totalorder %s121, %s123
      %p130 = scmp.eq.s32.totalorder %s29, 1
      %p131 = por %p129, %p130
      %p132 = scmp.ne.s32.totalorder %s123, %s124
      %p133 = scmp.eq.s32.totalorder %s29, 0
      %p134 = por %p132, %p133
      %p135 = scmp.ne.s32.totalorder %s123, %s124
      %p136 = scmp.eq.s32.totalorder %s30, 1
      %p137 = por %p135, %p136
      %p139 = scmp.ne.s32.totalorder %s124, %s138
      %p140 = scmp.eq.s32.totalorder %s30, 0
      %p141 = por %p139, %p140
      %s143 = sadd.s32 %s142, 1
      %p146 = scmp.eq.s32.totalorder %s24, 1
      %p147 = scmp.ne.s32.totalorder %s142, %s144
      %p148 = scmp.eq.s32.totalorder %s24, 0
      %p149 = por %p147, %p148
      %p150 = scmp.ne.s32.totalorder %s142, %s144
      %p151 = scmp.eq.s32.totalorder %s29, 1
      %p152 = por %p150, %p151
      %p153 = scmp.ne.s32.totalorder %s144, %s145
      %p154 = scmp.eq.s32.totalorder %s29, 0
      %p155 = por %p153, %p154
      %p156 = scmp.ne.s32.totalorder %s144, %s145
      %p157 = scmp.eq.s32.totalorder %s30, 1
      %p158 = por %p156, %p157
      %p160 = scmp.ne.s32.totalorder %s145, %s159
      %p161 = scmp.eq.s32.totalorder %s30, 0
      %p162 = por %p160, %p161
      %s164 = sadd.s32 %s163, 1
      %p167 = scmp.eq.s32.totalorder %s24, 1
      %p168 = scmp.ne.s32.totalorder %s163, %s165
      %p169 = scmp.eq.s32.totalorder %s24, 0
      %p170 = por %p168, %p169
      %p171 = scmp.ne.s32.totalorder %s163, %s165
      %p172 = scmp.eq.s32.totalorder %s29, 1
      %p173 = por %p171, %p172
      %p174 = scmp.ne.s32.totalorder %s165, %s166
      %p175 = scmp.eq.s32.totalorder %s29, 0
      %p176 = por %p174, %p175
      %p177 = scmp.ne.s32.totalorder %s165, %s166
      %p178 = scmp.eq.s32.totalorder %s30, 1
      %p179 = por %p177, %p178
      %p181 = scmp.ne.s32.totalorder %s166, %s180
      %p182 = scmp.eq.s32.totalorder %s30, 0
      %p183 = por %p181, %p182
      %s185 = sadd.s32 %s184, 1
      %p188 = scmp.eq.s32.totalorder %s24, 1
      %p189 = scmp.ne.s32.totalorder %s184, %s186
      %p190 = scmp.eq.s32.totalorder %s24, 0
      %p191 = por %p189, %p190
      %p192 = scmp.ne.s32.totalorder %s184, %s186
      %p193 = scmp.eq.s32.totalorder %s29, 1
      %p194 = por %p192, %p193
      %p195 = scmp.ne.s32.totalorder %s186, %s187
      %p196 = scmp.eq.s32.totalorder %s29, 0
      %p197 = por %p195, %p196
      %p198 = scmp.ne.s32.totalorder %s186, %s187
      %p199 = scmp.eq.s32.totalorder %s30, 1
      %p200 = por %p198, %p199
      %p202 = scmp.ne.s32.totalorder %s187, %s201
      %p203 = scmp.eq.s32.totalorder %s30, 0
      %p204 = por %p202, %p203
      %s206 = sadd.s32 %s205, 1
      %p209 = scmp.eq.s32.totalorder %s24, 1
      %p210 = scmp.ne.s32.totalorder %s205, %s207
      %p211 = scmp.eq.s32.totalorder %s24, 0
      %p212 = por %p210, %p211
      %p213 = scmp.ne.s32.totalorder %s205, %s207
      %p214 = scmp.eq.s32.totalorder %s29, 1
      %p215 = por %p213, %p214
      %p216 = scmp.ne.s32.totalorder %s207, %s208
      %p217 = scmp.eq.s32.totalorder %s29, 0
      %p218 = por %p216, %p217
      %p219 = scmp.ne.s32.totalorder %s207, %s208
      %p220 = scmp.eq.s32.totalorder %s30, 1
      %p221 = por %p219, %p220
      %p223 = scmp.ne.s32.totalorder %s208, %s222
      %p224 = scmp.eq.s32.totalorder %s30, 0
      %p225 = por %p223, %p224
      %s227 = sadd.s32 %s226, 1
      %p230 = scmp.eq.s32.totalorder %s24, 1
      %p231 = scmp.ne.s32.totalorder %s226, %s228
      %p232 = scmp.eq.s32.totalorder %s24, 0
      %p233 = por %p231, %p232
      %p234 = scmp.ne.s32.totalorder %s226, %s228
      %p235 = scmp.eq.s32.totalorder %s29, 1
      %p236 = por %p234, %p235
      %p237 = scmp.ne.s32.totalorder %s228, %s229
      %p238 = scmp.eq.s32.totalorder %s29, 0
      %p239 = por %p237, %p238
      %p240 = scmp.ne.s32.totalorder %s228, %s229
      %p241 = scmp.eq.s32.totalorder %s30, 1
      %p242 = por %p240, %p241
      %p244 = scmp.ne.s32.totalorder %s229, %s243
      %p245 = scmp.eq.s32.totalorder %s30, 0
      %p246 = por %p244, %p245
      %s247 = ssub.s32 %s24, %s31
      %p248 = scmp.eq.s32.totalorder %s247, 0
      %s250 = sadd.s32 %s249, 1
      %s251 = scalar_select %p248, %s249, %s250
      %p254 = pneg %p248
      %p255 = scmp.eq.s32.totalorder %s24, 1
      %p256 = por %p254, %p255
      %p257 = scmp.ne.s32.totalorder %s249, %s252
      %p258 = scmp.eq.s32.totalorder %s24, 0
      %p259 = por %p257, %p258
      %p260 = scmp.ne.s32.totalorder %s249, %s252
      %p261 = scmp.eq.s32.totalorder %s29, 1
      %p262 = por %p260, %p261
      %p263 = scmp.ne.s32.totalorder %s252, %s253
      %p264 = scmp.eq.s32.totalorder %s29, 0
      %p265 = por %p263, %p264
      %p266 = scmp.ne.s32.totalorder %s252, %s253
      %p267 = scmp.eq.s32.totalorder %s30, 1
      %p268 = por %p266, %p267
      %p270 = scmp.ne.s32.totalorder %s253, %s269
      %p271 = scmp.eq.s32.totalorder %s30, 0
      %p272 = por %p270, %p271
      %p273 = scmp.le.s32.totalorder 1, %s24
      %p274 = scmp.lt.s32.totalorder %s24, 3
      %p275 = pnand %p273, %p274
      %p276 = pneg %p275
      // Predicated region
      $region9: #{tpu_custom_call.1} parent=5 // pred_check
        _
      $region10: #{tpu_custom_call.1} parent=5 // pred_check_branch
        %278 = sbr.rel (%p275) target = $region12
      $region11: #{tpu_custom_call.1} parent=5 // pred_region
        %s279 = ssub.s32 %s24, 1
        // Predicated region
        $region13: #{tpu_custom_call.1} parent=11 // pred_check
          %p280 = pneg %p71
        $region14: #{tpu_custom_call.1} parent=11 // pred_check_branch
          %282 = sbr.rel (%p280) target = $region16
        $region15: #{tpu_custom_call.1} parent=11 // pred_region
          %s284 = ssub.s32 2816, 2816
          %285 = vsyncadd [#allocation7], %s284
          %s286 = sshll.u32 [#allocation6], 4
          %s287 = int_to_ptr.vmem [resolvable:$true] %s286
          %292 = dma.hbm_to_vmem [thread:$0]  %s1, 2816, %s287, [#allocation7], 256, 256, 16
        $region16: #{tpu_custom_call.1} parent=11 // pred_fallthru
          _
        // Predicated region
        $region17: #{tpu_custom_call.1} parent=11 // pred_check
          %p293 = pneg %p92
        $region18: #{tpu_custom_call.1} parent=11 // pred_check_branch
          %295 = sbr.rel (%p293) target = $region20
        $region19: #{tpu_custom_call.1} parent=11 // pred_region
          _
        $region20: #{tpu_custom_call.1} parent=11 // pred_fallthru
          _
        // Predicated region
        $region21: #{tpu_custom_call.1} parent=11 // pred_check
          %p296 = pneg %p113
        $region22: #{tpu_custom_call.1} parent=11 // pred_check_branch
          %298 = sbr.rel (%p296) target = $region24
        $region23: #{tpu_custom_call.1} parent=11 // pred_region
          %s300 = ssub.s32 1024, 1024
          %301 = vsyncadd [#allocation7], %s300
          %s302 = sshll.u32 [#allocation8], 4
          %s303 = int_to_ptr.vmem [resolvable:$true] %s302
          %308 = dma.hbm_to_vmem [thread:$0]  %s3, 1024, %s303, [#allocation7], 256, 256, 16
        $region24: #{tpu_custom_call.1} parent=11 // pred_fallthru
          _
        // Predicated region
        $region25: #{tpu_custom_call.1} parent=11 // pred_check
          %p309 = pneg %p134
        $region26: #{tpu_custom_call.1} parent=11 // pred_check_branch
          %311 = sbr.rel (%p309) target = $region28
        $region27: #{tpu_custom_call.1} parent=11 // pred_region
          %s313 = ssub.s32 768, 768
          %314 = vsyncadd [#allocation10], %s313
          %s315 = sshll.u32 [#allocation9], 4
          %s316 = int_to_ptr.vmem [resolvable:$true] %s315
          %321 = dma.hbm_to_vmem [thread:$0]  %s4, 768, %s316, [#allocation10], 384, 384, 24
        $region28: #{tpu_custom_call.1} parent=11 // pred_fallthru
          _
        // Predicated region
        $region29: #{tpu_custom_call.1} parent=11 // pred_check
          %p322 = pneg %p155
        $region30: #{tpu_custom_call.1} parent=11 // pred_check_branch
          %324 = sbr.rel (%p322) target = $region32
        $region31: #{tpu_custom_call.1} parent=11 // pred_region
          _
        $region32: #{tpu_custom_call.1} parent=11 // pred_fallthru
          _
        // Predicated region
        $region33: #{tpu_custom_call.1} parent=11 // pred_check
          %p325 = pneg %p176
        $region34: #{tpu_custom_call.1} parent=11 // pred_check_branch
          %327 = sbr.rel (%p325) target = $region36
        $region35: #{tpu_custom_call.1} parent=11 // pred_region
          %s329 = ssub.s32 256, 256
          %330 = vsyncadd [#allocation10], %s329
          %s332 = sshll.u32 [#allocation11], 4
          %s333 = int_to_ptr.vmem [resolvable:$true] %s332
          %335 = dma.hbm_to_vmem [thread:$0]  %s6, 256, %s333, [#allocation10]
        $region36: #{tpu_custom_call.1} parent=11 // pred_fallthru
          _
        // Predicated region
        $region37: #{tpu_custom_call.1} parent=11 // pred_check
          %p336 = pneg %p197
        $region38: #{tpu_custom_call.1} parent=11 // pred_check_branch
          %338 = sbr.rel (%p336) target = $region40
        $region39: #{tpu_custom_call.1} parent=11 // pred_region
          _
        $region40: #{tpu_custom_call.1} parent=11 // pred_fallthru
          _
        // Predicated region
        $region41: #{tpu_custom_call.1} parent=11 // pred_check
          %p339 = pneg %p218
        $region42: #{tpu_custom_call.1} parent=11 // pred_check_branch
          %341 = sbr.rel (%p339) target = $region44
        $region43: #{tpu_custom_call.1} parent=11 // pred_region
          _
        $region44: #{tpu_custom_call.1} parent=11 // pred_fallthru
          _
        // Predicated region
        $region45: #{tpu_custom_call.1} parent=11 // pred_check
          %p342 = pneg %p239
        $region46: #{tpu_custom_call.1} parent=11 // pred_check_branch
          %344 = sbr.rel (%p342) target = $region48
        $region47: #{tpu_custom_call.1} parent=11 // pred_region
          _
        $region48: #{tpu_custom_call.1} parent=11 // pred_fallthru
          _
      $region12: #{tpu_custom_call.1} parent=5 // pred_fallthru
        _
      %p345 = scmp.lt.s32.totalorder %s24, 2
      // Predicated region
      $region49: #{tpu_custom_call.1} parent=5 // pred_check
        %p346 = pneg %p345
      $region50: #{tpu_custom_call.1} parent=5 // pred_check_branch
        %348 = sbr.rel (%p346) target = $region52
      $region51: #{tpu_custom_call.1} parent=5 // pred_region
        // Predicated region
        $region53: #{tpu_custom_call.1} parent=51 // pred_check
          %p349 = pneg %p44
        $region54: #{tpu_custom_call.1} parent=51 // pred_check_branch
          %351 = sbr.rel (%p349) target = $region56
        $region55: #{tpu_custom_call.1} parent=51 // pred_region
          %s352 = sand.u32 %s34, 1
          %s353 = scalar_lea.sflag [#allocation4], %s352
          %s354 = sand.u32 %s34, 1
          %s355 = smul.addr %s354, 8
          %s356 = scalar_lea.vmem [#allocation3], %s355
          %s358 = ssub.s32 128, 128
          %359 = vsyncadd %s353, %s358
          %s360 = smul.addr %s24, 2
          %s361 = smul.addr %s360, 64
          %s362 = scalar_lea.hbm %s0, %s361
          %s364 = sshll.u32 %s356, 4
          %s365 = int_to_ptr.vmem [resolvable:$true] %s364
          %367 = dma.hbm_to_vmem [thread:$0]  %s362, 128, %s365, %s353
        $region56: #{tpu_custom_call.1} parent=51 // pred_fallthru
          _
      $region52: #{tpu_custom_call.1} parent=5 // pred_fallthru
        _
      %p368 = scmp.le.s32.totalorder 1, %s24
      %p369 = scmp.lt.s32.totalorder %s24, 3
      %p370 = pnand %p368, %p369
      %p371 = pneg %p370
      // Predicated region
      $region57: #{tpu_custom_call.1} parent=5 // pred_check
        _
      $region58: #{tpu_custom_call.1} parent=5 // pred_check_branch
        %373 = sbr.rel (%p370) target = $region60
      $region59: #{tpu_custom_call.1} parent=5 // pred_region
        %s374 = ssub.s32 %s24, 1
        %s375 = sand.u32 %s37, 1
        %s376 = scalar_lea.sflag [#allocation4], %s375
        %s377 = sand.u32 %s37, 1
        %s378 = smul.addr %s377, 8
        %s379 = scalar_lea.vmem [#allocation3], %s378
        // Predicated region
        $region61: #{tpu_custom_call.1} parent=59 // pred_check
          %p380 = pneg %p50
        $region62: #{tpu_custom_call.1} parent=59 // pred_check_branch
          %382 = sbr.rel (%p380) target = $region64
        $region63: #{tpu_custom_call.1} parent=59 // pred_region
          %383 = dma.done %s376, 128
        $region64: #{tpu_custom_call.1} parent=59 // pred_fallthru
          _
        // Predicated region
        $region65: #{tpu_custom_call.1} parent=59 // pred_check
          %p384 = pneg %p71
        $region66: #{tpu_custom_call.1} parent=59 // pred_check_branch
          %386 = sbr.rel (%p384) target = $region68
        $region67: #{tpu_custom_call.1} parent=59 // pred_region
          %387 = dma.done [#allocation7], 2816
        $region68: #{tpu_custom_call.1} parent=59 // pred_fallthru
          _
        // Predicated region
        $region69: #{tpu_custom_call.1} parent=59 // pred_check
          %p388 = pneg %p113
        $region70: #{tpu_custom_call.1} parent=59 // pred_check_branch
          %390 = sbr.rel (%p388) target = $region72
        $region71: #{tpu_custom_call.1} parent=59 // pred_region
          %391 = dma.done [#allocation7], 1024
        $region72: #{tpu_custom_call.1} parent=59 // pred_fallthru
          _
        // Predicated region
        $region73: #{tpu_custom_call.1} parent=59 // pred_check
          %p392 = pneg %p134
        $region74: #{tpu_custom_call.1} parent=59 // pred_check_branch
          %394 = sbr.rel (%p392) target = $region76
        $region75: #{tpu_custom_call.1} parent=59 // pred_region
          %395 = dma.done [#allocation10], 768
        $region76: #{tpu_custom_call.1} parent=59 // pred_fallthru
          _
        // Predicated region
        $region77: #{tpu_custom_call.1} parent=59 // pred_check
          %p396 = pneg %p176
        $region78: #{tpu_custom_call.1} parent=59 // pred_check_branch
          %398 = sbr.rel (%p396) target = $region80
        $region79: #{tpu_custom_call.1} parent=59 // pred_region
          %399 = dma.done [#allocation10], 256
        $region80: #{tpu_custom_call.1} parent=59 // pred_fallthru
          _
        %s400 = sand.u32 %s37, 1
        %s401 = scalar_lea.sflag [#allocation4], %s400
        %s402 = sand.u32 %s37, 1
        %s403 = smul.addr %s402, 8
        %s404 = scalar_lea.vmem [#allocation3], %s403
        %p405 = pneg %p50
        %p406 = pneg %p47
        %p407 = pneg %p71
        %p408 = pneg %p68
        %p409 = pneg %p92
        %p410 = pneg %p89
        %p411 = pneg %p113
        %p412 = pneg %p110
        %p413 = pneg %p134
        %p414 = pneg %p131
        %p415 = pneg %p155
        %p416 = pneg %p152
        %p417 = pneg %p176
        %p418 = pneg %p173
        %p419 = pneg %p197
        %p420 = pneg %p194
        %p421 = pneg %p218
        %p422 = pneg %p215
        %p423 = pneg %p239
        %p424 = pneg %p236
        %p425 = pneg %p265
        %p426 = pneg %p262
        %s427 = sand.u32 %s252, 1
        %s428 = scalar_lea.sflag [#allocation5], %s427
        %s429 = sand.u32 %s252, 1
        %s430 = smul.addr %s429, 8
        %s431 = scalar_lea.vmem [#allocation12], %s430
        %v432 = vld [vmem:[%s379] sm:$0xff]
        %v434 = vcombine.high %v432, %v432
        %436 = vrot.lane.b32.xlu0 %v432, 68
        %v437 = vpop.permute.xlu0 %436
        %438 = vrot.lane.b32.xlu0 %v434, 68
        %v439 = vpop.permute.xlu0 %438
        %v440 = vlaneseq
        %v441 = vand.u32 %v440, 127
        %vm442 = vcmp.lt.s32.totalorder %v441, 68
        %v443 = vsel %vm442, %v437, %v439
        %v444 = vsel %vm442, %v439, %v437
        %v445 = vld [vmem:[#allocation6] ss:$8 sm:$0x3]
        %v447 = vlaneseq
        %v448 = vshrl.u32 %v447, 7
        %v449 = vsub.s32 0, %v448
        %v450 = vrot.slane %v445, %v449
        %v451 = vlaneseq
        %v452 = vshrl.u32 %v451, 7
        %v453 = vsub.s32 1, %v452
        %v454 = vrot.slane %v445, %v453
        %v457 = vmul.f32 %v444, %v450
        %v458 = vmul.f32 %v443, %v454
        %459 = vst [vmem:[#allocation2] sm:$0xf] %v457
        %460 = vst [vmem:[#allocation2 + $0x8] sm:$0xf] %v458
        %461 = vrot.lane.b32.xlu0 %v432, 67
        %v462 = vpop.permute.xlu0 %461
        %463 = vrot.lane.b32.xlu0 %v434, 67
        %v464 = vpop.permute.xlu0 %463
        %vm465 = vcmp.lt.s32.totalorder %v441, 67
        %v466 = vsel %vm465, %v462, %v464
        %v467 = vsel %vm465, %v464, %v462
        %s468 = scalar_lea.vmem [#allocation6], 1
        %v469 = vld [vmem:[%s468] ss:$8 sm:$0x3]
        %v471 = vlaneseq
        %v472 = vshrl.u32 %v471, 7
        %v473 = vsub.s32 0, %v472
        %v474 = vrot.slane %v469, %v473
        %v475 = vlaneseq
        %v476 = vshrl.u32 %v475, 7
        %v477 = vsub.s32 1, %v476
        %v478 = vrot.slane %v469, %v477
        %v481 = vmul.f32 %v467, %v474
        %v482 = vmul.f32 %v466, %v478
        %v485 = vrot.slane %v481, 4
        %v486 = vrot.slane %v482, 4
        %489 = vst [vmem:[#allocation2] sm:$0xf0] %v485
        %490 = vst [vmem:[#allocation2 + $0x8] sm:$0xf0] %v486
        %491 = vrot.lane.b32.xlu0 %v432, 66
        %v492 = vpop.permute.xlu0 %491
        %493 = vrot.lane.b32.xlu0 %v434, 66
        %v494 = vpop.permute.xlu0 %493
        %vm495 = vcmp.lt.s32.totalorder %v441, 66
        %v496 = vsel %vm495, %v492, %v494
        %v497 = vsel %vm495, %v494, %v492
        %s498 = scalar_lea.vmem [#allocation6], 2
        %v499 = vld [vmem:[%s498] ss:$8 sm:$0x3]
        %v501 = vlaneseq
        %v502 = vshrl.u32 %v501, 7
        %v503 = vsub.s32 0, %v502
        %v504 = vrot.slane %v499, %v503
        %v505 = vlaneseq
        %v506 = vshrl.u32 %v505, 7
        %v507 = vsub.s32 1, %v506
        %v508 = vrot.slane %v499, %v507
        %v511 = vmul.f32 %v497, %v504
        %v512 = vmul.f32 %v496, %v508
        %513 = vst [vmem:[#allocation2 + $0x10] sm:$0xf] %v511
        %514 = vst [vmem:[#allocation2 + $0x18] sm:$0xf] %v512
        %515 = vrot.lane.b32.xlu0 %v432, 65
        %v516 = vpop.permute.xlu0 %515
        %517 = vrot.lane.b32.xlu0 %v434, 65
        %v518 = vpop.permute.xlu0 %517
        %vm519 = vcmp.lt.s32.totalorder %v441, 65
        %v520 = vsel %vm519, %v516, %v518
        %v521 = vsel %vm519, %v518, %v516
        %s522 = scalar_lea.vmem [#allocation6], 3
        %v523 = vld [vmem:[%s522] ss:$8 sm:$0x3]
        %v525 = vlaneseq
        %v526 = vshrl.u32 %v525, 7
        %v527 = vsub.s32 0, %v526
        %v528 = vrot.slane %v523, %v527
        %v529 = vlaneseq
        %v530 = vshrl.u32 %v529, 7
        %v531 = vsub.s32 1, %v530
        %v532 = vrot.slane %v523, %v531
        %v535 = vmul.f32 %v521, %v528
        %v536 = vmul.f32 %v520, %v532
        %v539 = vrot.slane %v535, 4
        %v540 = vrot.slane %v536, 4
        %543 = vst [vmem:[#allocation2 + $0x10] sm:$0xf0] %v539
        %544 = vst [vmem:[#allocation2 + $0x18] sm:$0xf0] %v540
        %545 = vrot.lane.b32.xlu0 %v432, 64
        %v546 = vpop.permute.xlu0 %545
        %547 = vrot.lane.b32.xlu0 %v434, 64
        %v548 = vpop.permute.xlu0 %547
        %vm549 = vcmp.lt.s32.totalorder %v441, 64
        %v550 = vsel %vm549, %v546, %v548
        %v551 = vsel %vm549, %v548, %v546
        %s552 = scalar_lea.vmem [#allocation6], 4
        %v553 = vld [vmem:[%s552] ss:$8 sm:$0x3]
        %v555 = vlaneseq
        %v556 = vshrl.u32 %v555, 7
        %v557 = vsub.s32 0, %v556
        %v558 = vrot.slane %v553, %v557
        %v559 = vlaneseq
        %v560 = vshrl.u32 %v559, 7
        %v561 = vsub.s32 1, %v560
        %v562 = vrot.slane %v553, %v561
        %v565 = vmul.f32 %v551, %v558
        %v566 = vmul.f32 %v550, %v562
        %567 = vst [vmem:[#allocation2 + $0x20] sm:$0xf] %v565
        %568 = vst [vmem:[#allocation2 + $0x28] sm:$0xf] %v566
        %569 = vrot.lane.b32.xlu0 %v432, 63
        %v570 = vpop.permute.xlu0 %569
        %571 = vrot.lane.b32.xlu0 %v434, 63
        %v572 = vpop.permute.xlu0 %571
        %vm573 = vcmp.lt.s32.totalorder %v441, 63
        %v574 = vsel %vm573, %v570, %v572
        %v575 = vsel %vm573, %v572, %v570
        %s576 = scalar_lea.vmem [#allocation6], 5
        %v577 = vld [vmem:[%s576] ss:$8 sm:$0x3]
        %v579 = vlaneseq
        %v580 = vshrl.u32 %v579, 7
        %v581 = vsub.s32 0, %v580
        %v582 = vrot.slane %v577, %v581
        %v583 = vlaneseq
        %v584 = vshrl.u32 %v583, 7
        %v585 = vsub.s32 1, %v584
        %v586 = vrot.slane %v577, %v585
        %v589 = vmul.f32 %v575, %v582
        %v590 = vmul.f32 %v574, %v586
        %v593 = vrot.slane %v589, 4
        %v594 = vrot.slane %v590, 4
        %597 = vst [vmem:[#allocation2 + $0x20] sm:$0xf0] %v593
        %598 = vst [vmem:[#allocation2 + $0x28] sm:$0xf0] %v594
        %599 = vrot.lane.b32.xlu0 %v432, 62
        %v600 = vpop.permute.xlu0 %599
        %601 = vrot.lane.b32.xlu0 %v434, 62
        %v602 = vpop.permute.xlu0 %601
        %vm603 = vcmp.lt.s32.totalorder %v441, 62
        %v604 = vsel %vm603, %v600, %v602
        %v605 = vsel %vm603, %v602, %v600
        %s606 = scalar_lea.vmem [#allocation6], 6
        %v607 = vld [vmem:[%s606] ss:$8 sm:$0x3]
        %v609 = vlaneseq
        %v610 = vshrl.u32 %v609, 7
        %v611 = vsub.s32 0, %v610
        %v612 = vrot.slane %v607, %v611
        %v613 = vlaneseq
        %v614 = vshrl.u32 %v613, 7
        %v615 = vsub.s32 1, %v614
        %v616 = vrot.slane %v607, %v615
        %v619 = vmul.f32 %v605, %v612
        %v620 = vmul.f32 %v604, %v616
        %621 = vst [vmem:[#allocation2 + $0x30] sm:$0xf] %v619
        %622 = vst [vmem:[#allocation2 + $0x38] sm:$0xf] %v620
        %623 = vrot.lane.b32.xlu0 %v432, 61
        %v624 = vpop.permute.xlu0 %623
        %625 = vrot.lane.b32.xlu0 %v434, 61
        %v626 = vpop.permute.xlu0 %625
        %vm627 = vcmp.lt.s32.totalorder %v441, 61
        %v628 = vsel %vm627, %v624, %v626
        %v629 = vsel %vm627, %v626, %v624
        %s630 = scalar_lea.vmem [#allocation6], 7
        %v631 = vld [vmem:[%s630] ss:$8 sm:$0x3]
        %v633 = vlaneseq
        %v634 = vshrl.u32 %v633, 7
        %v635 = vsub.s32 0, %v634
        %v636 = vrot.slane %v631, %v635
        %v637 = vlaneseq
        %v638 = vshrl.u32 %v637, 7
        %v639 = vsub.s32 1, %v638
        %v640 = vrot.slane %v631, %v639
        %v643 = vmul.f32 %v629, %v636
        %v644 = vmul.f32 %v628, %v640
        %v647 = vrot.slane %v643, 4
        %v648 = vrot.slane %v644, 4
        %651 = vst [vmem:[#allocation2 + $0x30] sm:$0xf0] %v647
        %652 = vst [vmem:[#allocation2 + $0x38] sm:$0xf0] %v648
        %653 = vrot.lane.b32.xlu0 %v432, 60
        %v654 = vpop.permute.xlu0 %653
        %655 = vrot.lane.b32.xlu0 %v434, 60
        %v656 = vpop.permute.xlu0 %655
        %vm657 = vcmp.lt.s32.totalorder %v441, 60
        %v658 = vsel %vm657, %v654, %v656
        %v659 = vsel %vm657, %v656, %v654
        %s660 = scalar_lea.vmem [#allocation6], 16
        %v661 = vld [vmem:[%s660] ss:$8 sm:$0x3]
        %v663 = vlaneseq
        %v664 = vshrl.u32 %v663, 7
        %v665 = vsub.s32 0, %v664
        %v666 = vrot.slane %v661, %v665
        %v667 = vlaneseq
        %v668 = vshrl.u32 %v667, 7
        %v669 = vsub.s32 1, %v668
        %v670 = vrot.slane %v661, %v669
        %v673 = vmul.f32 %v659, %v666
        %v674 = vmul.f32 %v658, %v670
        %675 = vst [vmem:[#allocation2 + $0x40] sm:$0xf] %v673
        %676 = vst [vmem:[#allocation2 + $0x48] sm:$0xf] %v674
        %677 = vrot.lane.b32.xlu0 %v432, 52
        %v678 = vpop.permute.xlu0 %677
        %679 = vrot.lane.b32.xlu0 %v434, 52
        %v680 = vpop.permute.xlu0 %679
        %vm681 = vcmp.lt.s32.totalorder %v441, 52
        %v682 = vsel %vm681, %v678, %v680
        %v683 = vsel %vm681, %v680, %v678
        %s684 = scalar_lea.vmem [#allocation6], 17
        %v685 = vld [vmem:[%s684] ss:$8 sm:$0x3]
        %v687 = vlaneseq
        %v688 = vshrl.u32 %v687, 7
        %v689 = vsub.s32 0, %v688
        %v690 = vrot.slane %v685, %v689
        %v691 = vlaneseq
        %v692 = vshrl.u32 %v691, 7
        %v693 = vsub.s32 1, %v692
        %v694 = vrot.slane %v685, %v693
        %v697 = vmul.f32 %v683, %v690
        %v698 = vmul.f32 %v682, %v694
        %v701 = vrot.slane %v697, 4
        %v702 = vrot.slane %v698, 4
        %705 = vst [vmem:[#allocation2 + $0x40] sm:$0xf0] %v701
        %706 = vst [vmem:[#allocation2 + $0x48] sm:$0xf0] %v702
        %707 = vrot.lane.b32.xlu0 %v432, 51
        %v708 = vpop.permute.xlu0 %707
        %709 = vrot.lane.b32.xlu0 %v434, 51
        %v710 = vpop.permute.xlu0 %709
        %vm711 = vcmp.lt.s32.totalorder %v441, 51
        %v712 = vsel %vm711, %v708, %v710
        %v713 = vsel %vm711, %v710, %v708
        %s714 = scalar_lea.vmem [#allocation6], 18
        %v715 = vld [vmem:[%s714] ss:$8 sm:$0x3]
        %v717 = vlaneseq
        %v718 = vshrl.u32 %v717, 7
        %v719 = vsub.s32 0, %v718
        %v720 = vrot.slane %v715, %v719
        %v721 = vlaneseq
        %v722 = vshrl.u32 %v721, 7
        %v723 = vsub.s32 1, %v722
        %v724 = vrot.slane %v715, %v723
        %v727 = vmul.f32 %v713, %v720
        %v728 = vmul.f32 %v712, %v724
        %729 = vst [vmem:[#allocation2 + $0x50] sm:$0xf] %v727
        %730 = vst [vmem:[#allocation2 + $0x58] sm:$0xf] %v728
        %731 = vrot.lane.b32.xlu0 %v432, 50
        %v732 = vpop.permute.xlu0 %731
        %733 = vrot.lane.b32.xlu0 %v434, 50
        %v734 = vpop.permute.xlu0 %733
        %vm735 = vcmp.lt.s32.totalorder %v441, 50
        %v736 = vsel %vm735, %v732, %v734
        %v737 = vsel %vm735, %v734, %v732
        %s738 = scalar_lea.vmem [#allocation6], 19
        %v739 = vld [vmem:[%s738] ss:$8 sm:$0x3]
        %v741 = vlaneseq
        %v742 = vshrl.u32 %v741, 7
        %v743 = vsub.s32 0, %v742
        %v744 = vrot.slane %v739, %v743
        %v745 = vlaneseq
        %v746 = vshrl.u32 %v745, 7
        %v747 = vsub.s32 1, %v746
        %v748 = vrot.slane %v739, %v747
        %v751 = vmul.f32 %v737, %v744
        %v752 = vmul.f32 %v736, %v748
        %v755 = vrot.slane %v751, 4
        %v756 = vrot.slane %v752, 4
        %759 = vst [vmem:[#allocation2 + $0x50] sm:$0xf0] %v755
        %760 = vst [vmem:[#allocation2 + $0x58] sm:$0xf0] %v756
        %761 = vrot.lane.b32.xlu0 %v432, 49
        %v762 = vpop.permute.xlu0 %761
        %763 = vrot.lane.b32.xlu0 %v434, 49
        %v764 = vpop.permute.xlu0 %763
        %vm765 = vcmp.lt.s32.totalorder %v441, 49
        %v766 = vsel %vm765, %v762, %v764
        %v767 = vsel %vm765, %v764, %v762
        %s768 = scalar_lea.vmem [#allocation6], 20
        %v769 = vld [vmem:[%s768] ss:$8 sm:$0x3]
        %v771 = vlaneseq
        %v772 = vshrl.u32 %v771, 7
        %v773 = vsub.s32 0, %v772
        %v774 = vrot.slane %v769, %v773
        %v775 = vlaneseq
        %v776 = vshrl.u32 %v775, 7
        %v777 = vsub.s32 1, %v776
        %v778 = vrot.slane %v769, %v777
        %v781 = vmul.f32 %v767, %v774
        %v782 = vmul.f32 %v766, %v778
        %783 = vst [vmem:[#allocation2 + $0x60] sm:$0xf] %v781
        %784 = vst [vmem:[#allocation2 + $0x68] sm:$0xf] %v782
        %785 = vrot.lane.b32.xlu0 %v432, 48
        %v786 = vpop.permute.xlu0 %785
        %787 = vrot.lane.b32.xlu0 %v434, 48
        %v788 = vpop.permute.xlu0 %787
        %vm789 = vcmp.lt.s32.totalorder %v441, 48
        %v790 = vsel %vm789, %v786, %v788
        %v791 = vsel %vm789, %v788, %v786
        %s792 = scalar_lea.vmem [#allocation6], 21
        %v793 = vld [vmem:[%s792] ss:$8 sm:$0x3]
        %v795 = vlaneseq
        %v796 = vshrl.u32 %v795, 7
        %v797 = vsub.s32 0, %v796
        %v798 = vrot.slane %v793, %v797
        %v799 = vlaneseq
        %v800 = vshrl.u32 %v799, 7
        %v801 = vsub.s32 1, %v800
        %v802 = vrot.slane %v793, %v801
        %v805 = vmul.f32 %v791, %v798
        %v806 = vmul.f32 %v790, %v802
        %v809 = vrot.slane %v805, 4
        %v810 = vrot.slane %v806, 4
        %813 = vst [vmem:[#allocation2 + $0x60] sm:$0xf0] %v809
        %814 = vst [vmem:[#allocation2 + $0x68] sm:$0xf0] %v810
        %815 = vrot.lane.b32.xlu0 %v432, 47
        %v816 = vpop.permute.xlu0 %815
        %817 = vrot.lane.b32.xlu0 %v434, 47
        %v818 = vpop.permute.xlu0 %817
        %vm819 = vcmp.lt.s32.totalorder %v441, 47
        %v820 = vsel %vm819, %v816, %v818
        %v821 = vsel %vm819, %v818, %v816
        %s822 = scalar_lea.vmem [#allocation6], 22
        %v823 = vld [vmem:[%s822] ss:$8 sm:$0x3]
        %v825 = vlaneseq
        %v826 = vshrl.u32 %v825, 7
        %v827 = vsub.s32 0, %v826
        %v828 = vrot.slane %v823, %v827
        %v829 = vlaneseq
        %v830 = vshrl.u32 %v829, 7
        %v831 = vsub.s32 1, %v830
        %v832 = vrot.slane %v823, %v831
        %v835 = vmul.f32 %v821, %v828
        %v836 = vmul.f32 %v820, %v832
        %837 = vst [vmem:[#allocation2 + $0x70] sm:$0xf] %v835
        %838 = vst [vmem:[#allocation2 + $0x78] sm:$0xf] %v836
        %839 = vrot.lane.b32.xlu0 %v432, 46
        %v840 = vpop.permute.xlu0 %839
        %841 = vrot.lane.b32.xlu0 %v434, 46
        %v842 = vpop.permute.xlu0 %841
        %vm843 = vcmp.lt.s32.totalorder %v441, 46
        %v844 = vsel %vm843, %v840, %v842
        %v845 = vsel %vm843, %v842, %v840
        %s846 = scalar_lea.vmem [#allocation6], 23
        %v847 = vld [vmem:[%s846] ss:$8 sm:$0x3]
        %v849 = vlaneseq
        %v850 = vshrl.u32 %v849, 7
        %v851 = vsub.s32 0, %v850
        %v852 = vrot.slane %v847, %v851
        %v853 = vlaneseq
        %v854 = vshrl.u32 %v853, 7
        %v855 = vsub.s32 1, %v854
        %v856 = vrot.slane %v847, %v855
        %v859 = vmul.f32 %v845, %v852
        %v860 = vmul.f32 %v844, %v856
        %v863 = vrot.slane %v859, 4
        %v864 = vrot.slane %v860, 4
        %867 = vst [vmem:[#allocation2 + $0x70] sm:$0xf0] %v863
        %868 = vst [vmem:[#allocation2 + $0x78] sm:$0xf0] %v864
        %869 = vrot.lane.b32.xlu0 %v432, 45
        %v870 = vpop.permute.xlu0 %869
        %871 = vrot.lane.b32.xlu0 %v434, 45
        %v872 = vpop.permute.xlu0 %871
        %vm873 = vcmp.lt.s32.totalorder %v441, 45
        %v874 = vsel %vm873, %v870, %v872
        %v875 = vsel %vm873, %v872, %v870
        %s876 = scalar_lea.vmem [#allocation6], 32
        %v877 = vld [vmem:[%s876] ss:$8 sm:$0x3]
        %v879 = vlaneseq
        %v880 = vshrl.u32 %v879, 7
        %v881 = vsub.s32 0, %v880
        %v882 = vrot.slane %v877, %v881
        %v883 = vlaneseq
        %v884 = vshrl.u32 %v883, 7
        %v885 = vsub.s32 1, %v884
        %v886 = vrot.slane %v877, %v885
        %v889 = vmul.f32 %v875, %v882
        %v890 = vmul.f32 %v874, %v886
        %891 = vst [vmem:[#allocation2 + $0x80] sm:$0xf] %v889
        %892 = vst [vmem:[#allocation2 + $0x88] sm:$0xf] %v890
        %893 = vrot.lane.b32.xlu0 %v432, 44
        %v894 = vpop.permute.xlu0 %893
        %895 = vrot.lane.b32.xlu0 %v434, 44
        %v896 = vpop.permute.xlu0 %895
        %vm897 = vcmp.lt.s32.totalorder %v441, 44
        %v898 = vsel %vm897, %v894, %v896
        %v899 = vsel %vm897, %v896, %v894
        %s900 = scalar_lea.vmem [#allocation6], 33
        %v901 = vld [vmem:[%s900] ss:$8 sm:$0x3]
        %v903 = vlaneseq
        %v904 = vshrl.u32 %v903, 7
        %v905 = vsub.s32 0, %v904
        %v906 = vrot.slane %v901, %v905
        %v907 = vlaneseq
        %v908 = vshrl.u32 %v907, 7
        %v909 = vsub.s32 1, %v908
        %v910 = vrot.slane %v901, %v909
        %v913 = vmul.f32 %v899, %v906
        %v914 = vmul.f32 %v898, %v910
        %v917 = vrot.slane %v913, 4
        %v918 = vrot.slane %v914, 4
        %921 = vst [vmem:[#allocation2 + $0x80] sm:$0xf0] %v917
        %922 = vst [vmem:[#allocation2 + $0x88] sm:$0xf0] %v918
        %923 = vrot.lane.b32.xlu0 %v432, 36
        %v924 = vpop.permute.xlu0 %923
        %925 = vrot.lane.b32.xlu0 %v434, 36
        %v926 = vpop.permute.xlu0 %925
        %vm927 = vcmp.lt.s32.totalorder %v441, 36
        %v928 = vsel %vm927, %v924, %v926
        %v929 = vsel %vm927, %v926, %v924
        %s930 = scalar_lea.vmem [#allocation6], 34
        %v931 = vld [vmem:[%s930] ss:$8 sm:$0x3]
        %v933 = vlaneseq
        %v934 = vshrl.u32 %v933, 7
        %v935 = vsub.s32 0, %v934
        %v936 = vrot.slane %v931, %v935
        %v937 = vlaneseq
        %v938 = vshrl.u32 %v937, 7
        %v939 = vsub.s32 1, %v938
        %v940 = vrot.slane %v931, %v939
        %v943 = vmul.f32 %v929, %v936
        %v944 = vmul.f32 %v928, %v940
        %945 = vst [vmem:[#allocation2 + $0x90] sm:$0xf] %v943
        %946 = vst [vmem:[#allocation2 + $0x98] sm:$0xf] %v944
        %947 = vrot.lane.b32.xlu0 %v432, 35
        %v948 = vpop.permute.xlu0 %947
        %949 = vrot.lane.b32.xlu0 %v434, 35
        %v950 = vpop.permute.xlu0 %949
        %vm951 = vcmp.lt.s32.totalorder %v441, 35
        %v952 = vsel %vm951, %v948, %v950
        %v953 = vsel %vm951, %v950, %v948
        %s954 = scalar_lea.vmem [#allocation6], 35
        %v955 = vld [vmem:[%s954] ss:$8 sm:$0x3]
        %v957 = vlaneseq
        %v958 = vshrl.u32 %v957, 7
        %v959 = vsub.s32 0, %v958
        %v960 = vrot.slane %v955, %v959
        %v961 = vlaneseq
        %v962 = vshrl.u32 %v961, 7
        %v963 = vsub.s32 1, %v962
        %v964 = vrot.slane %v955, %v963
        %v967 = vmul.f32 %v953, %v960
        %v968 = vmul.f32 %v952, %v964
        %v971 = vrot.slane %v967, 4
        %v972 = vrot.slane %v968, 4
        %975 = vst [vmem:[#allocation2 + $0x90] sm:$0xf0] %v971
        %976 = vst [vmem:[#allocation2 + $0x98] sm:$0xf0] %v972
        %977 = vrot.lane.b32.xlu0 %v432, 34
        %v978 = vpop.permute.xlu0 %977
        %979 = vrot.lane.b32.xlu0 %v434, 34
        %v980 = vpop.permute.xlu0 %979
        %vm981 = vcmp.lt.s32.totalorder %v441, 34
        %v982 = vsel %vm981, %v978, %v980
        %v983 = vsel %vm981, %v980, %v978
        %s984 = scalar_lea.vmem [#allocation6], 36
        %v985 = vld [vmem:[%s984] ss:$8 sm:$0x3]
        %v987 = vlaneseq
        %v988 = vshrl.u32 %v987, 7
        %v989 = vsub.s32 0, %v988
        %v990 = vrot.slane %v985, %v989
        %v991 = vlaneseq
        %v992 = vshrl.u32 %v991, 7
        %v993 = vsub.s32 1, %v992
        %v994 = vrot.slane %v985, %v993
        %v997 = vmul.f32 %v983, %v990
        %v998 = vmul.f32 %v982, %v994
        %999 = vst [vmem:[#allocation2 + $0xa0] sm:$0xf] %v997
        %1000 = vst [vmem:[#allocation2 + $0xa8] sm:$0xf] %v998
        %1001 = vrot.lane.b32.xlu0 %v432, 33
        %v1002 = vpop.permute.xlu0 %1001
        %1003 = vrot.lane.b32.xlu0 %v434, 33
        %v1004 = vpop.permute.xlu0 %1003
        %vm1005 = vcmp.lt.s32.totalorder %v441, 33
        %v1006 = vsel %vm1005, %v1002, %v1004
        %v1007 = vsel %vm1005, %v1004, %v1002
        %s1008 = scalar_lea.vmem [#allocation6], 37
        %v1009 = vld [vmem:[%s1008] ss:$8 sm:$0x3]
        %v1011 = vlaneseq
        %v1012 = vshrl.u32 %v1011, 7
        %v1013 = vsub.s32 0, %v1012
        %v1014 = vrot.slane %v1009, %v1013
        %v1015 = vlaneseq
        %v1016 = vshrl.u32 %v1015, 7
        %v1017 = vsub.s32 1, %v1016
        %v1018 = vrot.slane %v1009, %v1017
        %v1021 = vmul.f32 %v1007, %v1014
        %v1022 = vmul.f32 %v1006, %v1018
        %v1025 = vrot.slane %v1021, 4
        %v1026 = vrot.slane %v1022, 4
        %1029 = vst [vmem:[#allocation2 + $0xa0] sm:$0xf0] %v1025
        %1030 = vst [vmem:[#allocation2 + $0xa8] sm:$0xf0] %v1026
        %1031 = vrot.lane.b32.xlu0 %v432, 32
        %v1032 = vpop.permute.xlu0 %1031
        %1033 = vrot.lane.b32.xlu0 %v434, 32
        %v1034 = vpop.permute.xlu0 %1033
        %vm1035 = vcmp.lt.s32.totalorder %v441, 32
        %v1036 = vsel %vm1035, %v1032, %v1034
        %v1037 = vsel %vm1035, %v1034, %v1032
        %s1038 = scalar_lea.vmem [#allocation6], 38
        %v1039 = vld [vmem:[%s1038] ss:$8 sm:$0x3]
        %v1041 = vlaneseq
        %v1042 = vshrl.u32 %v1041, 7
        %v1043 = vsub.s32 0, %v1042
        %v1044 = vrot.slane %v1039, %v1043
        %v1045 = vlaneseq
        %v1046 = vshrl.u32 %v1045, 7
        %v1047 = vsub.s32 1, %v1046
        %v1048 = vrot.slane %v1039, %v1047
        %v1051 = vmul.f32 %v1037, %v1044
        %v1052 = vmul.f32 %v1036, %v1048
        %1053 = vst [vmem:[#allocation2 + $0xb0] sm:$0xf] %v1051
        %1054 = vst [vmem:[#allocation2 + $0xb8] sm:$0xf] %v1052
        %1055 = vrot.lane.b32.xlu0 %v432, 31
        %v1056 = vpop.permute.xlu0 %1055
        %1057 = vrot.lane.b32.xlu0 %v434, 31
        %v1058 = vpop.permute.xlu0 %1057
        %vm1059 = vcmp.lt.s32.totalorder %v441, 31
        %v1060 = vsel %vm1059, %v1056, %v1058
        %v1061 = vsel %vm1059, %v1058, %v1056
        %s1062 = scalar_lea.vmem [#allocation6], 39
        %v1063 = vld [vmem:[%s1062] ss:$8 sm:$0x3]
        %v1065 = vlaneseq
        %v1066 = vshrl.u32 %v1065, 7
        %v1067 = vsub.s32 0, %v1066
        %v1068 = vrot.slane %v1063, %v1067
        %v1069 = vlaneseq
        %v1070 = vshrl.u32 %v1069, 7
        %v1071 = vsub.s32 1, %v1070
        %v1072 = vrot.slane %v1063, %v1071
        %v1075 = vmul.f32 %v1061, %v1068
        %v1076 = vmul.f32 %v1060, %v1072
        %v1079 = vrot.slane %v1075, 4
        %v1080 = vrot.slane %v1076, 4
        %1083 = vst [vmem:[#allocation2 + $0xb0] sm:$0xf0] %v1079
        %1084 = vst [vmem:[#allocation2 + $0xb8] sm:$0xf0] %v1080
        %1085 = vrot.lane.b32.xlu0 %v432, 30
        %v1086 = vpop.permute.xlu0 %1085
        %1087 = vrot.lane.b32.xlu0 %v434, 30
        %v1088 = vpop.permute.xlu0 %1087
        %vm1089 = vcmp.lt.s32.totalorder %v441, 30
        %v1090 = vsel %vm1089, %v1086, %v1088
        %v1091 = vsel %vm1089, %v1088, %v1086
        %s1092 = scalar_lea.vmem [#allocation6], 48
        %v1093 = vld [vmem:[%s1092] ss:$8 sm:$0x3]
        %v1095 = vlaneseq
        %v1096 = vshrl.u32 %v1095, 7
        %v1097 = vsub.s32 0, %v1096
        %v1098 = vrot.slane %v1093, %v1097
        %v1099 = vlaneseq
        %v1100 = vshrl.u32 %v1099, 7
        %v1101 = vsub.s32 1, %v1100
        %v1102 = vrot.slane %v1093, %v1101
        %v1105 = vmul.f32 %v1091, %v1098
        %v1106 = vmul.f32 %v1090, %v1102
        %1107 = vst [vmem:[#allocation2 + $0xc0] sm:$0xf] %v1105
        %1108 = vst [vmem:[#allocation2 + $0xc8] sm:$0xf] %v1106
        %1109 = vrot.lane.b32.xlu0 %v432, 29
        %v1110 = vpop.permute.xlu0 %1109
        %1111 = vrot.lane.b32.xlu0 %v434, 29
        %v1112 = vpop.permute.xlu0 %1111
        %vm1113 = vcmp.lt.s32.totalorder %v441, 29
        %v1114 = vsel %vm1113, %v1110, %v1112
        %v1115 = vsel %vm1113, %v1112, %v1110
        %s1116 = scalar_lea.vmem [#allocation6], 49
        %v1117 = vld [vmem:[%s1116] ss:$8 sm:$0x3]
        %v1119 = vlaneseq
        %v1120 = vshrl.u32 %v1119, 7
        %v1121 = vsub.s32 0, %v1120
        %v1122 = vrot.slane %v1117, %v1121
        %v1123 = vlaneseq
        %v1124 = vshrl.u32 %v1123, 7
        %v1125 = vsub.s32 1, %v1124
        %v1126 = vrot.slane %v1117, %v1125
        %v1129 = vmul.f32 %v1115, %v1122
        %v1130 = vmul.f32 %v1114, %v1126
        %v1133 = vrot.slane %v1129, 4
        %v1134 = vrot.slane %v1130, 4
        %1137 = vst [vmem:[#allocation2 + $0xc0] sm:$0xf0] %v1133
        %1138 = vst [vmem:[#allocation2 + $0xc8] sm:$0xf0] %v1134
        %1139 = vrot.lane.b32.xlu0 %v432, 28
        %v1140 = vpop.permute.xlu0 %1139
        %1141 = vrot.lane.b32.xlu0 %v434, 28
        %v1142 = vpop.permute.xlu0 %1141
        %vm1143 = vcmp.lt.s32.totalorder %v441, 28
        %v1144 = vsel %vm1143, %v1140, %v1142
        %v1145 = vsel %vm1143, %v1142, %v1140
        %s1146 = scalar_lea.vmem [#allocation6], 50
        %v1147 = vld [vmem:[%s1146] ss:$8 sm:$0x3]
        %v1149 = vlaneseq
        %v1150 = vshrl.u32 %v1149, 7
        %v1151 = vsub.s32 0, %v1150
        %v1152 = vrot.slane %v1147, %v1151
        %v1153 = vlaneseq
        %v1154 = vshrl.u32 %v1153, 7
        %v1155 = vsub.s32 1, %v1154
        %v1156 = vrot.slane %v1147, %v1155
        %v1159 = vmul.f32 %v1145, %v1152
        %v1160 = vmul.f32 %v1144, %v1156
        %1161 = vst [vmem:[#allocation2 + $0xd0] sm:$0xf] %v1159
        %1162 = vst [vmem:[#allocation2 + $0xd8] sm:$0xf] %v1160
        %1163 = vrot.lane.b32.xlu0 %v432, 20
        %v1164 = vpop.permute.xlu0 %1163
        %1165 = vrot.lane.b32.xlu0 %v434, 20
        %v1166 = vpop.permute.xlu0 %1165
        %vm1167 = vcmp.lt.s32.totalorder %v441, 20
        %v1168 = vsel %vm1167, %v1164, %v1166
        %v1169 = vsel %vm1167, %v1166, %v1164
        %s1170 = scalar_lea.vmem [#allocation6], 51
        %v1171 = vld [vmem:[%s1170] ss:$8 sm:$0x3]
        %v1173 = vlaneseq
        %v1174 = vshrl.u32 %v1173, 7
        %v1175 = vsub.s32 0, %v1174
        %v1176 = vrot.slane %v1171, %v1175
        %v1177 = vlaneseq
        %v1178 = vshrl.u32 %v1177, 7
        %v1179 = vsub.s32 1, %v1178
        %v1180 = vrot.slane %v1171, %v1179
        %v1183 = vmul.f32 %v1169, %v1176
        %v1184 = vmul.f32 %v1168, %v1180
        %v1187 = vrot.slane %v1183, 4
        %v1188 = vrot.slane %v1184, 4
        %1191 = vst [vmem:[#allocation2 + $0xd0] sm:$0xf0] %v1187
        %1192 = vst [vmem:[#allocation2 + $0xd8] sm:$0xf0] %v1188
        %1193 = vrot.lane.b32.xlu0 %v432, 19
        %v1194 = vpop.permute.xlu0 %1193
        %1195 = vrot.lane.b32.xlu0 %v434, 19
        %v1196 = vpop.permute.xlu0 %1195
        %vm1197 = vcmp.lt.s32.totalorder %v441, 19
        %v1198 = vsel %vm1197, %v1194, %v1196
        %v1199 = vsel %vm1197, %v1196, %v1194
        %s1200 = scalar_lea.vmem [#allocation6], 52
        %v1201 = vld [vmem:[%s1200] ss:$8 sm:$0x3]
        %v1203 = vlaneseq
        %v1204 = vshrl.u32 %v1203, 7
        %v1205 = vsub.s32 0, %v1204
        %v1206 = vrot.slane %v1201, %v1205
        %v1207 = vlaneseq
        %v1208 = vshrl.u32 %v1207, 7
        %v1209 = vsub.s32 1, %v1208
        %v1210 = vrot.slane %v1201, %v1209
        %v1213 = vmul.f32 %v1199, %v1206
        %v1214 = vmul.f32 %v1198, %v1210
        %1215 = vst [vmem:[#allocation2 + $0xe0] sm:$0xf] %v1213
        %1216 = vst [vmem:[#allocation2 + $0xe8] sm:$0xf] %v1214
        %1217 = vrot.lane.b32.xlu0 %v432, 18
        %v1218 = vpop.permute.xlu0 %1217
        %1219 = vrot.lane.b32.xlu0 %v434, 18
        %v1220 = vpop.permute.xlu0 %1219
        %vm1221 = vcmp.lt.s32.totalorder %v441, 18
        %v1222 = vsel %vm1221, %v1218, %v1220
        %v1223 = vsel %vm1221, %v1220, %v1218
        %s1224 = scalar_lea.vmem [#allocation6], 53
        %v1225 = vld [vmem:[%s1224] ss:$8 sm:$0x3]
        %v1227 = vlaneseq
        %v1228 = vshrl.u32 %v1227, 7
        %v1229 = vsub.s32 0, %v1228
        %v1230 = vrot.slane %v1225, %v1229
        %v1231 = vlaneseq
        %v1232 = vshrl.u32 %v1231, 7
        %v1233 = vsub.s32 1, %v1232
        %v1234 = vrot.slane %v1225, %v1233
        %v1237 = vmul.f32 %v1223, %v1230
        %v1238 = vmul.f32 %v1222, %v1234
        %v1241 = vrot.slane %v1237, 4
        %v1242 = vrot.slane %v1238, 4
        %1245 = vst [vmem:[#allocation2 + $0xe0] sm:$0xf0] %v1241
        %1246 = vst [vmem:[#allocation2 + $0xe8] sm:$0xf0] %v1242
        %1247 = vrot.lane.b32.xlu0 %v432, 17
        %v1248 = vpop.permute.xlu0 %1247
        %1249 = vrot.lane.b32.xlu0 %v434, 17
        %v1250 = vpop.permute.xlu0 %1249
        %vm1251 = vcmp.lt.s32.totalorder %v441, 17
        %v1252 = vsel %vm1251, %v1248, %v1250
        %v1253 = vsel %vm1251, %v1250, %v1248
        %s1254 = scalar_lea.vmem [#allocation6], 54
        %v1255 = vld [vmem:[%s1254] ss:$8 sm:$0x3]
        %v1257 = vlaneseq
        %v1258 = vshrl.u32 %v1257, 7
        %v1259 = vsub.s32 0, %v1258
        %v1260 = vrot.slane %v1255, %v1259
        %v1261 = vlaneseq
        %v1262 = vshrl.u32 %v1261, 7
        %v1263 = vsub.s32 1, %v1262
        %v1264 = vrot.slane %v1255, %v1263
        %v1267 = vmul.f32 %v1253, %v1260
        %v1268 = vmul.f32 %v1252, %v1264
        %1269 = vst [vmem:[#allocation2 + $0xf0] sm:$0xf] %v1267
        %1270 = vst [vmem:[#allocation2 + $0xf8] sm:$0xf] %v1268
        %1271 = vrot.lane.b32.xlu0 %v432, 16
        %v1272 = vpop.permute.xlu0 %1271
        %1273 = vrot.lane.b32.xlu0 %v434, 16
        %v1274 = vpop.permute.xlu0 %1273
        %vm1275 = vcmp.lt.s32.totalorder %v441, 16
        %v1276 = vsel %vm1275, %v1272, %v1274
        %v1277 = vsel %vm1275, %v1274, %v1272
        %s1278 = scalar_lea.vmem [#allocation6], 55
        %v1279 = vld [vmem:[%s1278] ss:$8 sm:$0x3]
        %v1281 = vlaneseq
        %v1282 = vshrl.u32 %v1281, 7
        %v1283 = vsub.s32 0, %v1282
        %v1284 = vrot.slane %v1279, %v1283
        %v1285 = vlaneseq
        %v1286 = vshrl.u32 %v1285, 7
        %v1287 = vsub.s32 1, %v1286
        %v1288 = vrot.slane %v1279, %v1287
        %v1291 = vmul.f32 %v1277, %v1284
        %v1292 = vmul.f32 %v1276, %v1288
        %v1295 = vrot.slane %v1291, 4
        %v1296 = vrot.slane %v1292, 4
        %1299 = vst [vmem:[#allocation2 + $0xf0] sm:$0xf0] %v1295
        %1300 = vst [vmem:[#allocation2 + $0xf8] sm:$0xf0] %v1296
        %1301 = vrot.lane.b32.xlu0 %v432, 15
        %v1302 = vpop.permute.xlu0 %1301
        %1303 = vrot.lane.b32.xlu0 %v434, 15
        %v1304 = vpop.permute.xlu0 %1303
        %vm1305 = vcmp.lt.s32.totalorder %v441, 15
        %v1306 = vsel %vm1305, %v1302, %v1304
        %v1307 = vsel %vm1305, %v1304, %v1302
        %s1308 = scalar_lea.vmem [#allocation6], 64
        %v1309 = vld [vmem:[%s1308] ss:$8 sm:$0x3]
        %v1311 = vlaneseq
        %v1312 = vshrl.u32 %v1311, 7
        %v1313 = vsub.s32 0, %v1312
        %v1314 = vrot.slane %v1309, %v1313
        %v1315 = vlaneseq
        %v1316 = vshrl.u32 %v1315, 7
        %v1317 = vsub.s32 1, %v1316
        %v1318 = vrot.slane %v1309, %v1317
        %v1321 = vmul.f32 %v1307, %v1314
        %v1322 = vmul.f32 %v1306, %v1318
        %1323 = vst [vmem:[#allocation2 + $0x100] sm:$0xf] %v1321
        %1324 = vst [vmem:[#allocation2 + $0x108] sm:$0xf] %v1322
        %1325 = vrot.lane.b32.xlu0 %v432, 14
        %v1326 = vpop.permute.xlu0 %1325
        %1327 = vrot.lane.b32.xlu0 %v434, 14
        %v1328 = vpop.permute.xlu0 %1327
        %vm1329 = vcmp.lt.s32.totalorder %v441, 14
        %v1330 = vsel %vm1329, %v1326, %v1328
        %v1331 = vsel %vm1329, %v1328, %v1326
        %s1332 = scalar_lea.vmem [#allocation6], 65
        %v1333 = vld [vmem:[%s1332] ss:$8 sm:$0x3]
        %v1335 = vlaneseq
        %v1336 = vshrl.u32 %v1335, 7
        %v1337 = vsub.s32 0, %v1336
        %v1338 = vrot.slane %v1333, %v1337
        %v1339 = vlaneseq
        %v1340 = vshrl.u32 %v1339, 7
        %v1341 = vsub.s32 1, %v1340
        %v1342 = vrot.slane %v1333, %v1341
        %v1345 = vmul.f32 %v1331, %v1338
        %v1346 = vmul.f32 %v1330, %v1342
        %v1349 = vrot.slane %v1345, 4
        %v1350 = vrot.slane %v1346, 4
        %1353 = vst [vmem:[#allocation2 + $0x100] sm:$0xf0] %v1349
        %1354 = vst [vmem:[#allocation2 + $0x108] sm:$0xf0] %v1350
        %1355 = vrot.lane.b32.xlu0 %v432, 13
        %v1356 = vpop.permute.xlu0 %1355
        %1357 = vrot.lane.b32.xlu0 %v434, 13
        %v1358 = vpop.permute.xlu0 %1357
        %vm1359 = vcmp.lt.s32.totalorder %v441, 13
        %v1360 = vsel %vm1359, %v1356, %v1358
        %v1361 = vsel %vm1359, %v1358, %v1356
        %s1362 = scalar_lea.vmem [#allocation6], 66
        %v1363 = vld [vmem:[%s1362] ss:$8 sm:$0x3]
        %v1365 = vlaneseq
        %v1366 = vshrl.u32 %v1365, 7
        %v1367 = vsub.s32 0, %v1366
        %v1368 = vrot.slane %v1363, %v1367
        %v1369 = vlaneseq
        %v1370 = vshrl.u32 %v1369, 7
        %v1371 = vsub.s32 1, %v1370
        %v1372 = vrot.slane %v1363, %v1371
        %v1375 = vmul.f32 %v1361, %v1368
        %v1376 = vmul.f32 %v1360, %v1372
        %1377 = vst [vmem:[#allocation2 + $0x110] sm:$0xf] %v1375
        %1378 = vst [vmem:[#allocation2 + $0x118] sm:$0xf] %v1376
        %1379 = vrot.lane.b32.xlu0 %v432, 12
        %v1380 = vpop.permute.xlu0 %1379
        %1381 = vrot.lane.b32.xlu0 %v434, 12
        %v1382 = vpop.permute.xlu0 %1381
        %vm1383 = vcmp.lt.s32.totalorder %v441, 12
        %v1384 = vsel %vm1383, %v1380, %v1382
        %v1385 = vsel %vm1383, %v1382, %v1380
        %s1386 = scalar_lea.vmem [#allocation6], 67
        %v1387 = vld [vmem:[%s1386] ss:$8 sm:$0x3]
        %v1389 = vlaneseq
        %v1390 = vshrl.u32 %v1389, 7
        %v1391 = vsub.s32 0, %v1390
        %v1392 = vrot.slane %v1387, %v1391
        %v1393 = vlaneseq
        %v1394 = vshrl.u32 %v1393, 7
        %v1395 = vsub.s32 1, %v1394
        %v1396 = vrot.slane %v1387, %v1395
        %v1399 = vmul.f32 %v1385, %v1392
        %v1400 = vmul.f32 %v1384, %v1396
        %v1403 = vrot.slane %v1399, 4
        %v1404 = vrot.slane %v1400, 4
        %1407 = vst [vmem:[#allocation2 + $0x110] sm:$0xf0] %v1403
        %1408 = vst [vmem:[#allocation2 + $0x118] sm:$0xf0] %v1404
        %1409 = vrot.lane.b32.xlu0 %v432, 4
        %v1410 = vpop.permute.xlu0 %1409
        %1411 = vrot.lane.b32.xlu0 %v434, 4
        %v1412 = vpop.permute.xlu0 %1411
        %vm1413 = vcmp.lt.s32.totalorder %v441, 4
        %v1414 = vsel %vm1413, %v1410, %v1412
        %v1415 = vsel %vm1413, %v1412, %v1410
        %s1416 = scalar_lea.vmem [#allocation6], 68
        %v1417 = vld [vmem:[%s1416] ss:$8 sm:$0x3]
        %v1419 = vlaneseq
        %v1420 = vshrl.u32 %v1419, 7
        %v1421 = vsub.s32 0, %v1420
        %v1422 = vrot.slane %v1417, %v1421
        %v1423 = vlaneseq
        %v1424 = vshrl.u32 %v1423, 7
        %v1425 = vsub.s32 1, %v1424
        %v1426 = vrot.slane %v1417, %v1425
        %v1429 = vmul.f32 %v1415, %v1422
        %v1430 = vmul.f32 %v1414, %v1426
        %1431 = vst [vmem:[#allocation2 + $0x120] sm:$0xf] %v1429
        %1432 = vst [vmem:[#allocation2 + $0x128] sm:$0xf] %v1430
        %1433 = vrot.lane.b32.xlu0 %v432, 3
        %v1434 = vpop.permute.xlu0 %1433
        %1435 = vrot.lane.b32.xlu0 %v434, 3
        %v1436 = vpop.permute.xlu0 %1435
        %vm1437 = vcmp.lt.s32.totalorder %v441, 3
        %v1438 = vsel %vm1437, %v1434, %v1436
        %v1439 = vsel %vm1437, %v1436, %v1434
        %s1440 = scalar_lea.vmem [#allocation6], 69
        %v1441 = vld [vmem:[%s1440] ss:$8 sm:$0x3]
        %v1443 = vlaneseq
        %v1444 = vshrl.u32 %v1443, 7
        %v1445 = vsub.s32 0, %v1444
        %v1446 = vrot.slane %v1441, %v1445
        %v1447 = vlaneseq
        %v1448 = vshrl.u32 %v1447, 7
        %v1449 = vsub.s32 1, %v1448
        %v1450 = vrot.slane %v1441, %v1449
        %v1453 = vmul.f32 %v1439, %v1446
        %v1454 = vmul.f32 %v1438, %v1450
        %v1457 = vrot.slane %v1453, 4
        %v1458 = vrot.slane %v1454, 4
        %1461 = vst [vmem:[#allocation2 + $0x120] sm:$0xf0] %v1457
        %1462 = vst [vmem:[#allocation2 + $0x128] sm:$0xf0] %v1458
        %1463 = vrot.lane.b32.xlu0 %v432, 2
        %v1464 = vpop.permute.xlu0 %1463
        %1465 = vrot.lane.b32.xlu0 %v434, 2
        %v1466 = vpop.permute.xlu0 %1465
        %vm1467 = vcmp.lt.s32.totalorder %v441, 2
        %v1468 = vsel %vm1467, %v1464, %v1466
        %v1469 = vsel %vm1467, %v1466, %v1464
        %s1470 = scalar_lea.vmem [#allocation6], 70
        %v1471 = vld [vmem:[%s1470] ss:$8 sm:$0x3]
        %v1473 = vlaneseq
        %v1474 = vshrl.u32 %v1473, 7
        %v1475 = vsub.s32 0, %v1474
        %v1476 = vrot.slane %v1471, %v1475
        %v1477 = vlaneseq
        %v1478 = vshrl.u32 %v1477, 7
        %v1479 = vsub.s32 1, %v1478
        %v1480 = vrot.slane %v1471, %v1479
        %v1483 = vmul.f32 %v1469, %v1476
        %v1484 = vmul.f32 %v1468, %v1480
        %1485 = vst [vmem:[#allocation2 + $0x130] sm:$0xf] %v1483
        %1486 = vst [vmem:[#allocation2 + $0x138] sm:$0xf] %v1484
        %1487 = vrot.lane.b32.xlu0 %v432, 1
        %v1488 = vpop.permute.xlu0 %1487
        %1489 = vrot.lane.b32.xlu0 %v434, 1
        %v1490 = vpop.permute.xlu0 %1489
        %vm1491 = vcmp.lt.s32.totalorder %v441, 1
        %v1492 = vsel %vm1491, %v1488, %v1490
        %v1493 = vsel %vm1491, %v1490, %v1488
        %s1494 = scalar_lea.vmem [#allocation6], 71
        %v1495 = vld [vmem:[%s1494] ss:$8 sm:$0x3]
        %v1497 = vlaneseq
        %v1498 = vshrl.u32 %v1497, 7
        %v1499 = vsub.s32 0, %v1498
        %v1500 = vrot.slane %v1495, %v1499
        %v1501 = vlaneseq
        %v1502 = vshrl.u32 %v1501, 7
        %v1503 = vsub.s32 1, %v1502
        %v1504 = vrot.slane %v1495, %v1503
        %v1507 = vmul.f32 %v1493, %v1500
        %v1508 = vmul.f32 %v1492, %v1504
        %v1511 = vrot.slane %v1507, 4
        %v1512 = vrot.slane %v1508, 4
        %1515 = vst [vmem:[#allocation2 + $0x130] sm:$0xf0] %v1511
        %1516 = vst [vmem:[#allocation2 + $0x138] sm:$0xf0] %v1512
        %1517 = vst [vmem:[#allocation2 + $0x140] sm:$0xf] %v432
        %1518 = vst [vmem:[#allocation2 + $0x148] sm:$0xf] %v434
        %1519 = vrot.lane.b32.xlu0 %v432, 127
        %v1520 = vpop.permute.xlu0 %1519
        %1521 = vrot.lane.b32.xlu0 %v434, 127
        %v1522 = vpop.permute.xlu0 %1521
        %vm1523 = vcmp.lt.s32.totalorder %v441, 127
        %v1524 = vsel %vm1523, %v1520, %v1522
        %v1525 = vsel %vm1523, %v1522, %v1520
        %s1526 = scalar_lea.vmem [#allocation6], 81
        %v1527 = vld [vmem:[%s1526] ss:$8 sm:$0x3]
        %v1529 = vlaneseq
        %v1530 = vshrl.u32 %v1529, 7
        %v1531 = vsub.s32 0, %v1530
        %v1532 = vrot.slane %v1527, %v1531
        %v1533 = vlaneseq
        %v1534 = vshrl.u32 %v1533, 7
        %v1535 = vsub.s32 1, %v1534
        %v1536 = vrot.slane %v1527, %v1535
        %v1539 = vmul.f32 %v1524, %v1532
        %v1540 = vmul.f32 %v1525, %v1536
        %v1543 = vrot.slane %v1539, 4
        %v1544 = vrot.slane %v1540, 4
        %1547 = vst [vmem:[#allocation2 + $0x140] sm:$0xf0] %v1543
        %1548 = vst [vmem:[#allocation2 + $0x148] sm:$0xf0] %v1544
        %1549 = vrot.lane.b32.xlu0 %v432, 126
        %v1550 = vpop.permute.xlu0 %1549
        %1551 = vrot.lane.b32.xlu0 %v434, 126
        %v1552 = vpop.permute.xlu0 %1551
        %vm1553 = vcmp.lt.s32.totalorder %v441, 126
        %v1554 = vsel %vm1553, %v1550, %v1552
        %v1555 = vsel %vm1553, %v1552, %v1550
        %s1556 = scalar_lea.vmem [#allocation6], 82
        %v1557 = vld [vmem:[%s1556] ss:$8 sm:$0x3]
        %v1559 = vlaneseq
        %v1560 = vshrl.u32 %v1559, 7
        %v1561 = vsub.s32 0, %v1560
        %v1562 = vrot.slane %v1557, %v1561
        %v1563 = vlaneseq
        %v1564 = vshrl.u32 %v1563, 7
        %v1565 = vsub.s32 1, %v1564
        %v1566 = vrot.slane %v1557, %v1565
        %v1569 = vmul.f32 %v1554, %v1562
        %v1570 = vmul.f32 %v1555, %v1566
        %1571 = vst [vmem:[#allocation2 + $0x150] sm:$0xf] %v1569
        %1572 = vst [vmem:[#allocation2 + $0x158] sm:$0xf] %v1570
        %1573 = vrot.lane.b32.xlu0 %v432, 125
        %v1574 = vpop.permute.xlu0 %1573
        %1575 = vrot.lane.b32.xlu0 %v434, 125
        %v1576 = vpop.permute.xlu0 %1575
        %vm1577 = vcmp.lt.s32.totalorder %v441, 125
        %v1578 = vsel %vm1577, %v1574, %v1576
        %v1579 = vsel %vm1577, %v1576, %v1574
        %s1580 = scalar_lea.vmem [#allocation6], 83
        %v1581 = vld [vmem:[%s1580] ss:$8 sm:$0x3]
        %v1583 = vlaneseq
        %v1584 = vshrl.u32 %v1583, 7
        %v1585 = vsub.s32 0, %v1584
        %v1586 = vrot.slane %v1581, %v1585
        %v1587 = vlaneseq
        %v1588 = vshrl.u32 %v1587, 7
        %v1589 = vsub.s32 1, %v1588
        %v1590 = vrot.slane %v1581, %v1589
        %v1593 = vmul.f32 %v1578, %v1586
        %v1594 = vmul.f32 %v1579, %v1590
        %v1597 = vrot.slane %v1593, 4
        %v1598 = vrot.slane %v1594, 4
        %1601 = vst [vmem:[#allocation2 + $0x150] sm:$0xf0] %v1597
        %1602 = vst [vmem:[#allocation2 + $0x158] sm:$0xf0] %v1598
        %1603 = vrot.lane.b32.xlu0 %v432, 124
        %v1604 = vpop.permute.xlu0 %1603
        %1605 = vrot.lane.b32.xlu0 %v434, 124
        %v1606 = vpop.permute.xlu0 %1605
        %vm1607 = vcmp.lt.s32.totalorder %v441, 124
        %v1608 = vsel %vm1607, %v1604, %v1606
        %v1609 = vsel %vm1607, %v1606, %v1604
        %s1610 = scalar_lea.vmem [#allocation6], 84
        %v1611 = vld [vmem:[%s1610] ss:$8 sm:$0x3]
        %v1613 = vlaneseq
        %v1614 = vshrl.u32 %v1613, 7
        %v1615 = vsub.s32 0, %v1614
        %v1616 = vrot.slane %v1611, %v1615
        %v1617 = vlaneseq
        %v1618 = vshrl.u32 %v1617, 7
        %v1619 = vsub.s32 1, %v1618
        %v1620 = vrot.slane %v1611, %v1619
        %v1623 = vmul.f32 %v1608, %v1616
        %v1624 = vmul.f32 %v1609, %v1620
        %1625 = vst [vmem:[#allocation2 + $0x160] sm:$0xf] %v1623
        %1626 = vst [vmem:[#allocation2 + $0x168] sm:$0xf] %v1624
        %1627 = vrot.lane.b32.xlu0 %v432, 116
        %v1628 = vpop.permute.xlu0 %1627
        %1629 = vrot.lane.b32.xlu0 %v434, 116
        %v1630 = vpop.permute.xlu0 %1629
        %vm1631 = vcmp.lt.s32.totalorder %v441, 116
        %v1632 = vsel %vm1631, %v1628, %v1630
        %v1633 = vsel %vm1631, %v1630, %v1628
        %s1634 = scalar_lea.vmem [#allocation6], 85
        %v1635 = vld [vmem:[%s1634] ss:$8 sm:$0x3]
        %v1637 = vlaneseq
        %v1638 = vshrl.u32 %v1637, 7
        %v1639 = vsub.s32 0, %v1638
        %v1640 = vrot.slane %v1635, %v1639
        %v1641 = vlaneseq
        %v1642 = vshrl.u32 %v1641, 7
        %v1643 = vsub.s32 1, %v1642
        %v1644 = vrot.slane %v1635, %v1643
        %v1647 = vmul.f32 %v1632, %v1640
        %v1648 = vmul.f32 %v1633, %v1644
        %v1651 = vrot.slane %v1647, 4
        %v1652 = vrot.slane %v1648, 4
        %1655 = vst [vmem:[#allocation2 + $0x160] sm:$0xf0] %v1651
        %1656 = vst [vmem:[#allocation2 + $0x168] sm:$0xf0] %v1652
        %1657 = vrot.lane.b32.xlu0 %v432, 115
        %v1658 = vpop.permute.xlu0 %1657
        %1659 = vrot.lane.b32.xlu0 %v434, 115
        %v1660 = vpop.permute.xlu0 %1659
        %vm1661 = vcmp.lt.s32.totalorder %v441, 115
        %v1662 = vsel %vm1661, %v1658, %v1660
        %v1663 = vsel %vm1661, %v1660, %v1658
        %s1664 = scalar_lea.vmem [#allocation6], 86
        %v1665 = vld [vmem:[%s1664] ss:$8 sm:$0x3]
        %v1667 = vlaneseq
        %v1668 = vshrl.u32 %v1667, 7
        %v1669 = vsub.s32 0, %v1668
        %v1670 = vrot.slane %v1665, %v1669
        %v1671 = vlaneseq
        %v1672 = vshrl.u32 %v1671, 7
        %v1673 = vsub.s32 1, %v1672
        %v1674 = vrot.slane %v1665, %v1673
        %v1677 = vmul.f32 %v1662, %v1670
        %v1678 = vmul.f32 %v1663, %v1674
        %1679 = vst [vmem:[#allocation2 + $0x170] sm:$0xf] %v1677
        %1680 = vst [vmem:[#allocation2 + $0x178] sm:$0xf] %v1678
        %1681 = vrot.lane.b32.xlu0 %v432, 114
        %v1682 = vpop.permute.xlu0 %1681
        %1683 = vrot.lane.b32.xlu0 %v434, 114
        %v1684 = vpop.permute.xlu0 %1683
        %vm1685 = vcmp.lt.s32.totalorder %v441, 114
        %v1686 = vsel %vm1685, %v1682, %v1684
        %v1687 = vsel %vm1685, %v1684, %v1682
        %s1688 = scalar_lea.vmem [#allocation6], 87
        %v1689 = vld [vmem:[%s1688] ss:$8 sm:$0x3]
        %v1691 = vlaneseq
        %v1692 = vshrl.u32 %v1691, 7
        %v1693 = vsub.s32 0, %v1692
        %v1694 = vrot.slane %v1689, %v1693
        %v1695 = vlaneseq
        %v1696 = vshrl.u32 %v1695, 7
        %v1697 = vsub.s32 1, %v1696
        %v1698 = vrot.slane %v1689, %v1697
        %v1701 = vmul.f32 %v1686, %v1694
        %v1702 = vmul.f32 %v1687, %v1698
        %v1705 = vrot.slane %v1701, 4
        %v1706 = vrot.slane %v1702, 4
        %1709 = vst [vmem:[#allocation2 + $0x170] sm:$0xf0] %v1705
        %1710 = vst [vmem:[#allocation2 + $0x178] sm:$0xf0] %v1706
        %1711 = vrot.lane.b32.xlu0 %v432, 113
        %v1712 = vpop.permute.xlu0 %1711
        %1713 = vrot.lane.b32.xlu0 %v434, 113
        %v1714 = vpop.permute.xlu0 %1713
        %vm1715 = vcmp.lt.s32.totalorder %v441, 113
        %v1716 = vsel %vm1715, %v1712, %v1714
        %v1717 = vsel %vm1715, %v1714, %v1712
        %s1718 = scalar_lea.vmem [#allocation6], 96
        %v1719 = vld [vmem:[%s1718] ss:$8 sm:$0x3]
        %v1721 = vlaneseq
        %v1722 = vshrl.u32 %v1721, 7
        %v1723 = vsub.s32 0, %v1722
        %v1724 = vrot.slane %v1719, %v1723
        %v1725 = vlaneseq
        %v1726 = vshrl.u32 %v1725, 7
        %v1727 = vsub.s32 1, %v1726
        %v1728 = vrot.slane %v1719, %v1727
        %v1731 = vmul.f32 %v1716, %v1724
        %v1732 = vmul.f32 %v1717, %v1728
        %1733 = vst [vmem:[#allocation2 + $0x180] sm:$0xf] %v1731
        %1734 = vst [vmem:[#allocation2 + $0x188] sm:$0xf] %v1732
        %1735 = vrot.lane.b32.xlu0 %v432, 112
        %v1736 = vpop.permute.xlu0 %1735
        %1737 = vrot.lane.b32.xlu0 %v434, 112
        %v1738 = vpop.permute.xlu0 %1737
        %vm1739 = vcmp.lt.s32.totalorder %v441, 112
        %v1740 = vsel %vm1739, %v1736, %v1738
        %v1741 = vsel %vm1739, %v1738, %v1736
        %s1742 = scalar_lea.vmem [#allocation6], 97
        %v1743 = vld [vmem:[%s1742] ss:$8 sm:$0x3]
        %v1745 = vlaneseq
        %v1746 = vshrl.u32 %v1745, 7
        %v1747 = vsub.s32 0, %v1746
        %v1748 = vrot.slane %v1743, %v1747
        %v1749 = vlaneseq
        %v1750 = vshrl.u32 %v1749, 7
        %v1751 = vsub.s32 1, %v1750
        %v1752 = vrot.slane %v1743, %v1751
        %v1755 = vmul.f32 %v1740, %v1748
        %v1756 = vmul.f32 %v1741, %v1752
        %v1759 = vrot.slane %v1755, 4
        %v1760 = vrot.slane %v1756, 4
        %1763 = vst [vmem:[#allocation2 + $0x180] sm:$0xf0] %v1759
        %1764 = vst [vmem:[#allocation2 + $0x188] sm:$0xf0] %v1760
        %1765 = vrot.lane.b32.xlu0 %v432, 111
        %v1766 = vpop.permute.xlu0 %1765
        %1767 = vrot.lane.b32.xlu0 %v434, 111
        %v1768 = vpop.permute.xlu0 %1767
        %vm1769 = vcmp.lt.s32.totalorder %v441, 111
        %v1770 = vsel %vm1769, %v1766, %v1768
        %v1771 = vsel %vm1769, %v1768, %v1766
        %s1772 = scalar_lea.vmem [#allocation6], 98
        %v1773 = vld [vmem:[%s1772] ss:$8 sm:$0x3]
        %v1775 = vlaneseq
        %v1776 = vshrl.u32 %v1775, 7
        %v1777 = vsub.s32 0, %v1776
        %v1778 = vrot.slane %v1773, %v1777
        %v1779 = vlaneseq
        %v1780 = vshrl.u32 %v1779, 7
        %v1781 = vsub.s32 1, %v1780
        %v1782 = vrot.slane %v1773, %v1781
        %v1785 = vmul.f32 %v1770, %v1778
        %v1786 = vmul.f32 %v1771, %v1782
        %1787 = vst [vmem:[#allocation2 + $0x190] sm:$0xf] %v1785
        %1788 = vst [vmem:[#allocation2 + $0x198] sm:$0xf] %v1786
        %1789 = vrot.lane.b32.xlu0 %v432, 110
        %v1790 = vpop.permute.xlu0 %1789
        %1791 = vrot.lane.b32.xlu0 %v434, 110
        %v1792 = vpop.permute.xlu0 %1791
        %vm1793 = vcmp.lt.s32.totalorder %v441, 110
        %v1794 = vsel %vm1793, %v1790, %v1792
        %v1795 = vsel %vm1793, %v1792, %v1790
        %s1796 = scalar_lea.vmem [#allocation6], 99
        %v1797 = vld [vmem:[%s1796] ss:$8 sm:$0x3]
        %v1799 = vlaneseq
        %v1800 = vshrl.u32 %v1799, 7
        %v1801 = vsub.s32 0, %v1800
        %v1802 = vrot.slane %v1797, %v1801
        %v1803 = vlaneseq
        %v1804 = vshrl.u32 %v1803, 7
        %v1805 = vsub.s32 1, %v1804
        %v1806 = vrot.slane %v1797, %v1805
        %v1809 = vmul.f32 %v1794, %v1802
        %v1810 = vmul.f32 %v1795, %v1806
        %v1813 = vrot.slane %v1809, 4
        %v1814 = vrot.slane %v1810, 4
        %1817 = vst [vmem:[#allocation2 + $0x190] sm:$0xf0] %v1813
        %1818 = vst [vmem:[#allocation2 + $0x198] sm:$0xf0] %v1814
        %1819 = vrot.lane.b32.xlu0 %v432, 109
        %v1820 = vpop.permute.xlu0 %1819
        %1821 = vrot.lane.b32.xlu0 %v434, 109
        %v1822 = vpop.permute.xlu0 %1821
        %vm1823 = vcmp.lt.s32.totalorder %v441, 109
        %v1824 = vsel %vm1823, %v1820, %v1822
        %v1825 = vsel %vm1823, %v1822, %v1820
        %s1826 = scalar_lea.vmem [#allocation6], 100
        %v1827 = vld [vmem:[%s1826] ss:$8 sm:$0x3]
        %v1829 = vlaneseq
        %v1830 = vshrl.u32 %v1829, 7
        %v1831 = vsub.s32 0, %v1830
        %v1832 = vrot.slane %v1827, %v1831
        %v1833 = vlaneseq
        %v1834 = vshrl.u32 %v1833, 7
        %v1835 = vsub.s32 1, %v1834
        %v1836 = vrot.slane %v1827, %v1835
        %v1839 = vmul.f32 %v1824, %v1832
        %v1840 = vmul.f32 %v1825, %v1836
        %1841 = vst [vmem:[#allocation2 + $0x1a0] sm:$0xf] %v1839
        %1842 = vst [vmem:[#allocation2 + $0x1a8] sm:$0xf] %v1840
        %1843 = vrot.lane.b32.xlu0 %v432, 108
        %v1844 = vpop.permute.xlu0 %1843
        %1845 = vrot.lane.b32.xlu0 %v434, 108
        %v1846 = vpop.permute.xlu0 %1845
        %vm1847 = vcmp.lt.s32.totalorder %v441, 108
        %v1848 = vsel %vm1847, %v1844, %v1846
        %v1849 = vsel %vm1847, %v1846, %v1844
        %s1850 = scalar_lea.vmem [#allocation6], 101
        %v1851 = vld [vmem:[%s1850] ss:$8 sm:$0x3]
        %v1853 = vlaneseq
        %v1854 = vshrl.u32 %v1853, 7
        %v1855 = vsub.s32 0, %v1854
        %v1856 = vrot.slane %v1851, %v1855
        %v1857 = vlaneseq
        %v1858 = vshrl.u32 %v1857, 7
        %v1859 = vsub.s32 1, %v1858
        %v1860 = vrot.slane %v1851, %v1859
        %v1863 = vmul.f32 %v1848, %v1856
        %v1864 = vmul.f32 %v1849, %v1860
        %v1867 = vrot.slane %v1863, 4
        %v1868 = vrot.slane %v1864, 4
        %1871 = vst [vmem:[#allocation2 + $0x1a0] sm:$0xf0] %v1867
        %1872 = vst [vmem:[#allocation2 + $0x1a8] sm:$0xf0] %v1868
        %1873 = vrot.lane.b32.xlu0 %v432, 100
        %v1874 = vpop.permute.xlu0 %1873
        %1875 = vrot.lane.b32.xlu0 %v434, 100
        %v1876 = vpop.permute.xlu0 %1875
        %vm1877 = vcmp.lt.s32.totalorder %v441, 100
        %v1878 = vsel %vm1877, %v1874, %v1876
        %v1879 = vsel %vm1877, %v1876, %v1874
        %s1880 = scalar_lea.vmem [#allocation6], 102
        %v1881 = vld [vmem:[%s1880] ss:$8 sm:$0x3]
        %v1883 = vlaneseq
        %v1884 = vshrl.u32 %v1883, 7
        %v1885 = vsub.s32 0, %v1884
        %v1886 = vrot.slane %v1881, %v1885
        %v1887 = vlaneseq
        %v1888 = vshrl.u32 %v1887, 7
        %v1889 = vsub.s32 1, %v1888
        %v1890 = vrot.slane %v1881, %v1889
        %v1893 = vmul.f32 %v1878, %v1886
        %v1894 = vmul.f32 %v1879, %v1890
        %1895 = vst [vmem:[#allocation2 + $0x1b0] sm:$0xf] %v1893
        %1896 = vst [vmem:[#allocation2 + $0x1b8] sm:$0xf] %v1894
        %1897 = vrot.lane.b32.xlu0 %v432, 99
        %v1898 = vpop.permute.xlu0 %1897
        %1899 = vrot.lane.b32.xlu0 %v434, 99
        %v1900 = vpop.permute.xlu0 %1899
        %vm1901 = vcmp.lt.s32.totalorder %v441, 99
        %v1902 = vsel %vm1901, %v1898, %v1900
        %v1903 = vsel %vm1901, %v1900, %v1898
        %s1904 = scalar_lea.vmem [#allocation6], 103
        %v1905 = vld [vmem:[%s1904] ss:$8 sm:$0x3]
        %v1907 = vlaneseq
        %v1908 = vshrl.u32 %v1907, 7
        %v1909 = vsub.s32 0, %v1908
        %v1910 = vrot.slane %v1905, %v1909
        %v1911 = vlaneseq
        %v1912 = vshrl.u32 %v1911, 7
        %v1913 = vsub.s32 1, %v1912
        %v1914 = vrot.slane %v1905, %v1913
        %v1917 = vmul.f32 %v1902, %v1910
        %v1918 = vmul.f32 %v1903, %v1914
        %v1921 = vrot.slane %v1917, 4
        %v1922 = vrot.slane %v1918, 4
        %1925 = vst [vmem:[#allocation2 + $0x1b0] sm:$0xf0] %v1921
        %1926 = vst [vmem:[#allocation2 + $0x1b8] sm:$0xf0] %v1922
        %1927 = vrot.lane.b32.xlu0 %v432, 98
        %v1928 = vpop.permute.xlu0 %1927
        %1929 = vrot.lane.b32.xlu0 %v434, 98
        %v1930 = vpop.permute.xlu0 %1929
        %vm1931 = vcmp.lt.s32.totalorder %v441, 98
        %v1932 = vsel %vm1931, %v1928, %v1930
        %v1933 = vsel %vm1931, %v1930, %v1928
        %s1934 = scalar_lea.vmem [#allocation6], 112
        %v1935 = vld [vmem:[%s1934] ss:$8 sm:$0x3]
        %v1937 = vlaneseq
        %v1938 = vshrl.u32 %v1937, 7
        %v1939 = vsub.s32 0, %v1938
        %v1940 = vrot.slane %v1935, %v1939
        %v1941 = vlaneseq
        %v1942 = vshrl.u32 %v1941, 7
        %v1943 = vsub.s32 1, %v1942
        %v1944 = vrot.slane %v1935, %v1943
        %v1947 = vmul.f32 %v1932, %v1940
        %v1948 = vmul.f32 %v1933, %v1944
        %1949 = vst [vmem:[#allocation2 + $0x1c0] sm:$0xf] %v1947
        %1950 = vst [vmem:[#allocation2 + $0x1c8] sm:$0xf] %v1948
        %1951 = vrot.lane.b32.xlu0 %v432, 97
        %v1952 = vpop.permute.xlu0 %1951
        %1953 = vrot.lane.b32.xlu0 %v434, 97
        %v1954 = vpop.permute.xlu0 %1953
        %vm1955 = vcmp.lt.s32.totalorder %v441, 97
        %v1956 = vsel %vm1955, %v1952, %v1954
        %v1957 = vsel %vm1955, %v1954, %v1952
        %s1958 = scalar_lea.vmem [#allocation6], 113
        %v1959 = vld [vmem:[%s1958] ss:$8 sm:$0x3]
        %v1961 = vlaneseq
        %v1962 = vshrl.u32 %v1961, 7
        %v1963 = vsub.s32 0, %v1962
        %v1964 = vrot.slane %v1959, %v1963
        %v1965 = vlaneseq
        %v1966 = vshrl.u32 %v1965, 7
        %v1967 = vsub.s32 1, %v1966
        %v1968 = vrot.slane %v1959, %v1967
        %v1971 = vmul.f32 %v1956, %v1964
        %v1972 = vmul.f32 %v1957, %v1968
        %v1975 = vrot.slane %v1971, 4
        %v1976 = vrot.slane %v1972, 4
        %1979 = vst [vmem:[#allocation2 + $0x1c0] sm:$0xf0] %v1975
        %1980 = vst [vmem:[#allocation2 + $0x1c8] sm:$0xf0] %v1976
        %1981 = vrot.lane.b32.xlu0 %v432, 96
        %v1982 = vpop.permute.xlu0 %1981
        %1983 = vrot.lane.b32.xlu0 %v434, 96
        %v1984 = vpop.permute.xlu0 %1983
        %vm1985 = vcmp.lt.s32.totalorder %v441, 96
        %v1986 = vsel %vm1985, %v1982, %v1984
        %v1987 = vsel %vm1985, %v1984, %v1982
        %s1988 = scalar_lea.vmem [#allocation6], 114
        %v1989 = vld [vmem:[%s1988] ss:$8 sm:$0x3]
        %v1991 = vlaneseq
        %v1992 = vshrl.u32 %v1991, 7
        %v1993 = vsub.s32 0, %v1992
        %v1994 = vrot.slane %v1989, %v1993
        %v1995 = vlaneseq
        %v1996 = vshrl.u32 %v1995, 7
        %v1997 = vsub.s32 1, %v1996
        %v1998 = vrot.slane %v1989, %v1997
        %v2001 = vmul.f32 %v1986, %v1994
        %v2002 = vmul.f32 %v1987, %v1998
        %2003 = vst [vmem:[#allocation2 + $0x1d0] sm:$0xf] %v2001
        %2004 = vst [vmem:[#allocation2 + $0x1d8] sm:$0xf] %v2002
        %2005 = vrot.lane.b32.xlu0 %v432, 95
        %v2006 = vpop.permute.xlu0 %2005
        %2007 = vrot.lane.b32.xlu0 %v434, 95
        %v2008 = vpop.permute.xlu0 %2007
        %vm2009 = vcmp.lt.s32.totalorder %v441, 95
        %v2010 = vsel %vm2009, %v2006, %v2008
        %v2011 = vsel %vm2009, %v2008, %v2006
        %s2012 = scalar_lea.vmem [#allocation6], 115
        %v2013 = vld [vmem:[%s2012] ss:$8 sm:$0x3]
        %v2015 = vlaneseq
        %v2016 = vshrl.u32 %v2015, 7
        %v2017 = vsub.s32 0, %v2016
        %v2018 = vrot.slane %v2013, %v2017
        %v2019 = vlaneseq
        %v2020 = vshrl.u32 %v2019, 7
        %v2021 = vsub.s32 1, %v2020
        %v2022 = vrot.slane %v2013, %v2021
        %v2025 = vmul.f32 %v2010, %v2018
        %v2026 = vmul.f32 %v2011, %v2022
        %v2029 = vrot.slane %v2025, 4
        %v2030 = vrot.slane %v2026, 4
        %2033 = vst [vmem:[#allocation2 + $0x1d0] sm:$0xf0] %v2029
        %2034 = vst [vmem:[#allocation2 + $0x1d8] sm:$0xf0] %v2030
        %2035 = vrot.lane.b32.xlu0 %v432, 94
        %v2036 = vpop.permute.xlu0 %2035
        %2037 = vrot.lane.b32.xlu0 %v434, 94
        %v2038 = vpop.permute.xlu0 %2037
        %vm2039 = vcmp.lt.s32.totalorder %v441, 94
        %v2040 = vsel %vm2039, %v2036, %v2038
        %v2041 = vsel %vm2039, %v2038, %v2036
        %s2042 = scalar_lea.vmem [#allocation6], 116
        %v2043 = vld [vmem:[%s2042] ss:$8 sm:$0x3]
        %v2045 = vlaneseq
        %v2046 = vshrl.u32 %v2045, 7
        %v2047 = vsub.s32 0, %v2046
        %v2048 = vrot.slane %v2043, %v2047
        %v2049 = vlaneseq
        %v2050 = vshrl.u32 %v2049, 7
        %v2051 = vsub.s32 1, %v2050
        %v2052 = vrot.slane %v2043, %v2051
        %v2055 = vmul.f32 %v2040, %v2048
        %v2056 = vmul.f32 %v2041, %v2052
        %2057 = vst [vmem:[#allocation2 + $0x1e0] sm:$0xf] %v2055
        %2058 = vst [vmem:[#allocation2 + $0x1e8] sm:$0xf] %v2056
        %2059 = vrot.lane.b32.xlu0 %v432, 93
        %v2060 = vpop.permute.xlu0 %2059
        %2061 = vrot.lane.b32.xlu0 %v434, 93
        %v2062 = vpop.permute.xlu0 %2061
        %vm2063 = vcmp.lt.s32.totalorder %v441, 93
        %v2064 = vsel %vm2063, %v2060, %v2062
        %v2065 = vsel %vm2063, %v2062, %v2060
        %s2066 = scalar_lea.vmem [#allocation6], 117
        %v2067 = vld [vmem:[%s2066] ss:$8 sm:$0x3]
        %v2069 = vlaneseq
        %v2070 = vshrl.u32 %v2069, 7
        %v2071 = vsub.s32 0, %v2070
        %v2072 = vrot.slane %v2067, %v2071
        %v2073 = vlaneseq
        %v2074 = vshrl.u32 %v2073, 7
        %v2075 = vsub.s32 1, %v2074
        %v2076 = vrot.slane %v2067, %v2075
        %v2079 = vmul.f32 %v2064, %v2072
        %v2080 = vmul.f32 %v2065, %v2076
        %v2083 = vrot.slane %v2079, 4
        %v2084 = vrot.slane %v2080, 4
        %2087 = vst [vmem:[#allocation2 + $0x1e0] sm:$0xf0] %v2083
        %2088 = vst [vmem:[#allocation2 + $0x1e8] sm:$0xf0] %v2084
        %2089 = vrot.lane.b32.xlu0 %v432, 92
        %v2090 = vpop.permute.xlu0 %2089
        %2091 = vrot.lane.b32.xlu0 %v434, 92
        %v2092 = vpop.permute.xlu0 %2091
        %vm2093 = vcmp.lt.s32.totalorder %v441, 92
        %v2094 = vsel %vm2093, %v2090, %v2092
        %v2095 = vsel %vm2093, %v2092, %v2090
        %s2096 = scalar_lea.vmem [#allocation6], 118
        %v2097 = vld [vmem:[%s2096] ss:$8 sm:$0x3]
        %v2099 = vlaneseq
        %v2100 = vshrl.u32 %v2099, 7
        %v2101 = vsub.s32 0, %v2100
        %v2102 = vrot.slane %v2097, %v2101
        %v2103 = vlaneseq
        %v2104 = vshrl.u32 %v2103, 7
        %v2105 = vsub.s32 1, %v2104
        %v2106 = vrot.slane %v2097, %v2105
        %v2109 = vmul.f32 %v2094, %v2102
        %v2110 = vmul.f32 %v2095, %v2106
        %2111 = vst [vmem:[#allocation2 + $0x1f0] sm:$0xf] %v2109
        %2112 = vst [vmem:[#allocation2 + $0x1f8] sm:$0xf] %v2110
        %2113 = vrot.lane.b32.xlu0 %v432, 84
        %v2114 = vpop.permute.xlu0 %2113
        %2115 = vrot.lane.b32.xlu0 %v434, 84
        %v2116 = vpop.permute.xlu0 %2115
        %vm2117 = vcmp.lt.s32.totalorder %v441, 84
        %v2118 = vsel %vm2117, %v2114, %v2116
        %v2119 = vsel %vm2117, %v2116, %v2114
        %s2120 = scalar_lea.vmem [#allocation6], 119
        %v2121 = vld [vmem:[%s2120] ss:$8 sm:$0x3]
        %v2123 = vlaneseq
        %v2124 = vshrl.u32 %v2123, 7
        %v2125 = vsub.s32 0, %v2124
        %v2126 = vrot.slane %v2121, %v2125
        %v2127 = vlaneseq
        %v2128 = vshrl.u32 %v2127, 7
        %v2129 = vsub.s32 1, %v2128
        %v2130 = vrot.slane %v2121, %v2129
        %v2133 = vmul.f32 %v2118, %v2126
        %v2134 = vmul.f32 %v2119, %v2130
        %v2137 = vrot.slane %v2133, 4
        %v2138 = vrot.slane %v2134, 4
        %2141 = vst [vmem:[#allocation2 + $0x1f0] sm:$0xf0] %v2137
        %2142 = vst [vmem:[#allocation2 + $0x1f8] sm:$0xf0] %v2138
        %2143 = vrot.lane.b32.xlu0 %v432, 83
        %v2144 = vpop.permute.xlu0 %2143
        %2145 = vrot.lane.b32.xlu0 %v434, 83
        %v2146 = vpop.permute.xlu0 %2145
        %vm2147 = vcmp.lt.s32.totalorder %v441, 83
        %v2148 = vsel %vm2147, %v2144, %v2146
        %v2149 = vsel %vm2147, %v2146, %v2144
        %s2150 = scalar_lea.vmem [#allocation6], 128
        %v2151 = vld [vmem:[%s2150] ss:$8 sm:$0x3]
        %v2153 = vlaneseq
        %v2154 = vshrl.u32 %v2153, 7
        %v2155 = vsub.s32 0, %v2154
        %v2156 = vrot.slane %v2151, %v2155
        %v2157 = vlaneseq
        %v2158 = vshrl.u32 %v2157, 7
        %v2159 = vsub.s32 1, %v2158
        %v2160 = vrot.slane %v2151, %v2159
        %v2163 = vmul.f32 %v2148, %v2156
        %v2164 = vmul.f32 %v2149, %v2160
        %2165 = vst [vmem:[#allocation2 + $0x200] sm:$0xf] %v2163
        %2166 = vst [vmem:[#allocation2 + $0x208] sm:$0xf] %v2164
        %2167 = vrot.lane.b32.xlu0 %v432, 82
        %v2168 = vpop.permute.xlu0 %2167
        %2169 = vrot.lane.b32.xlu0 %v434, 82
        %v2170 = vpop.permute.xlu0 %2169
        %vm2171 = vcmp.lt.s32.totalorder %v441, 82
        %v2172 = vsel %vm2171, %v2168, %v2170
        %v2173 = vsel %vm2171, %v2170, %v2168
        %s2174 = scalar_lea.vmem [#allocation6], 129
        %v2175 = vld [vmem:[%s2174] ss:$8 sm:$0x3]
        %v2177 = vlaneseq
        %v2178 = vshrl.u32 %v2177, 7
        %v2179 = vsub.s32 0, %v2178
        %v2180 = vrot.slane %v2175, %v2179
        %v2181 = vlaneseq
        %v2182 = vshrl.u32 %v2181, 7
        %v2183 = vsub.s32 1, %v2182
        %v2184 = vrot.slane %v2175, %v2183
        %v2187 = vmul.f32 %v2172, %v2180
        %v2188 = vmul.f32 %v2173, %v2184
        %v2191 = vrot.slane %v2187, 4
        %v2192 = vrot.slane %v2188, 4
        %2195 = vst [vmem:[#allocation2 + $0x200] sm:$0xf0] %v2191
        %2196 = vst [vmem:[#allocation2 + $0x208] sm:$0xf0] %v2192
        %2197 = vrot.lane.b32.xlu0 %v432, 81
        %v2198 = vpop.permute.xlu0 %2197
        %2199 = vrot.lane.b32.xlu0 %v434, 81
        %v2200 = vpop.permute.xlu0 %2199
        %vm2201 = vcmp.lt.s32.totalorder %v441, 81
        %v2202 = vsel %vm2201, %v2198, %v2200
        %v2203 = vsel %vm2201, %v2200, %v2198
        %s2204 = scalar_lea.vmem [#allocation6], 130
        %v2205 = vld [vmem:[%s2204] ss:$8 sm:$0x3]
        %v2207 = vlaneseq
        %v2208 = vshrl.u32 %v2207, 7
        %v2209 = vsub.s32 0, %v2208
        %v2210 = vrot.slane %v2205, %v2209
        %v2211 = vlaneseq
        %v2212 = vshrl.u32 %v2211, 7
        %v2213 = vsub.s32 1, %v2212
        %v2214 = vrot.slane %v2205, %v2213
        %v2217 = vmul.f32 %v2202, %v2210
        %v2218 = vmul.f32 %v2203, %v2214
        %2219 = vst [vmem:[#allocation2 + $0x210] sm:$0xf] %v2217
        %2220 = vst [vmem:[#allocation2 + $0x218] sm:$0xf] %v2218
        %2221 = vrot.lane.b32.xlu0 %v432, 80
        %v2222 = vpop.permute.xlu0 %2221
        %2223 = vrot.lane.b32.xlu0 %v434, 80
        %v2224 = vpop.permute.xlu0 %2223
        %vm2225 = vcmp.lt.s32.totalorder %v441, 80
        %v2226 = vsel %vm2225, %v2222, %v2224
        %v2227 = vsel %vm2225, %v2224, %v2222
        %s2228 = scalar_lea.vmem [#allocation6], 131
        %v2229 = vld [vmem:[%s2228] ss:$8 sm:$0x3]
        %v2231 = vlaneseq
        %v2232 = vshrl.u32 %v2231, 7
        %v2233 = vsub.s32 0, %v2232
        %v2234 = vrot.slane %v2229, %v2233
        %v2235 = vlaneseq
        %v2236 = vshrl.u32 %v2235, 7
        %v2237 = vsub.s32 1, %v2236
        %v2238 = vrot.slane %v2229, %v2237
        %v2241 = vmul.f32 %v2226, %v2234
        %v2242 = vmul.f32 %v2227, %v2238
        %v2245 = vrot.slane %v2241, 4
        %v2246 = vrot.slane %v2242, 4
        %2249 = vst [vmem:[#allocation2 + $0x210] sm:$0xf0] %v2245
        %2250 = vst [vmem:[#allocation2 + $0x218] sm:$0xf0] %v2246
        %2251 = vrot.lane.b32.xlu0 %v432, 79
        %v2252 = vpop.permute.xlu0 %2251
        %2253 = vrot.lane.b32.xlu0 %v434, 79
        %v2254 = vpop.permute.xlu0 %2253
        %vm2255 = vcmp.lt.s32.totalorder %v441, 79
        %v2256 = vsel %vm2255, %v2252, %v2254
        %v2257 = vsel %vm2255, %v2254, %v2252
        %s2258 = scalar_lea.vmem [#allocation6], 132
        %v2259 = vld [vmem:[%s2258] ss:$8 sm:$0x3]
        %v2261 = vlaneseq
        %v2262 = vshrl.u32 %v2261, 7
        %v2263 = vsub.s32 0, %v2262
        %v2264 = vrot.slane %v2259, %v2263
        %v2265 = vlaneseq
        %v2266 = vshrl.u32 %v2265, 7
        %v2267 = vsub.s32 1, %v2266
        %v2268 = vrot.slane %v2259, %v2267
        %v2271 = vmul.f32 %v2256, %v2264
        %v2272 = vmul.f32 %v2257, %v2268
        %2273 = vst [vmem:[#allocation2 + $0x220] sm:$0xf] %v2271
        %2274 = vst [vmem:[#allocation2 + $0x228] sm:$0xf] %v2272
        %2275 = vrot.lane.b32.xlu0 %v432, 78
        %v2276 = vpop.permute.xlu0 %2275
        %2277 = vrot.lane.b32.xlu0 %v434, 78
        %v2278 = vpop.permute.xlu0 %2277
        %vm2279 = vcmp.lt.s32.totalorder %v441, 78
        %v2280 = vsel %vm2279, %v2276, %v2278
        %v2281 = vsel %vm2279, %v2278, %v2276
        %s2282 = scalar_lea.vmem [#allocation6], 133
        %v2283 = vld [vmem:[%s2282] ss:$8 sm:$0x3]
        %v2285 = vlaneseq
        %v2286 = vshrl.u32 %v2285, 7
        %v2287 = vsub.s32 0, %v2286
        %v2288 = vrot.slane %v2283, %v2287
        %v2289 = vlaneseq
        %v2290 = vshrl.u32 %v2289, 7
        %v2291 = vsub.s32 1, %v2290
        %v2292 = vrot.slane %v2283, %v2291
        %v2295 = vmul.f32 %v2280, %v2288
        %v2296 = vmul.f32 %v2281, %v2292
        %v2299 = vrot.slane %v2295, 4
        %v2300 = vrot.slane %v2296, 4
        %2303 = vst [vmem:[#allocation2 + $0x220] sm:$0xf0] %v2299
        %2304 = vst [vmem:[#allocation2 + $0x228] sm:$0xf0] %v2300
        %2305 = vrot.lane.b32.xlu0 %v432, 77
        %v2306 = vpop.permute.xlu0 %2305
        %2307 = vrot.lane.b32.xlu0 %v434, 77
        %v2308 = vpop.permute.xlu0 %2307
        %vm2309 = vcmp.lt.s32.totalorder %v441, 77
        %v2310 = vsel %vm2309, %v2306, %v2308
        %v2311 = vsel %vm2309, %v2308, %v2306
        %s2312 = scalar_lea.vmem [#allocation6], 134
        %v2313 = vld [vmem:[%s2312] ss:$8 sm:$0x3]
        %v2315 = vlaneseq
        %v2316 = vshrl.u32 %v2315, 7
        %v2317 = vsub.s32 0, %v2316
        %v2318 = vrot.slane %v2313, %v2317
        %v2319 = vlaneseq
        %v2320 = vshrl.u32 %v2319, 7
        %v2321 = vsub.s32 1, %v2320
        %v2322 = vrot.slane %v2313, %v2321
        %v2325 = vmul.f32 %v2310, %v2318
        %v2326 = vmul.f32 %v2311, %v2322
        %2327 = vst [vmem:[#allocation2 + $0x230] sm:$0xf] %v2325
        %2328 = vst [vmem:[#allocation2 + $0x238] sm:$0xf] %v2326
        %2329 = vrot.lane.b32.xlu0 %v432, 76
        %v2330 = vpop.permute.xlu0 %2329
        %2331 = vrot.lane.b32.xlu0 %v434, 76
        %v2332 = vpop.permute.xlu0 %2331
        %vm2333 = vcmp.lt.s32.totalorder %v441, 76
        %v2334 = vsel %vm2333, %v2330, %v2332
        %v2335 = vsel %vm2333, %v2332, %v2330
        %s2336 = scalar_lea.vmem [#allocation6], 135
        %v2337 = vld [vmem:[%s2336] ss:$8 sm:$0x3]
        %v2339 = vlaneseq
        %v2340 = vshrl.u32 %v2339, 7
        %v2341 = vsub.s32 0, %v2340
        %v2342 = vrot.slane %v2337, %v2341
        %v2343 = vlaneseq
        %v2344 = vshrl.u32 %v2343, 7
        %v2345 = vsub.s32 1, %v2344
        %v2346 = vrot.slane %v2337, %v2345
        %v2349 = vmul.f32 %v2334, %v2342
        %v2350 = vmul.f32 %v2335, %v2346
        %v2353 = vrot.slane %v2349, 4
        %v2354 = vrot.slane %v2350, 4
        %2357 = vst [vmem:[#allocation2 + $0x230] sm:$0xf0] %v2353
        %2358 = vst [vmem:[#allocation2 + $0x238] sm:$0xf0] %v2354
        %s2359 = scalar_lea.vmem [#allocation6], 144
        %v2360 = vld [vmem:[%s2359] ss:$8 sm:$0x3]
        %v2362 = vlaneseq
        %v2363 = vshrl.u32 %v2362, 7
        %v2364 = vsub.s32 0, %v2363
        %v2365 = vrot.slane %v2360, %v2364
        %v2366 = vlaneseq
        %v2367 = vshrl.u32 %v2366, 7
        %v2368 = vsub.s32 1, %v2367
        %v2369 = vrot.slane %v2360, %v2368
        %v2372 = vmul.f32 %v443, %v2365
        %v2373 = vmul.f32 %v444, %v2369
        %2374 = vst [vmem:[#allocation2 + $0x240] sm:$0xf] %v2372
        %2375 = vst [vmem:[#allocation2 + $0x248] sm:$0xf] %v2373
        %s2376 = scalar_lea.vmem [#allocation6], 145
        %v2377 = vld [vmem:[%s2376] ss:$8 sm:$0x3]
        %v2379 = vlaneseq
        %v2380 = vshrl.u32 %v2379, 7
        %v2381 = vsub.s32 0, %v2380
        %v2382 = vrot.slane %v2377, %v2381
        %v2383 = vlaneseq
        %v2384 = vshrl.u32 %v2383, 7
        %v2385 = vsub.s32 1, %v2384
        %v2386 = vrot.slane %v2377, %v2385
        %v2389 = vmul.f32 %v466, %v2382
        %v2390 = vmul.f32 %v467, %v2386
        %v2393 = vrot.slane %v2389, 4
        %v2394 = vrot.slane %v2390, 4
        %2397 = vst [vmem:[#allocation2 + $0x240] sm:$0xf0] %v2393
        %2398 = vst [vmem:[#allocation2 + $0x248] sm:$0xf0] %v2394
        %s2399 = scalar_lea.vmem [#allocation6], 146
        %v2400 = vld [vmem:[%s2399] ss:$8 sm:$0x3]
        %v2402 = vlaneseq
        %v2403 = vshrl.u32 %v2402, 7
        %v2404 = vsub.s32 0, %v2403
        %v2405 = vrot.slane %v2400, %v2404
        %v2406 = vlaneseq
        %v2407 = vshrl.u32 %v2406, 7
        %v2408 = vsub.s32 1, %v2407
        %v2409 = vrot.slane %v2400, %v2408
        %v2412 = vmul.f32 %v496, %v2405
        %v2413 = vmul.f32 %v497, %v2409
        %2414 = vst [vmem:[#allocation2 + $0x250] sm:$0xf] %v2412
        %2415 = vst [vmem:[#allocation2 + $0x258] sm:$0xf] %v2413
        %s2416 = scalar_lea.vmem [#allocation6], 147
        %v2417 = vld [vmem:[%s2416] ss:$8 sm:$0x3]
        %v2419 = vlaneseq
        %v2420 = vshrl.u32 %v2419, 7
        %v2421 = vsub.s32 0, %v2420
        %v2422 = vrot.slane %v2417, %v2421
        %v2423 = vlaneseq
        %v2424 = vshrl.u32 %v2423, 7
        %v2425 = vsub.s32 1, %v2424
        %v2426 = vrot.slane %v2417, %v2425
        %v2429 = vmul.f32 %v520, %v2422
        %v2430 = vmul.f32 %v521, %v2426
        %v2433 = vrot.slane %v2429, 4
        %v2434 = vrot.slane %v2430, 4
        %2437 = vst [vmem:[#allocation2 + $0x250] sm:$0xf0] %v2433
        %2438 = vst [vmem:[#allocation2 + $0x258] sm:$0xf0] %v2434
        %s2439 = scalar_lea.vmem [#allocation6], 148
        %v2440 = vld [vmem:[%s2439] ss:$8 sm:$0x3]
        %v2442 = vlaneseq
        %v2443 = vshrl.u32 %v2442, 7
        %v2444 = vsub.s32 0, %v2443
        %v2445 = vrot.slane %v2440, %v2444
        %v2446 = vlaneseq
        %v2447 = vshrl.u32 %v2446, 7
        %v2448 = vsub.s32 1, %v2447
        %v2449 = vrot.slane %v2440, %v2448
        %v2452 = vmul.f32 %v550, %v2445
        %v2453 = vmul.f32 %v551, %v2449
        %2454 = vst [vmem:[#allocation2 + $0x260] sm:$0xf] %v2452
        %2455 = vst [vmem:[#allocation2 + $0x268] sm:$0xf] %v2453
        %s2456 = scalar_lea.vmem [#allocation6], 149
        %v2457 = vld [vmem:[%s2456] ss:$8 sm:$0x3]
        %v2459 = vlaneseq
        %v2460 = vshrl.u32 %v2459, 7
        %v2461 = vsub.s32 0, %v2460
        %v2462 = vrot.slane %v2457, %v2461
        %v2463 = vlaneseq
        %v2464 = vshrl.u32 %v2463, 7
        %v2465 = vsub.s32 1, %v2464
        %v2466 = vrot.slane %v2457, %v2465
        %v2469 = vmul.f32 %v574, %v2462
        %v2470 = vmul.f32 %v575, %v2466
        %v2473 = vrot.slane %v2469, 4
        %v2474 = vrot.slane %v2470, 4
        %2477 = vst [vmem:[#allocation2 + $0x260] sm:$0xf0] %v2473
        %2478 = vst [vmem:[#allocation2 + $0x268] sm:$0xf0] %v2474
        %s2479 = scalar_lea.vmem [#allocation6], 150
        %v2480 = vld [vmem:[%s2479] ss:$8 sm:$0x3]
        %v2482 = vlaneseq
        %v2483 = vshrl.u32 %v2482, 7
        %v2484 = vsub.s32 0, %v2483
        %v2485 = vrot.slane %v2480, %v2484
        %v2486 = vlaneseq
        %v2487 = vshrl.u32 %v2486, 7
        %v2488 = vsub.s32 1, %v2487
        %v2489 = vrot.slane %v2480, %v2488
        %v2492 = vmul.f32 %v604, %v2485
        %v2493 = vmul.f32 %v605, %v2489
        %2494 = vst [vmem:[#allocation2 + $0x270] sm:$0xf] %v2492
        %2495 = vst [vmem:[#allocation2 + $0x278] sm:$0xf] %v2493
        %s2496 = scalar_lea.vmem [#allocation6], 151
        %v2497 = vld [vmem:[%s2496] ss:$8 sm:$0x3]
        %v2499 = vlaneseq
        %v2500 = vshrl.u32 %v2499, 7
        %v2501 = vsub.s32 0, %v2500
        %v2502 = vrot.slane %v2497, %v2501
        %v2503 = vlaneseq
        %v2504 = vshrl.u32 %v2503, 7
        %v2505 = vsub.s32 1, %v2504
        %v2506 = vrot.slane %v2497, %v2505
        %v2509 = vmul.f32 %v628, %v2502
        %v2510 = vmul.f32 %v629, %v2506
        %v2513 = vrot.slane %v2509, 4
        %v2514 = vrot.slane %v2510, 4
        %2517 = vst [vmem:[#allocation2 + $0x270] sm:$0xf0] %v2513
        %2518 = vst [vmem:[#allocation2 + $0x278] sm:$0xf0] %v2514
        %s2519 = scalar_lea.vmem [#allocation6], 160
        %v2520 = vld [vmem:[%s2519] ss:$8 sm:$0x3]
        %v2522 = vlaneseq
        %v2523 = vshrl.u32 %v2522, 7
        %v2524 = vsub.s32 0, %v2523
        %v2525 = vrot.slane %v2520, %v2524
        %v2526 = vlaneseq
        %v2527 = vshrl.u32 %v2526, 7
        %v2528 = vsub.s32 1, %v2527
        %v2529 = vrot.slane %v2520, %v2528
        %v2532 = vmul.f32 %v658, %v2525
        %v2533 = vmul.f32 %v659, %v2529
        %2534 = vst [vmem:[#allocation2 + $0x280] sm:$0xf] %v2532
        %2535 = vst [vmem:[#allocation2 + $0x288] sm:$0xf] %v2533
        %v2536 = vld [vmem:[#allocation9] sm:$0xff]
        %v2537 = vld [vmem:[#allocation9 + $0x8] sm:$0xff]
        %v2538 = vld [vmem:[#allocation9 + $0x10] sm:$0xff]
        %v2539 = vld [vmem:[#allocation9 + $0x18] sm:$0xff]
        %v2540 = vld [vmem:[#allocation9 + $0x20] sm:$0xff]
        %v2541 = vld [vmem:[#allocation9 + $0x28] sm:$0xff]
        %v2542 = vld [vmem:[#allocation2] sm:$0xff]
        %v2543 = vld [vmem:[#allocation2 + $0x8] sm:$0xff]
        %v2544 = vld [vmem:[#allocation2 + $0x10] sm:$0xff]
        %v2545 = vld [vmem:[#allocation2 + $0x18] sm:$0xff]
        %v2546 = vld [vmem:[#allocation2 + $0x20] sm:$0xff]
        %v2547 = vld [vmem:[#allocation2 + $0x28] sm:$0xff]
        %v2548 = vld [vmem:[#allocation2 + $0x30] sm:$0xff]
        %v2549 = vld [vmem:[#allocation2 + $0x38] sm:$0xff]
        %v2550 = vld [vmem:[#allocation2 + $0x40] sm:$0xff]
        %v2551 = vld [vmem:[#allocation2 + $0x48] sm:$0xff]
        %v2552 = vld [vmem:[#allocation2 + $0x50] sm:$0xff]
        %v2553 = vld [vmem:[#allocation2 + $0x58] sm:$0xff]
        %v2554 = vld [vmem:[#allocation2 + $0x60] sm:$0xff]
        %v2555 = vld [vmem:[#allocation2 + $0x68] sm:$0xff]
        %v2556 = vld [vmem:[#allocation2 + $0x70] sm:$0xff]
        %v2557 = vld [vmem:[#allocation2 + $0x78] sm:$0xff]
        %v2558 = vld [vmem:[#allocation2 + $0x80] sm:$0xff]
        %v2559 = vld [vmem:[#allocation2 + $0x88] sm:$0xff]
        %v2560 = vld [vmem:[#allocation2 + $0x90] sm:$0xff]
        %v2561 = vld [vmem:[#allocation2 + $0x98] sm:$0xff]
        %v2562 = vld [vmem:[#allocation2 + $0xa0] sm:$0xff]
        %v2563 = vld [vmem:[#allocation2 + $0xa8] sm:$0xff]
        %v2564 = vld [vmem:[#allocation2 + $0xb0] sm:$0xff]
        %v2565 = vld [vmem:[#allocation2 + $0xb8] sm:$0xff]
        %v2566 = vld [vmem:[#allocation2 + $0xc0] sm:$0xff]
        %v2567 = vld [vmem:[#allocation2 + $0xc8] sm:$0xff]
        %v2568 = vld [vmem:[#allocation2 + $0xd0] sm:$0xff]
        %v2569 = vld [vmem:[#allocation2 + $0xd8] sm:$0xff]
        %v2570 = vld [vmem:[#allocation2 + $0xe0] sm:$0xff]
        %v2571 = vld [vmem:[#allocation2 + $0xe8] sm:$0xff]
        %v2572 = vld [vmem:[#allocation2 + $0xf0] sm:$0xff]
        %v2573 = vld [vmem:[#allocation2 + $0xf8] sm:$0xff]
        %v2574 = vld [vmem:[#allocation2 + $0x100] sm:$0xff]
        %v2575 = vld [vmem:[#allocation2 + $0x108] sm:$0xff]
        %v2576 = vld [vmem:[#allocation2 + $0x110] sm:$0xff]
        %v2577 = vld [vmem:[#allocation2 + $0x118] sm:$0xff]
        %v2578 = vld [vmem:[#allocation2 + $0x120] sm:$0xff]
        %v2579 = vld [vmem:[#allocation2 + $0x128] sm:$0xff]
        %v2580 = vld [vmem:[#allocation2 + $0x130] sm:$0xff]
        %v2581 = vld [vmem:[#allocation2 + $0x138] sm:$0xff]
        %v2582 = vld [vmem:[#allocation2 + $0x140] sm:$0xff]
        %v2583 = vld [vmem:[#allocation2 + $0x148] sm:$0xff]
        %v2584 = vld [vmem:[#allocation2 + $0x150] sm:$0xff]
        %v2585 = vld [vmem:[#allocation2 + $0x158] sm:$0xff]
        %v2586 = vld [vmem:[#allocation2 + $0x160] sm:$0xff]
        %v2587 = vld [vmem:[#allocation2 + $0x168] sm:$0xff]
        %v2588 = vld [vmem:[#allocation2 + $0x170] sm:$0xff]
        %v2589 = vld [vmem:[#allocation2 + $0x178] sm:$0xff]
        %v2590 = vld [vmem:[#allocation2 + $0x180] sm:$0xff]
        %v2591 = vld [vmem:[#allocation2 + $0x188] sm:$0xff]
        %v2592 = vld [vmem:[#allocation2 + $0x190] sm:$0xff]
        %v2593 = vld [vmem:[#allocation2 + $0x198] sm:$0xff]
        %v2594 = vld [vmem:[#allocation2 + $0x1a0] sm:$0xff]
        %v2595 = vld [vmem:[#allocation2 + $0x1a8] sm:$0xff]
        %v2596 = vld [vmem:[#allocation2 + $0x1b0] sm:$0xff]
        %v2597 = vld [vmem:[#allocation2 + $0x1b8] sm:$0xff]
        %v2598 = vld [vmem:[#allocation2 + $0x1c0] sm:$0xff]
        %v2599 = vld [vmem:[#allocation2 + $0x1c8] sm:$0xff]
        %v2600 = vld [vmem:[#allocation2 + $0x1d0] sm:$0xff]
        %v2601 = vld [vmem:[#allocation2 + $0x1d8] sm:$0xff]
        %v2602 = vld [vmem:[#allocation2 + $0x1e0] sm:$0xff]
        %v2603 = vld [vmem:[#allocation2 + $0x1e8] sm:$0xff]
        %v2604 = vld [vmem:[#allocation2 + $0x1f0] sm:$0xff]
        %v2605 = vld [vmem:[#allocation2 + $0x1f8] sm:$0xff]
        %v2606 = vld [vmem:[#allocation2 + $0x200] sm:$0xff]
        %v2607 = vld [vmem:[#allocation2 + $0x208] sm:$0xff]
        %v2608 = vld [vmem:[#allocation2 + $0x210] sm:$0xff]
        %v2609 = vld [vmem:[#allocation2 + $0x218] sm:$0xff]
        %v2610 = vld [vmem:[#allocation2 + $0x220] sm:$0xff]
        %v2611 = vld [vmem:[#allocation2 + $0x228] sm:$0xff]
        %v2612 = vld [vmem:[#allocation2 + $0x230] sm:$0xff]
        %v2613 = vld [vmem:[#allocation2 + $0x238] sm:$0xff]
        %v2614 = vld [vmem:[#allocation2 + $0x240] sm:$0xff]
        %v2615 = vld [vmem:[#allocation2 + $0x248] sm:$0xff]
        %v2616 = vld [vmem:[#allocation2 + $0x250] sm:$0xff]
        %v2617 = vld [vmem:[#allocation2 + $0x258] sm:$0xff]
        %v2618 = vld [vmem:[#allocation2 + $0x260] sm:$0xff]
        %v2619 = vld [vmem:[#allocation2 + $0x268] sm:$0xff]
        %v2620 = vld [vmem:[#allocation2 + $0x270] sm:$0xff]
        %v2621 = vld [vmem:[#allocation2 + $0x278] sm:$0xff]
        %v2622 = vld [vmem:[#allocation2 + $0x280] sm:$0xf]
        %v2623 = vld [vmem:[#allocation2 + $0x288] sm:$0xf]
        %v2624 = vld [vmem:[%s5] sm:$0xff]
        %v2625 = vld [vmem:[%s5 + $0x8] sm:$0xff]
        %2627 = vset.pattern.permute.xlu0 0
        %2628 = vperm.xlu0 %2627, %v2624
        %v2629 = vpop.permute.xlu0 %2628
        %2632 = vset.pattern.permute.xlu0 0
        %2633 = vperm.xlu0 %2632, %v2625
        %v2634 = vpop.permute.xlu0 %2633
        %vm2636 = vcmask 556032
        %v2638 = vsel %vm2636, %v2538, 0
        %v2641 = vsel %vm2636, %v2541, 0
        %vm2643 = vcmask 1043456
        %v2645 = vsel %vm2643, %v2622, 0
        %v2648 = vsel %vm2643, %v2623, 0
        %2650 = vmatprep.subr.mxu0 %v2573
        %2651 = vmatpush1.msra.mxu0 %v2572
        %2652 = vmatprep.subr.mxu0 %v2571
        %2653 = vmatpush1.msra.mxu0 %v2570
        %2654 = vmatprep.subr.mxu0 %v2569
        %2655 = vmatpush1.msra.mxu0 %v2568
        %2656 = vmatprep.subr.mxu0 %v2567
        %2657 = vmatpush1.msra.mxu0 %v2566
        %2658 = vmatprep.subr.mxu0 %v2565
        %2659 = vmatpush1.msra.mxu0 %v2564
        %2660 = vmatprep.subr.mxu0 %v2563
        %2661 = vmatpush1.msra.mxu0 %v2562
        %2662 = vmatprep.subr.mxu0 %v2561
        %2663 = vmatpush1.msra.mxu0 %v2560
        %2664 = vmatprep.subr.mxu0 %v2559
        %2665 = vmatpush1.msra.mxu0 %v2558
        %2666 = vmatprep.subr.mxu0 %v2557
        %2667 = vmatpush1.msra.mxu0 %v2556
        %2668 = vmatprep.subr.mxu0 %v2555
        %2669 = vmatpush1.msra.mxu0 %v2554
        %2670 = vmatprep.subr.mxu0 %v2553
        %2671 = vmatpush1.msra.mxu0 %v2552
        %2672 = vmatprep.subr.mxu0 %v2551
        %2673 = vmatpush1.msra.mxu0 %v2550
        %2674 = vmatprep.subr.mxu0 %v2549
        %2675 = vmatpush1.msra.mxu0 %v2548
        %2676 = vmatprep.subr.mxu0 %v2547
        %2677 = vmatpush1.msra.mxu0 %v2546
        %2678 = vmatprep.subr.mxu0 %v2545
        %2679 = vmatpush1.msra.mxu0 %v2544
        %2680 = vmatprep.subr.mxu0 %v2543
        %2681 = vmatpush1.msra.mxu0 %v2542
        %2682 = vmatprep.subr.mxu0 %v2605
        %2683 = vmatpush2.msra.mxu0 %v2604
        %2684 = vmatprep.subr.mxu0 %v2603
        %2685 = vmatpush2.msra.mxu0 %v2602
        %2686 = vmatprep.subr.mxu0 %v2601
        %2687 = vmatpush2.msra.mxu0 %v2600
        %2688 = vmatprep.subr.mxu0 %v2599
        %2689 = vmatpush2.msra.mxu0 %v2598
        %2690 = vmatprep.subr.mxu0 %v2597
        %2691 = vmatpush2.msra.mxu0 %v2596
        %2692 = vmatprep.subr.mxu0 %v2595
        %2693 = vmatpush2.msra.mxu0 %v2594
        %2694 = vmatprep.subr.mxu0 %v2593
        %2695 = vmatpush2.msra.mxu0 %v2592
        %2696 = vmatprep.subr.mxu0 %v2591
        %2697 = vmatpush2.msra.mxu0 %v2590
        %2698 = vmatprep.subr.mxu0 %v2589
        %2699 = vmatpush2.msra.mxu0 %v2588
        %2700 = vmatprep.subr.mxu0 %v2587
        %2701 = vmatpush2.msra.mxu0 %v2586
        %2702 = vmatprep.subr.mxu0 %v2585
        %2703 = vmatpush2.msra.mxu0 %v2584
        %2704 = vmatprep.subr.mxu0 %v2583
        %2705 = vmatpush2.msra.mxu0 %v2582
        %2706 = vmatprep.subr.mxu0 %v2581
        %2707 = vmatpush2.msra.mxu0 %v2580
        %2708 = vmatprep.subr.mxu0 %v2579
        %2709 = vmatpush2.msra.mxu0 %v2578
        %2710 = vmatprep.subr.mxu0 %v2577
        %2711 = vmatpush2.msra.mxu0 %v2576
        %2712 = vmatprep.subr.mxu0 %v2575
        %2713 = vmatpush2.msra.mxu0 %v2574
        %2714 = vmatprep.mubr.f32.mxu0 %v2537
        %2715 = vmatmul.mubr.f32.gmra.mxu0 %v2536
        %v2716 = vpop.f32.mrf.mxu0
        %v2717 = vadd.f32 %v2629, %v2716
        %v2718 = vpop.f32.mrf.mxu0
        %v2719 = vadd.f32 %v2629, %v2718
        %2720 = vmatprep.mubr.f32.mxu0 %v2540
        %2721 = vmatmul.mubr.f32.gmra.mxu0 %v2539
        %v2722 = vpop.f32.mrf.mxu0
        %v2723 = vadd.f32 %v2634, %v2722
        %v2724 = vpop.f32.mrf.mxu0
        %v2725 = vadd.f32 %v2634, %v2724
        %2726 = vdwg.mxu0
        %2727 = vmatprep.subr.mxu0 0.0
        %2728 = vmatpush1.msra.mxu0 0.0
        %2729 = vmatprep.subr.mxu0 0.0
        %2730 = vmatpush1.msra.mxu0 0.0
        %2731 = vmatprep.subr.mxu0 0.0
        %2732 = vmatpush1.msra.mxu0 0.0
        %2733 = vmatprep.subr.mxu0 0.0
        %2734 = vmatpush1.msra.mxu0 0.0
        %2735 = vmatprep.subr.mxu0 0.0
        %2736 = vmatpush1.msra.mxu0 0.0
        %2737 = vmatprep.subr.mxu0 0.0
        %2738 = vmatpush1.msra.mxu0 0.0
        %2739 = vmatprep.subr.mxu0 0.0
        %2740 = vmatpush1.msra.mxu0 0.0
        %2741 = vmatprep.subr.mxu0 %v2648
        %2742 = vmatpush1.msra.mxu0 %v2645
        %2743 = vmatprep.subr.mxu0 %v2621
        %2744 = vmatpush1.msra.mxu0 %v2620
        %2745 = vmatprep.subr.mxu0 %v2619
        %2746 = vmatpush1.msra.mxu0 %v2618
        %2747 = vmatprep.subr.mxu0 %v2617
        %2748 = vmatpush1.msra.mxu0 %v2616
        %2749 = vmatprep.subr.mxu0 %v2615
        %2750 = vmatpush1.msra.mxu0 %v2614
        %2751 = vmatprep.subr.mxu0 %v2613
        %2752 = vmatpush1.msra.mxu0 %v2612
        %2753 = vmatprep.subr.mxu0 %v2611
        %2754 = vmatpush1.msra.mxu0 %v2610
        %2755 = vmatprep.subr.mxu0 %v2609
        %2756 = vmatpush1.msra.mxu0 %v2608
        %2757 = vmatprep.subr.mxu0 %v2607
        %2758 = vmatpush1.msra.mxu0 %v2606
        %2759 = vmatprep.subr.mxu0 0.0
        %2760 = vmatpush2.msra.mxu0 0.0
        %2761 = vmatprep.subr.mxu0 0.0
        %2762 = vmatpush2.msra.mxu0 0.0
        %2763 = vmatprep.subr.mxu0 0.0
        %2764 = vmatpush2.msra.mxu0 0.0
        %2765 = vmatprep.subr.mxu0 0.0
        %2766 = vmatpush2.msra.mxu0 0.0
        %2767 = vmatprep.subr.mxu0 0.0
        %2768 = vmatpush2.msra.mxu0 0.0
        %2769 = vmatprep.subr.mxu0 0.0
        %2770 = vmatpush2.msra.mxu0 0.0
        %2771 = vmatprep.subr.mxu0 0.0
        %2772 = vmatpush2.msra.mxu0 0.0
        %2773 = vmatprep.subr.mxu0 0.0
        %2774 = vmatpush2.msra.mxu0 0.0
        %2775 = vmatprep.subr.mxu0 0.0
        %2776 = vmatpush2.msra.mxu0 0.0
        %2777 = vmatprep.subr.mxu0 0.0
        %2778 = vmatpush2.msra.mxu0 0.0
        %2779 = vmatprep.subr.mxu0 0.0
        %2780 = vmatpush2.msra.mxu0 0.0
        %2781 = vmatprep.subr.mxu0 0.0
        %2782 = vmatpush2.msra.mxu0 0.0
        %2783 = vmatprep.subr.mxu0 0.0
        %2784 = vmatpush2.msra.mxu0 0.0
        %2785 = vmatprep.subr.mxu0 0.0
        %2786 = vmatpush2.msra.mxu0 0.0
        %2787 = vmatprep.subr.mxu0 0.0
        %2788 = vmatpush2.msra.mxu0 0.0
        %2789 = vmatprep.subr.mxu0 0.0
        %2790 = vmatpush2.msra.mxu0 0.0
        %2791 = vmatprep.mubr.f32.mxu0 0.0
        %2792 = vmatmul.mubr.f32.gmra.mxu0 %v2638
        %v2793 = vpop.f32.mrf.mxu0
        %v2794 = vadd.f32 %v2717, %v2793
        %v2795 = vpop.f32.mrf.mxu0
        %v2796 = vadd.f32 %v2719, %v2795
        %2797 = vmatprep.mubr.f32.mxu0 0.0
        %2798 = vmatmul.mubr.f32.gmra.mxu0 %v2641
        %v2799 = vpop.f32.mrf.mxu0
        %v2800 = vadd.f32 %v2723, %v2799
        %v2801 = vpop.f32.mrf.mxu0
        %v2802 = vadd.f32 %v2725, %v2801
        %2803 = vdwg.mxu0
        %v2804 = vmax.f32 %v2794, 0.0
        %v2805 = vmax.f32 %v2796, 0.0
        %v2806 = vmax.f32 %v2800, 0.0
        %v2807 = vmax.f32 %v2802, 0.0
        %2808 = vrot.lane.b32.xlu0 %v2804, 17
        %v2809 = vpop.permute.xlu0 %2808
        %2810 = vrot.lane.b32.xlu0 %v2806, 17
        %v2811 = vpop.permute.xlu0 %2810
        %2812 = vrot.lane.b32.xlu0 %v2805, 17
        %v2813 = vpop.permute.xlu0 %2812
        %2814 = vrot.lane.b32.xlu0 %v2807, 17
        %v2815 = vpop.permute.xlu0 %2814
        %v2816 = vsel %vm1251, %v2809, %v2813
        %v2817 = vsel %vm1251, %v2811, %v2815
        %v2818 = vsel %vm1251, %v2813, %v2809
        %v2819 = vsel %vm1251, %v2815, %v2811
        %v2820 = vld [vmem:[%s2] ss:$8 sm:$0x3]
        %v2822 = vlaneseq
        %v2823 = vshrl.u32 %v2822, 7
        %v2824 = vsub.s32 0, %v2823
        %v2825 = vrot.slane %v2820, %v2824
        %v2826 = vlaneseq
        %v2827 = vshrl.u32 %v2826, 7
        %v2828 = vsub.s32 1, %v2827
        %v2829 = vrot.slane %v2820, %v2828
        %v2832 = vmul.f32 %v2818, %v2825
        %v2833 = vmul.f32 %v2816, %v2829
        %v2834 = vmul.f32 %v2819, %v2825
        %v2835 = vmul.f32 %v2817, %v2829
        %2836 = vst [vmem:[#allocation2] sm:$0xff] %v2832
        %2837 = vst [vmem:[#allocation2 + $0x8] sm:$0xff] %v2833
        %2838 = vst [vmem:[#allocation2 + $0x10] sm:$0xff] %v2834
        %2839 = vst [vmem:[#allocation2 + $0x18] sm:$0xff] %v2835
        %2840 = vrot.lane.b32.xlu0 %v2804, 16
        %v2841 = vpop.permute.xlu0 %2840
        %2842 = vrot.lane.b32.xlu0 %v2806, 16
        %v2843 = vpop.permute.xlu0 %2842
        %2844 = vrot.lane.b32.xlu0 %v2805, 16
        %v2845 = vpop.permute.xlu0 %2844
        %2846 = vrot.lane.b32.xlu0 %v2807, 16
        %v2847 = vpop.permute.xlu0 %2846
        %v2848 = vsel %vm1275, %v2841, %v2845
        %v2849 = vsel %vm1275, %v2843, %v2847
        %v2850 = vsel %vm1275, %v2845, %v2841
        %v2851 = vsel %vm1275, %v2847, %v2843
        %s2852 = scalar_lea.vmem %s2, 1
        %v2853 = vld [vmem:[%s2852] ss:$8 sm:$0x3]
        %v2855 = vlaneseq
        %v2856 = vshrl.u32 %v2855, 7
        %v2857 = vsub.s32 0, %v2856
        %v2858 = vrot.slane %v2853, %v2857
        %v2859 = vlaneseq
        %v2860 = vshrl.u32 %v2859, 7
        %v2861 = vsub.s32 1, %v2860
        %v2862 = vrot.slane %v2853, %v2861
        %v2865 = vmul.f32 %v2850, %v2858
        %v2866 = vmul.f32 %v2848, %v2862
        %v2867 = vmul.f32 %v2851, %v2858
        %v2868 = vmul.f32 %v2849, %v2862
        %2869 = vst [vmem:[#allocation2 + $0x20] sm:$0xff] %v2865
        %2870 = vst [vmem:[#allocation2 + $0x28] sm:$0xff] %v2866
        %2871 = vst [vmem:[#allocation2 + $0x30] sm:$0xff] %v2867
        %2872 = vst [vmem:[#allocation2 + $0x38] sm:$0xff] %v2868
        %2873 = vrot.lane.b32.xlu0 %v2804, 15
        %v2874 = vpop.permute.xlu0 %2873
        %2875 = vrot.lane.b32.xlu0 %v2806, 15
        %v2876 = vpop.permute.xlu0 %2875
        %2877 = vrot.lane.b32.xlu0 %v2805, 15
        %v2878 = vpop.permute.xlu0 %2877
        %2879 = vrot.lane.b32.xlu0 %v2807, 15
        %v2880 = vpop.permute.xlu0 %2879
        %v2881 = vsel %vm1305, %v2874, %v2878
        %v2882 = vsel %vm1305, %v2876, %v2880
        %v2883 = vsel %vm1305, %v2878, %v2874
        %v2884 = vsel %vm1305, %v2880, %v2876
        %s2885 = scalar_lea.vmem %s2, 2
        %v2886 = vld [vmem:[%s2885] ss:$8 sm:$0x3]
        %v2888 = vlaneseq
        %v2889 = vshrl.u32 %v2888, 7
        %v2890 = vsub.s32 0, %v2889
        %v2891 = vrot.slane %v2886, %v2890
        %v2892 = vlaneseq
        %v2893 = vshrl.u32 %v2892, 7
        %v2894 = vsub.s32 1, %v2893
        %v2895 = vrot.slane %v2886, %v2894
        %v2898 = vmul.f32 %v2883, %v2891
        %v2899 = vmul.f32 %v2881, %v2895
        %v2900 = vmul.f32 %v2884, %v2891
        %v2901 = vmul.f32 %v2882, %v2895
        %2902 = vst [vmem:[#allocation2 + $0x40] sm:$0xff] %v2898
        %2903 = vst [vmem:[#allocation2 + $0x48] sm:$0xff] %v2899
        %2904 = vst [vmem:[#allocation2 + $0x50] sm:$0xff] %v2900
        %2905 = vst [vmem:[#allocation2 + $0x58] sm:$0xff] %v2901
        %2906 = vrot.lane.b32.xlu0 %v2804, 1
        %v2907 = vpop.permute.xlu0 %2906
        %2908 = vrot.lane.b32.xlu0 %v2806, 1
        %v2909 = vpop.permute.xlu0 %2908
        %2910 = vrot.lane.b32.xlu0 %v2805, 1
        %v2911 = vpop.permute.xlu0 %2910
        %2912 = vrot.lane.b32.xlu0 %v2807, 1
        %v2913 = vpop.permute.xlu0 %2912
        %v2914 = vsel %vm1491, %v2907, %v2911
        %v2915 = vsel %vm1491, %v2909, %v2913
        %v2916 = vsel %vm1491, %v2911, %v2907
        %v2917 = vsel %vm1491, %v2913, %v2909
        %s2918 = scalar_lea.vmem %s2, 3
        %v2919 = vld [vmem:[%s2918] ss:$8 sm:$0x3]
        %v2921 = vlaneseq
        %v2922 = vshrl.u32 %v2921, 7
        %v2923 = vsub.s32 0, %v2922
        %v2924 = vrot.slane %v2919, %v2923
        %v2925 = vlaneseq
        %v2926 = vshrl.u32 %v2925, 7
        %v2927 = vsub.s32 1, %v2926
        %v2928 = vrot.slane %v2919, %v2927
        %v2931 = vmul.f32 %v2916, %v2924
        %v2932 = vmul.f32 %v2914, %v2928
        %v2933 = vmul.f32 %v2917, %v2924
        %v2934 = vmul.f32 %v2915, %v2928
        %2935 = vst [vmem:[#allocation2 + $0x60] sm:$0xff] %v2931
        %2936 = vst [vmem:[#allocation2 + $0x68] sm:$0xff] %v2932
        %2937 = vst [vmem:[#allocation2 + $0x70] sm:$0xff] %v2933
        %2938 = vst [vmem:[#allocation2 + $0x78] sm:$0xff] %v2934
        %2939 = vst [vmem:[#allocation2 + $0x80] sm:$0xff] %v2804
        %2940 = vst [vmem:[#allocation2 + $0x88] sm:$0xff] %v2805
        %2941 = vst [vmem:[#allocation2 + $0x90] sm:$0xff] %v2806
        %2942 = vst [vmem:[#allocation2 + $0x98] sm:$0xff] %v2807
        %2943 = vrot.lane.b32.xlu0 %v2804, 127
        %v2944 = vpop.permute.xlu0 %2943
        %2945 = vrot.lane.b32.xlu0 %v2806, 127
        %v2946 = vpop.permute.xlu0 %2945
        %2947 = vrot.lane.b32.xlu0 %v2805, 127
        %v2948 = vpop.permute.xlu0 %2947
        %2949 = vrot.lane.b32.xlu0 %v2807, 127
        %v2950 = vpop.permute.xlu0 %2949
        %v2951 = vsel %vm1523, %v2944, %v2948
        %v2952 = vsel %vm1523, %v2946, %v2950
        %v2953 = vsel %vm1523, %v2948, %v2944
        %v2954 = vsel %vm1523, %v2950, %v2946
        %s2955 = scalar_lea.vmem %s2, 5
        %v2956 = vld [vmem:[%s2955] ss:$8 sm:$0x3]
        %v2958 = vlaneseq
        %v2959 = vshrl.u32 %v2958, 7
        %v2960 = vsub.s32 0, %v2959
        %v2961 = vrot.slane %v2956, %v2960
        %v2962 = vlaneseq
        %v2963 = vshrl.u32 %v2962, 7
        %v2964 = vsub.s32 1, %v2963
        %v2965 = vrot.slane %v2956, %v2964
        %v2968 = vmul.f32 %v2951, %v2961
        %v2969 = vmul.f32 %v2953, %v2965
        %v2970 = vmul.f32 %v2952, %v2961
        %v2971 = vmul.f32 %v2954, %v2965
        %2972 = vst [vmem:[#allocation2 + $0xa0] sm:$0xff] %v2968
        %2973 = vst [vmem:[#allocation2 + $0xa8] sm:$0xff] %v2969
        %2974 = vst [vmem:[#allocation2 + $0xb0] sm:$0xff] %v2970
        %2975 = vst [vmem:[#allocation2 + $0xb8] sm:$0xff] %v2971
        %2976 = vrot.lane.b32.xlu0 %v2804, 113
        %v2977 = vpop.permute.xlu0 %2976
        %2978 = vrot.lane.b32.xlu0 %v2806, 113
        %v2979 = vpop.permute.xlu0 %2978
        %2980 = vrot.lane.b32.xlu0 %v2805, 113
        %v2981 = vpop.permute.xlu0 %2980
        %2982 = vrot.lane.b32.xlu0 %v2807, 113
        %v2983 = vpop.permute.xlu0 %2982
        %v2984 = vsel %vm1715, %v2977, %v2981
        %v2985 = vsel %vm1715, %v2979, %v2983
        %v2986 = vsel %vm1715, %v2981, %v2977
        %v2987 = vsel %vm1715, %v2983, %v2979
        %s2988 = scalar_lea.vmem %s2, 6
        %v2989 = vld [vmem:[%s2988] ss:$8 sm:$0x3]
        %v2991 = vlaneseq
        %v2992 = vshrl.u32 %v2991, 7
        %v2993 = vsub.s32 0, %v2992
        %v2994 = vrot.slane %v2989, %v2993
        %v2995 = vlaneseq
        %v2996 = vshrl.u32 %v2995, 7
        %v2997 = vsub.s32 1, %v2996
        %v2998 = vrot.slane %v2989, %v2997
        %v3001 = vmul.f32 %v2984, %v2994
        %v3002 = vmul.f32 %v2986, %v2998
        %v3003 = vmul.f32 %v2985, %v2994
        %v3004 = vmul.f32 %v2987, %v2998
        %3005 = vst [vmem:[#allocation2 + $0xc0] sm:$0xff] %v3001
        %3006 = vst [vmem:[#allocation2 + $0xc8] sm:$0xff] %v3002
        %3007 = vst [vmem:[#allocation2 + $0xd0] sm:$0xff] %v3003
        %3008 = vst [vmem:[#allocation2 + $0xd8] sm:$0xff] %v3004
        %3009 = vrot.lane.b32.xlu0 %v2804, 112
        %v3010 = vpop.permute.xlu0 %3009
        %3011 = vrot.lane.b32.xlu0 %v2806, 112
        %v3012 = vpop.permute.xlu0 %3011
        %3013 = vrot.lane.b32.xlu0 %v2805, 112
        %v3014 = vpop.permute.xlu0 %3013
        %3015 = vrot.lane.b32.xlu0 %v2807, 112
        %v3016 = vpop.permute.xlu0 %3015
        %v3017 = vsel %vm1739, %v3010, %v3014
        %v3018 = vsel %vm1739, %v3012, %v3016
        %v3019 = vsel %vm1739, %v3014, %v3010
        %v3020 = vsel %vm1739, %v3016, %v3012
        %s3021 = scalar_lea.vmem %s2, 7
        %v3022 = vld [vmem:[%s3021] ss:$8 sm:$0x3]
        %v3024 = vlaneseq
        %v3025 = vshrl.u32 %v3024, 7
        %v3026 = vsub.s32 0, %v3025
        %v3027 = vrot.slane %v3022, %v3026
        %v3028 = vlaneseq
        %v3029 = vshrl.u32 %v3028, 7
        %v3030 = vsub.s32 1, %v3029
        %v3031 = vrot.slane %v3022, %v3030
        %v3034 = vmul.f32 %v3017, %v3027
        %v3035 = vmul.f32 %v3019, %v3031
        %v3036 = vmul.f32 %v3018, %v3027
        %v3037 = vmul.f32 %v3020, %v3031
        %3038 = vst [vmem:[#allocation2 + $0xe0] sm:$0xff] %v3034
        %3039 = vst [vmem:[#allocation2 + $0xe8] sm:$0xff] %v3035
        %3040 = vst [vmem:[#allocation2 + $0xf0] sm:$0xff] %v3036
        %3041 = vst [vmem:[#allocation2 + $0xf8] sm:$0xff] %v3037
        %3042 = vrot.lane.b32.xlu0 %v2804, 111
        %v3043 = vpop.permute.xlu0 %3042
        %3044 = vrot.lane.b32.xlu0 %v2806, 111
        %v3045 = vpop.permute.xlu0 %3044
        %3046 = vrot.lane.b32.xlu0 %v2805, 111
        %v3047 = vpop.permute.xlu0 %3046
        %3048 = vrot.lane.b32.xlu0 %v2807, 111
        %v3049 = vpop.permute.xlu0 %3048
        %v3050 = vsel %vm1769, %v3043, %v3047
        %v3051 = vsel %vm1769, %v3045, %v3049
        %v3052 = vsel %vm1769, %v3047, %v3043
        %v3053 = vsel %vm1769, %v3049, %v3045
        %s3054 = scalar_lea.vmem %s2, 16
        %v3055 = vld [vmem:[%s3054] ss:$8 sm:$0x3]
        %v3057 = vlaneseq
        %v3058 = vshrl.u32 %v3057, 7
        %v3059 = vsub.s32 0, %v3058
        %v3060 = vrot.slane %v3055, %v3059
        %v3061 = vlaneseq
        %v3062 = vshrl.u32 %v3061, 7
        %v3063 = vsub.s32 1, %v3062
        %v3064 = vrot.slane %v3055, %v3063
        %v3067 = vmul.f32 %v3050, %v3060
        %v3068 = vmul.f32 %v3052, %v3064
        %v3069 = vmul.f32 %v3051, %v3060
        %v3070 = vmul.f32 %v3053, %v3064
        %3071 = vst [vmem:[#allocation2 + $0x100] sm:$0xff] %v3067
        %3072 = vst [vmem:[#allocation2 + $0x108] sm:$0xff] %v3068
        %3073 = vst [vmem:[#allocation2 + $0x110] sm:$0xff] %v3069
        %3074 = vst [vmem:[#allocation2 + $0x118] sm:$0xff] %v3070
        %v3075 = vld [vmem:[#allocation11] sm:$0xff]
        %v3076 = vld [vmem:[#allocation11 + $0x8] sm:$0xff]
        %v3077 = vld [vmem:[#allocation2] sm:$0xff]
        %v3078 = vld [vmem:[#allocation2 + $0x8] sm:$0xff]
        %v3079 = vld [vmem:[#allocation2 + $0x10] sm:$0xff]
        %v3080 = vld [vmem:[#allocation2 + $0x18] sm:$0xff]
        %v3081 = vld [vmem:[#allocation2 + $0x20] sm:$0xff]
        %v3082 = vld [vmem:[#allocation2 + $0x28] sm:$0xff]
        %v3083 = vld [vmem:[#allocation2 + $0x30] sm:$0xff]
        %v3084 = vld [vmem:[#allocation2 + $0x38] sm:$0xff]
        %v3085 = vld [vmem:[#allocation2 + $0x40] sm:$0xff]
        %v3086 = vld [vmem:[#allocation2 + $0x48] sm:$0xff]
        %v3087 = vld [vmem:[#allocation2 + $0x50] sm:$0xff]
        %v3088 = vld [vmem:[#allocation2 + $0x58] sm:$0xff]
        %v3089 = vld [vmem:[#allocation2 + $0x60] sm:$0xff]
        %v3090 = vld [vmem:[#allocation2 + $0x68] sm:$0xff]
        %v3091 = vld [vmem:[#allocation2 + $0x70] sm:$0xff]
        %v3092 = vld [vmem:[#allocation2 + $0x78] sm:$0xff]
        %v3093 = vld [vmem:[#allocation2 + $0x80] sm:$0xff]
        %v3094 = vld [vmem:[#allocation2 + $0x88] sm:$0xff]
        %v3095 = vld [vmem:[#allocation2 + $0x90] sm:$0xff]
        %v3096 = vld [vmem:[#allocation2 + $0x98] sm:$0xff]
        %v3097 = vld [vmem:[#allocation2 + $0xa0] sm:$0xff]
        %v3098 = vld [vmem:[#allocation2 + $0xa8] sm:$0xff]
        %v3099 = vld [vmem:[#allocation2 + $0xb0] sm:$0xff]
        %v3100 = vld [vmem:[#allocation2 + $0xb8] sm:$0xff]
        %v3101 = vld [vmem:[#allocation2 + $0xc0] sm:$0xff]
        %v3102 = vld [vmem:[#allocation2 + $0xc8] sm:$0xff]
        %v3103 = vld [vmem:[#allocation2 + $0xd0] sm:$0xff]
        %v3104 = vld [vmem:[#allocation2 + $0xd8] sm:$0xff]
        %v3105 = vld [vmem:[#allocation2 + $0xe0] sm:$0xff]
        %v3106 = vld [vmem:[#allocation2 + $0xe8] sm:$0xff]
        %v3107 = vld [vmem:[#allocation2 + $0xf0] sm:$0xff]
        %v3108 = vld [vmem:[#allocation2 + $0xf8] sm:$0xff]
        %v3109 = vld [vmem:[#allocation2 + $0x100] sm:$0xff]
        %v3110 = vld [vmem:[#allocation2 + $0x108] sm:$0xff]
        %v3111 = vld [vmem:[#allocation2 + $0x110] sm:$0xff]
        %v3112 = vld [vmem:[#allocation2 + $0x118] sm:$0xff]
        %v3113 = vld [vmem:[%s7] sm:$0xff]
        %3115 = vset.pattern.permute.xlu0 0
        %3116 = vperm.xlu0 %3115, %v3113
        %v3117 = vpop.permute.xlu0 %3116
        %vm3119 = vcmask 130048
        %v3121 = vsel %vm3119, %v3076, 0
        %3123 = vmatprep.subr.mxu0 %v3108
        %3124 = vmatpush1.msra.mxu0 %v3107
        %3125 = vmatprep.subr.mxu0 %v3106
        %3126 = vmatpush1.msra.mxu0 %v3105
        %3127 = vmatprep.subr.mxu0 %v3104
        %3128 = vmatpush1.msra.mxu0 %v3103
        %3129 = vmatprep.subr.mxu0 %v3102
        %3130 = vmatpush1.msra.mxu0 %v3101
        %3131 = vmatprep.subr.mxu0 %v3100
        %3132 = vmatpush1.msra.mxu0 %v3099
        %3133 = vmatprep.subr.mxu0 %v3098
        %3134 = vmatpush1.msra.mxu0 %v3097
        %3135 = vmatprep.subr.mxu0 %v3096
        %3136 = vmatpush1.msra.mxu0 %v3095
        %3137 = vmatprep.subr.mxu0 %v3094
        %3138 = vmatpush1.msra.mxu0 %v3093
        %3139 = vmatprep.subr.mxu0 %v3092
        %3140 = vmatpush1.msra.mxu0 %v3091
        %3141 = vmatprep.subr.mxu0 %v3090
        %3142 = vmatpush1.msra.mxu0 %v3089
        %3143 = vmatprep.subr.mxu0 %v3088
        %3144 = vmatpush1.msra.mxu0 %v3087
        %3145 = vmatprep.subr.mxu0 %v3086
        %3146 = vmatpush1.msra.mxu0 %v3085
        %3147 = vmatprep.subr.mxu0 %v3084
        %3148 = vmatpush1.msra.mxu0 %v3083
        %3149 = vmatprep.subr.mxu0 %v3082
        %3150 = vmatpush1.msra.mxu0 %v3081
        %3151 = vmatprep.subr.mxu0 %v3080
        %3152 = vmatpush1.msra.mxu0 %v3079
        %3153 = vmatprep.subr.mxu0 %v3078
        %3154 = vmatpush1.msra.mxu0 %v3077
        %3155 = vmatprep.subr.mxu0 0.0
        %3156 = vmatpush2.msra.mxu0 0.0
        %3157 = vmatprep.subr.mxu0 0.0
        %3158 = vmatpush2.msra.mxu0 0.0
        %3159 = vmatprep.subr.mxu0 0.0
        %3160 = vmatpush2.msra.mxu0 0.0
        %3161 = vmatprep.subr.mxu0 0.0
        %3162 = vmatpush2.msra.mxu0 0.0
        %3163 = vmatprep.subr.mxu0 0.0
        %3164 = vmatpush2.msra.mxu0 0.0
        %3165 = vmatprep.subr.mxu0 0.0
        %3166 = vmatpush2.msra.mxu0 0.0
        %3167 = vmatprep.subr.mxu0 0.0
        %3168 = vmatpush2.msra.mxu0 0.0
        %3169 = vmatprep.subr.mxu0 0.0
        %3170 = vmatpush2.msra.mxu0 0.0
        %3171 = vmatprep.subr.mxu0 0.0
        %3172 = vmatpush2.msra.mxu0 0.0
        %3173 = vmatprep.subr.mxu0 0.0
        %3174 = vmatpush2.msra.mxu0 0.0
        %3175 = vmatprep.subr.mxu0 0.0
        %3176 = vmatpush2.msra.mxu0 0.0
        %3177 = vmatprep.subr.mxu0 0.0
        %3178 = vmatpush2.msra.mxu0 0.0
        %3179 = vmatprep.subr.mxu0 0.0
        %3180 = vmatpush2.msra.mxu0 0.0
        %3181 = vmatprep.subr.mxu0 0.0
        %3182 = vmatpush2.msra.mxu0 0.0
        %3183 = vmatprep.subr.mxu0 %v3112
        %3184 = vmatpush2.msra.mxu0 %v3111
        %3185 = vmatprep.subr.mxu0 %v3110
        %3186 = vmatpush2.msra.mxu0 %v3109
        %3187 = vmatprep.mubr.f32.mxu0 %v3121
        %3188 = vmatmul.mubr.f32.gmra.mxu0 %v3075
        %v3189 = vpop.f32.mrf.mxu0
        %v3190 = vadd.f32 %v3117, %v3189
        %v3191 = vpop.f32.mrf.mxu0
        %v3192 = vadd.f32 %v3117, %v3191
        %3193 = vdwg.mxu0
        %v3194 = vmax.f32 %v3190, 0.0
        %v3195 = vmax.f32 %v3192, 0.0
        %3196 = vrot.lane.b32.xlu0 %v3194, 34
        %v3197 = vpop.permute.xlu0 %3196
        %3198 = vrot.lane.b32.xlu0 %v3195, 34
        %v3199 = vpop.permute.xlu0 %3198
        %v3200 = vsel %vm981, %v3197, %v3199
        %v3201 = vsel %vm981, %v3199, %v3197
        %v3202 = vld [vmem:[#allocation8] ss:$8 sm:$0x3]
        %v3204 = vlaneseq
        %v3205 = vshrl.u32 %v3204, 7
        %v3206 = vsub.s32 0, %v3205
        %v3207 = vrot.slane %v3202, %v3206
        %v3208 = vlaneseq
        %v3209 = vshrl.u32 %v3208, 7
        %v3210 = vsub.s32 1, %v3209
        %v3211 = vrot.slane %v3202, %v3210
        %v3214 = vmul.f32 %v3201, %v3207
        %v3215 = vmul.f32 %v3200, %v3211
        %3216 = vst [vmem:[#allocation2] sm:$0xff] %v3214
        %3217 = vst [vmem:[#allocation2 + $0x8] sm:$0xff] %v3215
        %3218 = vrot.lane.b32.xlu0 %v3194, 33
        %v3219 = vpop.permute.xlu0 %3218
        %3220 = vrot.lane.b32.xlu0 %v3195, 33
        %v3221 = vpop.permute.xlu0 %3220
        %v3222 = vsel %vm1005, %v3219, %v3221
        %v3223 = vsel %vm1005, %v3221, %v3219
        %s3224 = scalar_lea.vmem [#allocation8], 1
        %v3225 = vld [vmem:[%s3224] ss:$8 sm:$0x3]
        %v3227 = vlaneseq
        %v3228 = vshrl.u32 %v3227, 7
        %v3229 = vsub.s32 0, %v3228
        %v3230 = vrot.slane %v3225, %v3229
        %v3231 = vlaneseq
        %v3232 = vshrl.u32 %v3231, 7
        %v3233 = vsub.s32 1, %v3232
        %v3234 = vrot.slane %v3225, %v3233
        %v3237 = vmul.f32 %v3223, %v3230
        %v3238 = vmul.f32 %v3222, %v3234
        %3239 = vst [vmem:[#allocation2 + $0x10] sm:$0xff] %v3237
        %3240 = vst [vmem:[#allocation2 + $0x18] sm:$0xff] %v3238
        %3241 = vrot.lane.b32.xlu0 %v3194, 32
        %v3242 = vpop.permute.xlu0 %3241
        %3243 = vrot.lane.b32.xlu0 %v3195, 32
        %v3244 = vpop.permute.xlu0 %3243
        %v3245 = vsel %vm1035, %v3242, %v3244
        %v3246 = vsel %vm1035, %v3244, %v3242
        %s3247 = scalar_lea.vmem [#allocation8], 2
        %v3248 = vld [vmem:[%s3247] ss:$8 sm:$0x3]
        %v3250 = vlaneseq
        %v3251 = vshrl.u32 %v3250, 7
        %v3252 = vsub.s32 0, %v3251
        %v3253 = vrot.slane %v3248, %v3252
        %v3254 = vlaneseq
        %v3255 = vshrl.u32 %v3254, 7
        %v3256 = vsub.s32 1, %v3255
        %v3257 = vrot.slane %v3248, %v3256
        %v3260 = vmul.f32 %v3246, %v3253
        %v3261 = vmul.f32 %v3245, %v3257
        %3262 = vst [vmem:[#allocation2 + $0x20] sm:$0xff] %v3260
        %3263 = vst [vmem:[#allocation2 + $0x28] sm:$0xff] %v3261
        %3264 = vrot.lane.b32.xlu0 %v3194, 31
        %v3265 = vpop.permute.xlu0 %3264
        %3266 = vrot.lane.b32.xlu0 %v3195, 31
        %v3267 = vpop.permute.xlu0 %3266
        %v3268 = vsel %vm1059, %v3265, %v3267
        %v3269 = vsel %vm1059, %v3267, %v3265
        %s3270 = scalar_lea.vmem [#allocation8], 3
        %v3271 = vld [vmem:[%s3270] ss:$8 sm:$0x3]
        %v3273 = vlaneseq
        %v3274 = vshrl.u32 %v3273, 7
        %v3275 = vsub.s32 0, %v3274
        %v3276 = vrot.slane %v3271, %v3275
        %v3277 = vlaneseq
        %v3278 = vshrl.u32 %v3277, 7
        %v3279 = vsub.s32 1, %v3278
        %v3280 = vrot.slane %v3271, %v3279
        %v3283 = vmul.f32 %v3269, %v3276
        %v3284 = vmul.f32 %v3268, %v3280
        %3285 = vst [vmem:[#allocation2 + $0x30] sm:$0xff] %v3283
        %3286 = vst [vmem:[#allocation2 + $0x38] sm:$0xff] %v3284
        %3287 = vrot.lane.b32.xlu0 %v3194, 30
        %v3288 = vpop.permute.xlu0 %3287
        %3289 = vrot.lane.b32.xlu0 %v3195, 30
        %v3290 = vpop.permute.xlu0 %3289
        %v3291 = vsel %vm1089, %v3288, %v3290
        %v3292 = vsel %vm1089, %v3290, %v3288
        %s3293 = scalar_lea.vmem [#allocation8], 4
        %v3294 = vld [vmem:[%s3293] ss:$8 sm:$0x3]
        %v3296 = vlaneseq
        %v3297 = vshrl.u32 %v3296, 7
        %v3298 = vsub.s32 0, %v3297
        %v3299 = vrot.slane %v3294, %v3298
        %v3300 = vlaneseq
        %v3301 = vshrl.u32 %v3300, 7
        %v3302 = vsub.s32 1, %v3301
        %v3303 = vrot.slane %v3294, %v3302
        %v3306 = vmul.f32 %v3292, %v3299
        %v3307 = vmul.f32 %v3291, %v3303
        %3308 = vst [vmem:[#allocation2 + $0x40] sm:$0xff] %v3306
        %3309 = vst [vmem:[#allocation2 + $0x48] sm:$0xff] %v3307
        %3310 = vrot.lane.b32.xlu0 %v3194, 18
        %v3311 = vpop.permute.xlu0 %3310
        %3312 = vrot.lane.b32.xlu0 %v3195, 18
        %v3313 = vpop.permute.xlu0 %3312
        %v3314 = vsel %vm1221, %v3311, %v3313
        %v3315 = vsel %vm1221, %v3313, %v3311
        %s3316 = scalar_lea.vmem [#allocation8], 5
        %v3317 = vld [vmem:[%s3316] ss:$8 sm:$0x3]
        %v3319 = vlaneseq
        %v3320 = vshrl.u32 %v3319, 7
        %v3321 = vsub.s32 0, %v3320
        %v3322 = vrot.slane %v3317, %v3321
        %v3323 = vlaneseq
        %v3324 = vshrl.u32 %v3323, 7
        %v3325 = vsub.s32 1, %v3324
        %v3326 = vrot.slane %v3317, %v3325
        %v3329 = vmul.f32 %v3315, %v3322
        %v3330 = vmul.f32 %v3314, %v3326
        %3331 = vst [vmem:[#allocation2 + $0x50] sm:$0xff] %v3329
        %3332 = vst [vmem:[#allocation2 + $0x58] sm:$0xff] %v3330
        %3333 = vrot.lane.b32.xlu0 %v3194, 17
        %v3334 = vpop.permute.xlu0 %3333
        %3335 = vrot.lane.b32.xlu0 %v3195, 17
        %v3336 = vpop.permute.xlu0 %3335
        %v3337 = vsel %vm1251, %v3334, %v3336
        %v3338 = vsel %vm1251, %v3336, %v3334
        %s3339 = scalar_lea.vmem [#allocation8], 6
        %v3340 = vld [vmem:[%s3339] ss:$8 sm:$0x3]
        %v3342 = vlaneseq
        %v3343 = vshrl.u32 %v3342, 7
        %v3344 = vsub.s32 0, %v3343
        %v3345 = vrot.slane %v3340, %v3344
        %v3346 = vlaneseq
        %v3347 = vshrl.u32 %v3346, 7
        %v3348 = vsub.s32 1, %v3347
        %v3349 = vrot.slane %v3340, %v3348
        %v3352 = vmul.f32 %v3338, %v3345
        %v3353 = vmul.f32 %v3337, %v3349
        %3354 = vst [vmem:[#allocation2 + $0x60] sm:$0xff] %v3352
        %3355 = vst [vmem:[#allocation2 + $0x68] sm:$0xff] %v3353
        %3356 = vrot.lane.b32.xlu0 %v3194, 16
        %v3357 = vpop.permute.xlu0 %3356
        %3358 = vrot.lane.b32.xlu0 %v3195, 16
        %v3359 = vpop.permute.xlu0 %3358
        %v3360 = vsel %vm1275, %v3357, %v3359
        %v3361 = vsel %vm1275, %v3359, %v3357
        %s3362 = scalar_lea.vmem [#allocation8], 7
        %v3363 = vld [vmem:[%s3362] ss:$8 sm:$0x3]
        %v3365 = vlaneseq
        %v3366 = vshrl.u32 %v3365, 7
        %v3367 = vsub.s32 0, %v3366
        %v3368 = vrot.slane %v3363, %v3367
        %v3369 = vlaneseq
        %v3370 = vshrl.u32 %v3369, 7
        %v3371 = vsub.s32 1, %v3370
        %v3372 = vrot.slane %v3363, %v3371
        %v3375 = vmul.f32 %v3361, %v3368
        %v3376 = vmul.f32 %v3360, %v3372
        %3377 = vst [vmem:[#allocation2 + $0x70] sm:$0xff] %v3375
        %3378 = vst [vmem:[#allocation2 + $0x78] sm:$0xff] %v3376
        %3379 = vrot.lane.b32.xlu0 %v3194, 15
        %v3380 = vpop.permute.xlu0 %3379
        %3381 = vrot.lane.b32.xlu0 %v3195, 15
        %v3382 = vpop.permute.xlu0 %3381
        %v3383 = vsel %vm1305, %v3380, %v3382
        %v3384 = vsel %vm1305, %v3382, %v3380
        %s3385 = scalar_lea.vmem [#allocation8], 16
        %v3386 = vld [vmem:[%s3385] ss:$8 sm:$0x3]
        %v3388 = vlaneseq
        %v3389 = vshrl.u32 %v3388, 7
        %v3390 = vsub.s32 0, %v3389
        %v3391 = vrot.slane %v3386, %v3390
        %v3392 = vlaneseq
        %v3393 = vshrl.u32 %v3392, 7
        %v3394 = vsub.s32 1, %v3393
        %v3395 = vrot.slane %v3386, %v3394
        %v3398 = vmul.f32 %v3384, %v3391
        %v3399 = vmul.f32 %v3383, %v3395
        %3400 = vst [vmem:[#allocation2 + $0x80] sm:$0xff] %v3398
        %3401 = vst [vmem:[#allocation2 + $0x88] sm:$0xff] %v3399
        %3402 = vrot.lane.b32.xlu0 %v3194, 14
        %v3403 = vpop.permute.xlu0 %3402
        %3404 = vrot.lane.b32.xlu0 %v3195, 14
        %v3405 = vpop.permute.xlu0 %3404
        %v3406 = vsel %vm1329, %v3403, %v3405
        %v3407 = vsel %vm1329, %v3405, %v3403
        %s3408 = scalar_lea.vmem [#allocation8], 17
        %v3409 = vld [vmem:[%s3408] ss:$8 sm:$0x3]
        %v3411 = vlaneseq
        %v3412 = vshrl.u32 %v3411, 7
        %v3413 = vsub.s32 0, %v3412
        %v3414 = vrot.slane %v3409, %v3413
        %v3415 = vlaneseq
        %v3416 = vshrl.u32 %v3415, 7
        %v3417 = vsub.s32 1, %v3416
        %v3418 = vrot.slane %v3409, %v3417
        %v3421 = vmul.f32 %v3407, %v3414
        %v3422 = vmul.f32 %v3406, %v3418
        %3423 = vst [vmem:[#allocation2 + $0x90] sm:$0xff] %v3421
        %3424 = vst [vmem:[#allocation2 + $0x98] sm:$0xff] %v3422
        %3425 = vrot.lane.b32.xlu0 %v3194, 2
        %v3426 = vpop.permute.xlu0 %3425
        %3427 = vrot.lane.b32.xlu0 %v3195, 2
        %v3428 = vpop.permute.xlu0 %3427
        %v3429 = vsel %vm1467, %v3426, %v3428
        %v3430 = vsel %vm1467, %v3428, %v3426
        %s3431 = scalar_lea.vmem [#allocation8], 18
        %v3432 = vld [vmem:[%s3431] ss:$8 sm:$0x3]
        %v3434 = vlaneseq
        %v3435 = vshrl.u32 %v3434, 7
        %v3436 = vsub.s32 0, %v3435
        %v3437 = vrot.slane %v3432, %v3436
        %v3438 = vlaneseq
        %v3439 = vshrl.u32 %v3438, 7
        %v3440 = vsub.s32 1, %v3439
        %v3441 = vrot.slane %v3432, %v3440
        %v3444 = vmul.f32 %v3430, %v3437
        %v3445 = vmul.f32 %v3429, %v3441
        %3446 = vst [vmem:[#allocation2 + $0xa0] sm:$0xff] %v3444
        %3447 = vst [vmem:[#allocation2 + $0xa8] sm:$0xff] %v3445
        %3448 = vrot.lane.b32.xlu0 %v3194, 1
        %v3449 = vpop.permute.xlu0 %3448
        %3450 = vrot.lane.b32.xlu0 %v3195, 1
        %v3451 = vpop.permute.xlu0 %3450
        %v3452 = vsel %vm1491, %v3449, %v3451
        %v3453 = vsel %vm1491, %v3451, %v3449
        %s3454 = scalar_lea.vmem [#allocation8], 19
        %v3455 = vld [vmem:[%s3454] ss:$8 sm:$0x3]
        %v3457 = vlaneseq
        %v3458 = vshrl.u32 %v3457, 7
        %v3459 = vsub.s32 0, %v3458
        %v3460 = vrot.slane %v3455, %v3459
        %v3461 = vlaneseq
        %v3462 = vshrl.u32 %v3461, 7
        %v3463 = vsub.s32 1, %v3462
        %v3464 = vrot.slane %v3455, %v3463
        %v3467 = vmul.f32 %v3453, %v3460
        %v3468 = vmul.f32 %v3452, %v3464
        %3469 = vst [vmem:[#allocation2 + $0xb0] sm:$0xff] %v3467
        %3470 = vst [vmem:[#allocation2 + $0xb8] sm:$0xff] %v3468
        %3471 = vst [vmem:[#allocation2 + $0xc0] sm:$0xff] %v3194
        %3472 = vst [vmem:[#allocation2 + $0xc8] sm:$0xff] %v3195
        %3473 = vrot.lane.b32.xlu0 %v3194, 127
        %v3474 = vpop.permute.xlu0 %3473
        %3475 = vrot.lane.b32.xlu0 %v3195, 127
        %v3476 = vpop.permute.xlu0 %3475
        %v3477 = vsel %vm1523, %v3474, %v3476
        %v3478 = vsel %vm1523, %v3476, %v3474
        %s3479 = scalar_lea.vmem [#allocation8], 21
        %v3480 = vld [vmem:[%s3479] ss:$8 sm:$0x3]
        %v3482 = vlaneseq
        %v3483 = vshrl.u32 %v3482, 7
        %v3484 = vsub.s32 0, %v3483
        %v3485 = vrot.slane %v3480, %v3484
        %v3486 = vlaneseq
        %v3487 = vshrl.u32 %v3486, 7
        %v3488 = vsub.s32 1, %v3487
        %v3489 = vrot.slane %v3480, %v3488
        %v3492 = vmul.f32 %v3477, %v3485
        %v3493 = vmul.f32 %v3478, %v3489
        %3494 = vst [vmem:[#allocation2 + $0xd0] sm:$0xff] %v3492
        %3495 = vst [vmem:[#allocation2 + $0xd8] sm:$0xff] %v3493
        %3496 = vrot.lane.b32.xlu0 %v3194, 126
        %v3497 = vpop.permute.xlu0 %3496
        %3498 = vrot.lane.b32.xlu0 %v3195, 126
        %v3499 = vpop.permute.xlu0 %3498
        %v3500 = vsel %vm1553, %v3497, %v3499
        %v3501 = vsel %vm1553, %v3499, %v3497
        %s3502 = scalar_lea.vmem [#allocation8], 22
        %v3503 = vld [vmem:[%s3502] ss:$8 sm:$0x3]
        %v3505 = vlaneseq
        %v3506 = vshrl.u32 %v3505, 7
        %v3507 = vsub.s32 0, %v3506
        %v3508 = vrot.slane %v3503, %v3507
        %v3509 = vlaneseq
        %v3510 = vshrl.u32 %v3509, 7
        %v3511 = vsub.s32 1, %v3510
        %v3512 = vrot.slane %v3503, %v3511
        %v3515 = vmul.f32 %v3500, %v3508
        %v3516 = vmul.f32 %v3501, %v3512
        %3517 = vst [vmem:[#allocation2 + $0xe0] sm:$0xff] %v3515
        %3518 = vst [vmem:[#allocation2 + $0xe8] sm:$0xff] %v3516
        %3519 = vrot.lane.b32.xlu0 %v3194, 114
        %v3520 = vpop.permute.xlu0 %3519
        %3521 = vrot.lane.b32.xlu0 %v3195, 114
        %v3522 = vpop.permute.xlu0 %3521
        %v3523 = vsel %vm1685, %v3520, %v3522
        %v3524 = vsel %vm1685, %v3522, %v3520
        %s3525 = scalar_lea.vmem [#allocation8], 23
        %v3526 = vld [vmem:[%s3525] ss:$8 sm:$0x3]
        %v3528 = vlaneseq
        %v3529 = vshrl.u32 %v3528, 7
        %v3530 = vsub.s32 0, %v3529
        %v3531 = vrot.slane %v3526, %v3530
        %v3532 = vlaneseq
        %v3533 = vshrl.u32 %v3532, 7
        %v3534 = vsub.s32 1, %v3533
        %v3535 = vrot.slane %v3526, %v3534
        %v3538 = vmul.f32 %v3523, %v3531
        %v3539 = vmul.f32 %v3524, %v3535
        %3540 = vst [vmem:[#allocation2 + $0xf0] sm:$0xff] %v3538
        %3541 = vst [vmem:[#allocation2 + $0xf8] sm:$0xff] %v3539
        %3542 = vrot.lane.b32.xlu0 %v3194, 113
        %v3543 = vpop.permute.xlu0 %3542
        %3544 = vrot.lane.b32.xlu0 %v3195, 113
        %v3545 = vpop.permute.xlu0 %3544
        %v3546 = vsel %vm1715, %v3543, %v3545
        %v3547 = vsel %vm1715, %v3545, %v3543
        %s3548 = scalar_lea.vmem [#allocation8], 32
        %v3549 = vld [vmem:[%s3548] ss:$8 sm:$0x3]
        %v3551 = vlaneseq
        %v3552 = vshrl.u32 %v3551, 7
        %v3553 = vsub.s32 0, %v3552
        %v3554 = vrot.slane %v3549, %v3553
        %v3555 = vlaneseq
        %v3556 = vshrl.u32 %v3555, 7
        %v3557 = vsub.s32 1, %v3556
        %v3558 = vrot.slane %v3549, %v3557
        %v3561 = vmul.f32 %v3546, %v3554
        %v3562 = vmul.f32 %v3547, %v3558
        %3563 = vst [vmem:[#allocation2 + $0x100] sm:$0xff] %v3561
        %3564 = vst [vmem:[#allocation2 + $0x108] sm:$0xff] %v3562
        %3565 = vrot.lane.b32.xlu0 %v3194, 112
        %v3566 = vpop.permute.xlu0 %3565
        %3567 = vrot.lane.b32.xlu0 %v3195, 112
        %v3568 = vpop.permute.xlu0 %3567
        %v3569 = vsel %vm1739, %v3566, %v3568
        %v3570 = vsel %vm1739, %v3568, %v3566
        %s3571 = scalar_lea.vmem [#allocation8], 33
        %v3572 = vld [vmem:[%s3571] ss:$8 sm:$0x3]
        %v3574 = vlaneseq
        %v3575 = vshrl.u32 %v3574, 7
        %v3576 = vsub.s32 0, %v3575
        %v3577 = vrot.slane %v3572, %v3576
        %v3578 = vlaneseq
        %v3579 = vshrl.u32 %v3578, 7
        %v3580 = vsub.s32 1, %v3579
        %v3581 = vrot.slane %v3572, %v3580
        %v3584 = vmul.f32 %v3569, %v3577
        %v3585 = vmul.f32 %v3570, %v3581
        %3586 = vst [vmem:[#allocation2 + $0x110] sm:$0xff] %v3584
        %3587 = vst [vmem:[#allocation2 + $0x118] sm:$0xff] %v3585
        %3588 = vrot.lane.b32.xlu0 %v3194, 111
        %v3589 = vpop.permute.xlu0 %3588
        %3590 = vrot.lane.b32.xlu0 %v3195, 111
        %v3591 = vpop.permute.xlu0 %3590
        %v3592 = vsel %vm1769, %v3589, %v3591
        %v3593 = vsel %vm1769, %v3591, %v3589
        %s3594 = scalar_lea.vmem [#allocation8], 34
        %v3595 = vld [vmem:[%s3594] ss:$8 sm:$0x3]
        %v3597 = vlaneseq
        %v3598 = vshrl.u32 %v3597, 7
        %v3599 = vsub.s32 0, %v3598
        %v3600 = vrot.slane %v3595, %v3599
        %v3601 = vlaneseq
        %v3602 = vshrl.u32 %v3601, 7
        %v3603 = vsub.s32 1, %v3602
        %v3604 = vrot.slane %v3595, %v3603
        %v3607 = vmul.f32 %v3592, %v3600
        %v3608 = vmul.f32 %v3593, %v3604
        %3609 = vst [vmem:[#allocation2 + $0x120] sm:$0xff] %v3607
        %3610 = vst [vmem:[#allocation2 + $0x128] sm:$0xff] %v3608
        %3611 = vrot.lane.b32.xlu0 %v3194, 110
        %v3612 = vpop.permute.xlu0 %3611
        %3613 = vrot.lane.b32.xlu0 %v3195, 110
        %v3614 = vpop.permute.xlu0 %3613
        %v3615 = vsel %vm1793, %v3612, %v3614
        %v3616 = vsel %vm1793, %v3614, %v3612
        %s3617 = scalar_lea.vmem [#allocation8], 35
        %v3618 = vld [vmem:[%s3617] ss:$8 sm:$0x3]
        %v3620 = vlaneseq
        %v3621 = vshrl.u32 %v3620, 7
        %v3622 = vsub.s32 0, %v3621
        %v3623 = vrot.slane %v3618, %v3622
        %v3624 = vlaneseq
        %v3625 = vshrl.u32 %v3624, 7
        %v3626 = vsub.s32 1, %v3625
        %v3627 = vrot.slane %v3618, %v3626
        %v3630 = vmul.f32 %v3615, %v3623
        %v3631 = vmul.f32 %v3616, %v3627
        %3632 = vst [vmem:[#allocation2 + $0x130] sm:$0xff] %v3630
        %3633 = vst [vmem:[#allocation2 + $0x138] sm:$0xff] %v3631
        %3634 = vrot.lane.b32.xlu0 %v3194, 98
        %v3635 = vpop.permute.xlu0 %3634
        %3636 = vrot.lane.b32.xlu0 %v3195, 98
        %v3637 = vpop.permute.xlu0 %3636
        %v3638 = vsel %vm1931, %v3635, %v3637
        %v3639 = vsel %vm1931, %v3637, %v3635
        %s3640 = scalar_lea.vmem [#allocation8], 36
        %v3641 = vld [vmem:[%s3640] ss:$8 sm:$0x3]
        %v3643 = vlaneseq
        %v3644 = vshrl.u32 %v3643, 7
        %v3645 = vsub.s32 0, %v3644
        %v3646 = vrot.slane %v3641, %v3645
        %v3647 = vlaneseq
        %v3648 = vshrl.u32 %v3647, 7
        %v3649 = vsub.s32 1, %v3648
        %v3650 = vrot.slane %v3641, %v3649
        %v3653 = vmul.f32 %v3638, %v3646
        %v3654 = vmul.f32 %v3639, %v3650
        %3655 = vst [vmem:[#allocation2 + $0x140] sm:$0xff] %v3653
        %3656 = vst [vmem:[#allocation2 + $0x148] sm:$0xff] %v3654
        %3657 = vrot.lane.b32.xlu0 %v3194, 97
        %v3658 = vpop.permute.xlu0 %3657
        %3659 = vrot.lane.b32.xlu0 %v3195, 97
        %v3660 = vpop.permute.xlu0 %3659
        %v3661 = vsel %vm1955, %v3658, %v3660
        %v3662 = vsel %vm1955, %v3660, %v3658
        %s3663 = scalar_lea.vmem [#allocation8], 37
        %v3664 = vld [vmem:[%s3663] ss:$8 sm:$0x3]
        %v3666 = vlaneseq
        %v3667 = vshrl.u32 %v3666, 7
        %v3668 = vsub.s32 0, %v3667
        %v3669 = vrot.slane %v3664, %v3668
        %v3670 = vlaneseq
        %v3671 = vshrl.u32 %v3670, 7
        %v3672 = vsub.s32 1, %v3671
        %v3673 = vrot.slane %v3664, %v3672
        %v3676 = vmul.f32 %v3661, %v3669
        %v3677 = vmul.f32 %v3662, %v3673
        %3678 = vst [vmem:[#allocation2 + $0x150] sm:$0xff] %v3676
        %3679 = vst [vmem:[#allocation2 + $0x158] sm:$0xff] %v3677
        %3680 = vrot.lane.b32.xlu0 %v3194, 96
        %v3681 = vpop.permute.xlu0 %3680
        %3682 = vrot.lane.b32.xlu0 %v3195, 96
        %v3683 = vpop.permute.xlu0 %3682
        %v3684 = vsel %vm1985, %v3681, %v3683
        %v3685 = vsel %vm1985, %v3683, %v3681
        %s3686 = scalar_lea.vmem [#allocation8], 38
        %v3687 = vld [vmem:[%s3686] ss:$8 sm:$0x3]
        %v3689 = vlaneseq
        %v3690 = vshrl.u32 %v3689, 7
        %v3691 = vsub.s32 0, %v3690
        %v3692 = vrot.slane %v3687, %v3691
        %v3693 = vlaneseq
        %v3694 = vshrl.u32 %v3693, 7
        %v3695 = vsub.s32 1, %v3694
        %v3696 = vrot.slane %v3687, %v3695
        %v3699 = vmul.f32 %v3684, %v3692
        %v3700 = vmul.f32 %v3685, %v3696
        %3701 = vst [vmem:[#allocation2 + $0x160] sm:$0xff] %v3699
        %3702 = vst [vmem:[#allocation2 + $0x168] sm:$0xff] %v3700
        %3703 = vrot.lane.b32.xlu0 %v3194, 95
        %v3704 = vpop.permute.xlu0 %3703
        %3705 = vrot.lane.b32.xlu0 %v3195, 95
        %v3706 = vpop.permute.xlu0 %3705
        %v3707 = vsel %vm2009, %v3704, %v3706
        %v3708 = vsel %vm2009, %v3706, %v3704
        %s3709 = scalar_lea.vmem [#allocation8], 39
        %v3710 = vld [vmem:[%s3709] ss:$8 sm:$0x3]
        %v3712 = vlaneseq
        %v3713 = vshrl.u32 %v3712, 7
        %v3714 = vsub.s32 0, %v3713
        %v3715 = vrot.slane %v3710, %v3714
        %v3716 = vlaneseq
        %v3717 = vshrl.u32 %v3716, 7
        %v3718 = vsub.s32 1, %v3717
        %v3719 = vrot.slane %v3710, %v3718
        %v3722 = vmul.f32 %v3707, %v3715
        %v3723 = vmul.f32 %v3708, %v3719
        %3724 = vst [vmem:[#allocation2 + $0x170] sm:$0xff] %v3722
        %3725 = vst [vmem:[#allocation2 + $0x178] sm:$0xff] %v3723
        %3726 = vrot.lane.b32.xlu0 %v3194, 94
        %v3727 = vpop.permute.xlu0 %3726
        %3728 = vrot.lane.b32.xlu0 %v3195, 94
        %v3729 = vpop.permute.xlu0 %3728
        %v3730 = vsel %vm2039, %v3727, %v3729
        %v3731 = vsel %vm2039, %v3729, %v3727
        %s3732 = scalar_lea.vmem [#allocation8], 48
        %v3733 = vld [vmem:[%s3732] ss:$8 sm:$0x3]
        %v3735 = vlaneseq
        %v3736 = vshrl.u32 %v3735, 7
        %v3737 = vsub.s32 0, %v3736
        %v3738 = vrot.slane %v3733, %v3737
        %v3739 = vlaneseq
        %v3740 = vshrl.u32 %v3739, 7
        %v3741 = vsub.s32 1, %v3740
        %v3742 = vrot.slane %v3733, %v3741
        %v3745 = vmul.f32 %v3730, %v3738
        %v3746 = vmul.f32 %v3731, %v3742
        %3747 = vst [vmem:[#allocation2 + $0x180] sm:$0xff] %v3745
        %3748 = vst [vmem:[#allocation2 + $0x188] sm:$0xff] %v3746
        %v3749 = vld [vmem:[%s8] sm:$0xff]
        %v3750 = vld [vmem:[#allocation2] sm:$0xff]
        %v3751 = vld [vmem:[#allocation2 + $0x8] sm:$0xff]
        %v3752 = vld [vmem:[#allocation2 + $0x10] sm:$0xff]
        %v3753 = vld [vmem:[#allocation2 + $0x18] sm:$0xff]
        %v3754 = vld [vmem:[#allocation2 + $0x20] sm:$0xff]
        %v3755 = vld [vmem:[#allocation2 + $0x28] sm:$0xff]
        %v3756 = vld [vmem:[#allocation2 + $0x30] sm:$0xff]
        %v3757 = vld [vmem:[#allocation2 + $0x38] sm:$0xff]
        %v3758 = vld [vmem:[#allocation2 + $0x40] sm:$0xff]
        %v3759 = vld [vmem:[#allocation2 + $0x48] sm:$0xff]
        %v3760 = vld [vmem:[#allocation2 + $0x50] sm:$0xff]
        %v3761 = vld [vmem:[#allocation2 + $0x58] sm:$0xff]
        %v3762 = vld [vmem:[#allocation2 + $0x60] sm:$0xff]
        %v3763 = vld [vmem:[#allocation2 + $0x68] sm:$0xff]
        %v3764 = vld [vmem:[#allocation2 + $0x70] sm:$0xff]
        %v3765 = vld [vmem:[#allocation2 + $0x78] sm:$0xff]
        %v3766 = vld [vmem:[#allocation2 + $0x80] sm:$0xff]
        %v3767 = vld [vmem:[#allocation2 + $0x88] sm:$0xff]
        %v3768 = vld [vmem:[#allocation2 + $0x90] sm:$0xff]
        %v3769 = vld [vmem:[#allocation2 + $0x98] sm:$0xff]
        %v3770 = vld [vmem:[#allocation2 + $0xa0] sm:$0xff]
        %v3771 = vld [vmem:[#allocation2 + $0xa8] sm:$0xff]
        %v3772 = vld [vmem:[#allocation2 + $0xb0] sm:$0xff]
        %v3773 = vld [vmem:[#allocation2 + $0xb8] sm:$0xff]
        %v3774 = vld [vmem:[#allocation2 + $0xc0] sm:$0xff]
        %v3775 = vld [vmem:[#allocation2 + $0xc8] sm:$0xff]
        %v3776 = vld [vmem:[#allocation2 + $0xd0] sm:$0xff]
        %v3777 = vld [vmem:[#allocation2 + $0xd8] sm:$0xff]
        %v3778 = vld [vmem:[#allocation2 + $0xe0] sm:$0xff]
        %v3779 = vld [vmem:[#allocation2 + $0xe8] sm:$0xff]
        %v3780 = vld [vmem:[#allocation2 + $0xf0] sm:$0xff]
        %v3781 = vld [vmem:[#allocation2 + $0xf8] sm:$0xff]
        %v3782 = vld [vmem:[#allocation2 + $0x100] sm:$0xff]
        %v3783 = vld [vmem:[#allocation2 + $0x108] sm:$0xff]
        %v3784 = vld [vmem:[#allocation2 + $0x110] sm:$0xff]
        %v3785 = vld [vmem:[#allocation2 + $0x118] sm:$0xff]
        %v3786 = vld [vmem:[#allocation2 + $0x120] sm:$0xff]
        %v3787 = vld [vmem:[#allocation2 + $0x128] sm:$0xff]
        %v3788 = vld [vmem:[#allocation2 + $0x130] sm:$0xff]
        %v3789 = vld [vmem:[#allocation2 + $0x138] sm:$0xff]
        %v3790 = vld [vmem:[#allocation2 + $0x140] sm:$0xff]
        %v3791 = vld [vmem:[#allocation2 + $0x148] sm:$0xff]
        %v3792 = vld [vmem:[#allocation2 + $0x150] sm:$0xff]
        %v3793 = vld [vmem:[#allocation2 + $0x158] sm:$0xff]
        %v3794 = vld [vmem:[#allocation2 + $0x160] sm:$0xff]
        %v3795 = vld [vmem:[#allocation2 + $0x168] sm:$0xff]
        %v3796 = vld [vmem:[#allocation2 + $0x170] sm:$0xff]
        %v3797 = vld [vmem:[#allocation2 + $0x178] sm:$0xff]
        %v3798 = vld [vmem:[#allocation2 + $0x180] sm:$0xff]
        %v3799 = vld [vmem:[#allocation2 + $0x188] sm:$0xff]
        %v3800 = vld [vmem:[%s9] sm:$0xf]
        %3802 = vset.pattern.permute.xlu0 0
        %3803 = vperm.xlu0 %3802, %v3800
        %v3804 = vpop.permute.xlu0 %3803
        %v3807 = vcombine.high %v3749, %v3749
        %vm3808 = vcmask 588800
        %v3809 = vsel %vm3808, %v3807, 0
        %3811 = vmatprep.subr.mxu0 %v3781
        %3812 = vmatpush1.msra.mxu0 %v3780
        %3813 = vmatprep.subr.mxu0 %v3779
        %3814 = vmatpush1.msra.mxu0 %v3778
        %3815 = vmatprep.subr.mxu0 %v3777
        %3816 = vmatpush1.msra.mxu0 %v3776
        %3817 = vmatprep.subr.mxu0 %v3775
        %3818 = vmatpush1.msra.mxu0 %v3774
        %3819 = vmatprep.subr.mxu0 %v3773
        %3820 = vmatpush1.msra.mxu0 %v3772
        %3821 = vmatprep.subr.mxu0 %v3771
        %3822 = vmatpush1.msra.mxu0 %v3770
        %3823 = vmatprep.subr.mxu0 %v3769
        %3824 = vmatpush1.msra.mxu0 %v3768
        %3825 = vmatprep.subr.mxu0 %v3767
        %3826 = vmatpush1.msra.mxu0 %v3766
        %3827 = vmatprep.subr.mxu0 %v3765
        %3828 = vmatpush1.msra.mxu0 %v3764
        %3829 = vmatprep.subr.mxu0 %v3763
        %3830 = vmatpush1.msra.mxu0 %v3762
        %3831 = vmatprep.subr.mxu0 %v3761
        %3832 = vmatpush1.msra.mxu0 %v3760
        %3833 = vmatprep.subr.mxu0 %v3759
        %3834 = vmatpush1.msra.mxu0 %v3758
        %3835 = vmatprep.subr.mxu0 %v3757
        %3836 = vmatpush1.msra.mxu0 %v3756
        %3837 = vmatprep.subr.mxu0 %v3755
        %3838 = vmatpush1.msra.mxu0 %v3754
        %3839 = vmatprep.subr.mxu0 %v3753
        %3840 = vmatpush1.msra.mxu0 %v3752
        %3841 = vmatprep.subr.mxu0 %v3751
        %3842 = vmatpush1.msra.mxu0 %v3750
        %3843 = vmatprep.subr.mxu0 0.0
        %3844 = vmatpush2.msra.mxu0 0.0
        %3845 = vmatprep.subr.mxu0 0.0
        %3846 = vmatpush2.msra.mxu0 0.0
        %3847 = vmatprep.subr.mxu0 0.0
        %3848 = vmatpush2.msra.mxu0 0.0
        %3849 = vmatprep.subr.mxu0 0.0
        %3850 = vmatpush2.msra.mxu0 0.0
        %3851 = vmatprep.subr.mxu0 0.0
        %3852 = vmatpush2.msra.mxu0 0.0
        %3853 = vmatprep.subr.mxu0 0.0
        %3854 = vmatpush2.msra.mxu0 0.0
        %3855 = vmatprep.subr.mxu0 0.0
        %3856 = vmatpush2.msra.mxu0 0.0
        %3857 = vmatprep.subr.mxu0 %v3799
        %3858 = vmatpush2.msra.mxu0 %v3798
        %3859 = vmatprep.subr.mxu0 %v3797
        %3860 = vmatpush2.msra.mxu0 %v3796
        %3861 = vmatprep.subr.mxu0 %v3795
        %3862 = vmatpush2.msra.mxu0 %v3794
        %3863 = vmatprep.subr.mxu0 %v3793
        %3864 = vmatpush2.msra.mxu0 %v3792
        %3865 = vmatprep.subr.mxu0 %v3791
        %3866 = vmatpush2.msra.mxu0 %v3790
        %3867 = vmatprep.subr.mxu0 %v3789
        %3868 = vmatpush2.msra.mxu0 %v3788
        %3869 = vmatprep.subr.mxu0 %v3787
        %3870 = vmatpush2.msra.mxu0 %v3786
        %3871 = vmatprep.subr.mxu0 %v3785
        %3872 = vmatpush2.msra.mxu0 %v3784
        %3873 = vmatprep.subr.mxu0 %v3783
        %3874 = vmatpush2.msra.mxu0 %v3782
        %3875 = vmatprep.mubr.f32.mxu0 %v3809
        %3876 = vmatmul.mubr.f32.gmra.mxu0 %v3749
        %v3877 = vpop.f32.mrf.mxu0
        %v3878 = vadd.f32 %v3804, %v3877
        %v3879 = vpop.f32.mrf.mxu0
        %v3880 = vadd.f32 %v3804, %v3879
        %3881 = vdwg.mxu0
        %v3884 = vcombine.low %v3878, %v3880
        %3886 = vst [vmem:[%s431] sm:$0xff] %v3884
        %s3887 = sand.u32 %s252, 1
        %s3888 = scalar_lea.sflag [#allocation5], %s3887
        %s3889 = sand.u32 %s252, 1
        %s3890 = smul.addr %s3889, 8
        %s3891 = scalar_lea.vmem [#allocation12], %s3890
        // Predicated region
        $region81: #{tpu_custom_call.1} parent=59 // pred_check
          %p3892 = pneg %p262
        $region82: #{tpu_custom_call.1} parent=59 // pred_check_branch
          %3894 = sbr.rel (%p3892) target = $region84
        $region83: #{tpu_custom_call.1} parent=59 // pred_region
          %s3896 = ssub.s32 128, 128
          %3897 = vsyncadd %s3888, %s3896
          %s3898 = smul.addr %s29, 2
          %s3899 = smul.addr %s3898, 64
          %s3900 = scalar_lea.hbm %s10, %s3899
          %s3902 = sshll.u32 %s3891, 4
          %s3903 = int_to_ptr.vmem [resolvable:$true] %s3902
          %3905 = dma.vmem_to_hbm [thread:$0]  %s3903, 128, %s3900, %s3888
        $region84: #{tpu_custom_call.1} parent=59 // pred_fallthru
          _
      $region60: #{tpu_custom_call.1} parent=5 // pred_fallthru
        _
      %p3906 = scmp.le.s32.totalorder 2, %s24
      // Predicated region
      $region85: #{tpu_custom_call.1} parent=5 // pred_check
        %p3907 = pneg %p3906
      $region86: #{tpu_custom_call.1} parent=5 // pred_check_branch
        %3909 = sbr.rel (%p3907) target = $region88
      $region87: #{tpu_custom_call.1} parent=5 // pred_region
        %s3910 = ssub.s32 %s24, 2
        // Predicated region
        $region89: #{tpu_custom_call.1} parent=87 // pred_check
          %p3911 = pneg %p268
        $region90: #{tpu_custom_call.1} parent=87 // pred_check_branch
          %3913 = sbr.rel (%p3911) target = $region92
        $region91: #{tpu_custom_call.1} parent=87 // pred_region
          %s3914 = sand.u32 %s253, 1
          %s3915 = scalar_lea.sflag [#allocation5], %s3914
          %s3916 = sand.u32 %s253, 1
          %s3917 = smul.addr %s3916, 8
          %s3918 = scalar_lea.vmem [#allocation12], %s3917
          %3919 = dma.done %s3915, 128
        $region92: #{tpu_custom_call.1} parent=87 // pred_fallthru
          _
      $region88: #{tpu_custom_call.1} parent=5 // pred_fallthru
        _
    $region6: #{tpu_custom_call.1} parent=1 // loop_footer
      %s28 = sadd.s32 1, %s24
    $region7: #{tpu_custom_call.1} parent=1 // loop_footer_branch
      %23 = sbr.rel target = $region3
    $region8: #{tpu_custom_call.1} parent=1 // loop_exit
      _
    %3920 = vsyncpa [#allocation4], 1
    %s3921 = scalar_lea.sflag [#allocation4], 1
    %3922 = vsyncpa %s3921, 1
    %3923 = vsyncpa [#allocation7], 1
    %3924 = vsyncpa [#allocation10], 1
    %3925 = vsyncpa [#allocation5], 1
    %s3926 = scalar_lea.sflag [#allocation5], 1
    %3927 = vsyncpa %s3926, 1

</llo_original>
